<compile_context>
chip_gen: v5e
topology: v5e:2x2
jax: 0.10.0
libtpu: 0.0.40
codegen_flags: <defaults>
</compile_context>

<pallas_src>
import functools

import jax
import jax.numpy as jnp
from jax import lax
from jax.experimental import pallas as pl
from jax.experimental.pallas import tpu as pltpu

_LANE = 128
_BN_EPS = 1e-5
_LEAKY_SLOPE = 0.2
_RESIDENT_MAX_ROWS = 1024          # layers with more rows use the tiled path
_TM = 512                          # M tile for the pipelined path
_VMEM_LIMIT = 32 * 1024 * 1024


def _round_up(x, m):
    return (x + m - 1) // m * m


def _cparams(semantics):
    return pltpu.CompilerParams(dimension_semantics=semantics,
                                vmem_limit_bytes=_VMEM_LIMIT)


# ----------------------------------------------------------------------------
# Kernels
# ----------------------------------------------------------------------------
def _fused_layer_kernel(p_ref, w_ref, g_ref, b_ref, o_ref, *, mode):
    # Whole layer resident (grid=(1,)): exact single-pass BatchNorm stats.
    y = jnp.dot(p_ref[...], w_ref[...], preferred_element_type=jnp.float32)
    if mode == "leaky":
        mean = jnp.mean(y, axis=0, keepdims=True)
        centered = y - mean
        var = jnp.mean(centered * centered, axis=0, keepdims=True)
        scale = g_ref[...] * lax.rsqrt(var + _BN_EPS)          # EUP rsqrt
        z = centered * scale + b_ref[...]
        o_ref[...] = jnp.maximum(z, _LEAKY_SLOPE * z).astype(o_ref.dtype)
    else:  # "sigmoid": final layer fallback, no BN (g_ref/b_ref unused)
        o_ref[...] = jax.nn.sigmoid(y).astype(o_ref.dtype)


def _matmul_stats_kernel(p_ref, w_ref, y_ref, sum_ref, ssq_ref):
    # Tiled pass A: matmul tile + accumulate per-channel sum / sum-of-squares.
    @pl.when(pl.program_id(0) == 0)
    def _():
        sum_ref[...] = jnp.zeros_like(sum_ref)
        ssq_ref[...] = jnp.zeros_like(ssq_ref)

    y = jnp.dot(p_ref[...], w_ref[...], preferred_element_type=jnp.float32)
    sum_ref[...] += jnp.sum(y, axis=0, keepdims=True)
    ssq_ref[...] += jnp.sum(y * y, axis=0, keepdims=True)
    y_ref[...] = y.astype(y_ref.dtype)


def _bn_act_kernel(y_ref, scale_ref, shift_ref, o_ref):
    # Tiled pass B: BN affine + LeakyReLU on bf16 tiles ("parallel" M axis).
    z = y_ref[...].astype(jnp.float32) * scale_ref[...] + shift_ref[...]
    o_ref[...] = jnp.maximum(z, _LEAKY_SLOPE * z).astype(o_ref.dtype)


def _fused_tail_kernel(p_ref, w4_ref, g_ref, b_ref, w5_ref, o_ref, *,
                       n_rows_real, n_pad, hw):
    # Layer 4: matmul + BatchNorm (stats over real rows only) + LeakyReLU.
    y = jnp.dot(p_ref[...], w4_ref[...], preferred_element_type=jnp.float32)
    inv_n = 1.0 / n_rows_real
    mean = jnp.sum(y, axis=0, keepdims=True) * inv_n      # zero pad rows add 0
    ssq = jnp.sum(y * y, axis=0, keepdims=True) * inv_n
    var = jnp.maximum(ssq - mean * mean, 0.0)
    scale = g_ref[...] * lax.rsqrt(var + _BN_EPS)
    z = (y - mean) * scale + b_ref[...]
    a4 = jnp.maximum(z, _LEAKY_SLOPE * z)                  # (hw*n_pad, OC4p) f32

    # Layer 5: 4x4 valid conv == per-image flatten + matmul + sigmoid.
    # Rows are spatial-major (tap r major, image n minor) with n_pad a
    # multiple of 8, so each per-tap block is a sublane-aligned slice.
    flat = jnp.concatenate(
        [a4[r * n_pad:(r + 1) * n_pad, :] for r in range(hw)], axis=1)
    y5 = jnp.dot(flat.astype(jnp.bfloat16), w5_ref[...],
                 preferred_element_type=jnp.float32)
    o_ref[...] = jax.nn.sigmoid(y5).astype(o_ref.dtype)


# ----------------------------------------------------------------------------
# Wrappers
# ----------------------------------------------------------------------------
def _prep_bn(gamma, beta, oc, oc_pad):
    if gamma is None:
        gamma = jnp.ones((oc,), jnp.float32)
        beta = jnp.zeros((oc,), jnp.float32)
    g = jnp.pad(gamma.astype(jnp.float32), (0, oc_pad - oc)).reshape(1, oc_pad)
    b = jnp.pad(beta.astype(jnp.float32), (0, oc_pad - oc)).reshape(1, oc_pad)
    return g, b


def conv_bn_act_resident(patches, w, gamma, beta, mode):
    """Small layer: matmul + BN + activation fully fused, layer resident."""
    m, k = patches.shape
    oc = w.shape[1]
    k_pad = _round_up(k, _LANE)
    oc_pad = _round_up(oc, _LANE)
    p = jnp.pad(patches, ((0, 0), (0, k_pad - k)))                 # bf16
    w_p = jnp.pad(w, ((0, k_pad - k), (0, oc_pad - oc))).astype(jnp.bfloat16)
    g, b = _prep_bn(gamma, beta, oc, oc_pad)
    out_dtype = jnp.bfloat16 if mode == "leaky" else jnp.float32

    out = pl.pallas_call(
        functools.partial(_fused_layer_kernel, mode=mode),
        out_shape=jax.ShapeDtypeStruct((m, oc_pad), out_dtype),
        grid=(1,),
        in_specs=[
            pl.BlockSpec((m, k_pad), lambda i: (0, 0)),
            pl.BlockSpec((k_pad, oc_pad), lambda i: (0, 0)),
            pl.BlockSpec((1, oc_pad), lambda i: (0, 0)),
            pl.BlockSpec((1, oc_pad), lambda i: (0, 0)),
        ],
        out_specs=pl.BlockSpec((m, oc_pad), lambda i: (0, 0)),
        compiler_params=_cparams(("arbitrary",)),
    )(p, w_p, g, b)
    return out[:, :oc]


def conv_bn_leaky_tiled(patches, w, gamma, beta):
    """Large layer: M-tiled pipelined matmul+stats pass, then BN+act apply."""
    m, k = patches.shape
    oc = w.shape[1]
    k_pad = _round_up(k, _LANE)
    oc_pad = _round_up(oc, _LANE)
    m_pad = _round_up(m, _TM)
    p = jnp.pad(patches, ((0, m_pad - m), (0, k_pad - k)))         # bf16
    w_p = jnp.pad(w, ((0, k_pad - k), (0, oc_pad - oc))).astype(jnp.bfloat16)
    grid = (m_pad // _TM,)

    y, s, ss = pl.pallas_call(
        _matmul_stats_kernel,
        out_shape=(jax.ShapeDtypeStruct((m_pad, oc_pad), jnp.bfloat16),
                   jax.ShapeDtypeStruct((1, oc_pad), jnp.float32),
                   jax.ShapeDtypeStruct((1, oc_pad), jnp.float32)),
        grid=grid,
        in_specs=[pl.BlockSpec((_TM, k_pad), lambda i: (i, 0)),
                  pl.BlockSpec((k_pad, oc_pad), lambda i: (0, 0))],
        out_specs=(pl.BlockSpec((_TM, oc_pad), lambda i: (i, 0)),
                   pl.BlockSpec((1, oc_pad), lambda i: (0, 0)),
                   pl.BlockSpec((1, oc_pad), lambda i: (0, 0))),
        compiler_params=_cparams(("arbitrary",)),
    )(p, w_p)

    # Finalize BN statistics (divide by the real row count: zero-padded rows
    # contribute nothing to the sums) and fold gamma/beta into scale/shift.
    g, b = _prep_bn(gamma, beta, oc, oc_pad)
    mean = s / m
    var = jnp.maximum(ss / m - mean * mean, 0.0)
    scale = g * lax.rsqrt(var + _BN_EPS)
    shift = b - mean * scale

    out = pl.pallas_call(
        _bn_act_kernel,
        out_shape=jax.ShapeDtypeStruct((m_pad, oc_pad), jnp.bfloat16),
        grid=grid,
        in_specs=[pl.BlockSpec((_TM, oc_pad), lambda i: (i, 0)),
                  pl.BlockSpec((1, oc_pad), lambda i: (0, 0)),
                  pl.BlockSpec((1, oc_pad), lambda i: (0, 0))],
        out_specs=pl.BlockSpec((_TM, oc_pad), lambda i: (i, 0)),
        compiler_params=_cparams(("parallel",)),
    )(y, scale, shift)
    return out[:m, :oc]


def conv_bn_leaky(patches, w, gamma, beta):
    if patches.shape[0] > _RESIDENT_MAX_ROWS:
        return conv_bn_leaky_tiled(patches, w, gamma, beta)
    return conv_bn_act_resident(patches, w, gamma, beta, "leaky")


def conv_bn_leaky_plus_final(p4_nhwk, lp4, lp5, cfg4, cfg5):
    """Fused layer4 (conv+BN+LeakyReLU) + layer5 (4x4 valid conv + sigmoid).

    p4_nhwk: (N, OH4, OW4, K4) bf16 im2col patches of layer 4; requires
    OH4 == OW4 == layer-5 kernel size (the DCGAN NetD head geometry).
    Returns (N, 1) float32 probabilities.
    """
    n, oh4, ow4, k4 = p4_nhwk.shape
    hw = oh4 * ow4
    cin4, oc4, kk4, _, _, _ = cfg4
    cin5, oc5, kk5, _, _, _ = cfg5
    k4_pad = _round_up(k4, _LANE)
    oc4_pad = _round_up(oc4, _LANE)
    oc5_pad = _round_up(oc5, _LANE)
    n_pad = _round_up(n, 8)

    # Spatial-major rows (tap r major, image n minor); batch zero-padded to a
    # multiple of 8 so per-tap row blocks are sublane aligned in the kernel.
    p = jnp.pad(p4_nhwk, ((0, n_pad - n), (0, 0), (0, 0), (0, k4_pad - k4)))
    p = jnp.transpose(p, (1, 2, 0, 3)).reshape(hw * n_pad, k4_pad)

    w4 = jnp.transpose(lp4["w"], (2, 3, 1, 0)).reshape(kk4 * kk4 * cin4, oc4)
    w4 = jnp.pad(w4, ((0, k4_pad - k4), (0, oc4_pad - oc4))).astype(jnp.bfloat16)
    g4, b4 = _prep_bn(lp4["gamma"], lp4["beta"], oc4, oc4_pad)

    # Layer-5 weight (OC5, OC4, k, k) -> (hw*OC4p, OC5p) matching the flat
    # (tap r, channel c) column layout built inside the kernel.
    w5 = jnp.transpose(lp5["w"], (2, 3, 1, 0)).reshape(kk5 * kk5, cin5, oc5)
    w5 = jnp.pad(w5, ((0, 0), (0, oc4_pad - cin5), (0, oc5_pad - oc5)))
    w5 = w5.reshape(kk5 * kk5 * oc4_pad, oc5_pad).astype(jnp.bfloat16)

    out = pl.pallas_call(
        functools.partial(_fused_tail_kernel,
                          n_rows_real=float(hw * n), n_pad=n_pad, hw=hw),
        out_shape=jax.ShapeDtypeStruct((n_pad, oc5_pad), jnp.float32),
        grid=(1,),
        in_specs=[
            pl.BlockSpec((hw * n_pad, k4_pad), lambda i: (0, 0)),
            pl.BlockSpec((k4_pad, oc4_pad), lambda i: (0, 0)),
            pl.BlockSpec((1, oc4_pad), lambda i: (0, 0)),
            pl.BlockSpec((1, oc4_pad), lambda i: (0, 0)),
            pl.BlockSpec((hw * oc4_pad, oc5_pad), lambda i: (0, 0)),
        ],
        out_specs=pl.BlockSpec((n_pad, oc5_pad), lambda i: (0, 0)),
        compiler_params=_cparams(("arbitrary",)),
    )(p, w4, g4, b4, w5)
    return out[:n, :oc5]


# ----------------------------------------------------------------------------
# JAX glue: im2col (layout plumbing in XLA, kept in bf16)
# ----------------------------------------------------------------------------
def im2col(x_nhwc, kh, kw, stride, pad):
    """Returns (N, OH, OW, KH*KW*C) patches (same dtype as x), plus OH, OW."""
    x = jnp.pad(x_nhwc, ((0, 0), (pad, pad), (pad, pad), (0, 0)))
    n, h, w, c = x.shape
    oh = (h - kh) // stride + 1
    ow = (w - kw) // stride + 1
    cols = []
    for i in range(kh):
        for j in range(kw):
            cols.append(x[:, i:i + stride * oh:stride, j:j + stride * ow:stride, :])
    return jnp.concatenate(cols, axis=-1), oh, ow


# ----------------------------------------------------------------------------
# NetD forward
# ----------------------------------------------------------------------------
# (in_ch, out_ch, kernel, stride, pad, has_bn)
def _layer_configs(ndf):
    return [
        (3, ndf, 5, 3, 1, True),
        (ndf, ndf * 2, 4, 2, 1, True),
        (ndf * 2, ndf * 4, 4, 2, 1, True),
        (ndf * 4, ndf * 8, 4, 2, 1, True),
        (ndf * 8, 1, 4, 1, 0, False),
    ]


def init_params(key, ndf):
    params = []
    for (cin, cout, k, _, _, has_bn) in _layer_configs(ndf):
        key, wk, gk, bk = jax.random.split(key, 4)
        w = 0.02 * jax.random.normal(wk, (cout, cin, k, k), dtype=jnp.float32)
        if has_bn:
            gamma = 1.0 + 0.1 * jax.random.normal(gk, (cout,), dtype=jnp.float32)
            beta = 0.1 * jax.random.normal(bk, (cout,), dtype=jnp.float32)
        else:
            gamma = beta = None
        params.append({"w": w, "gamma": gamma, "beta": beta})
    return params


def netd_forward(x_nchw, params, ndf):
    cfgs = _layer_configs(ndf)
    x = jnp.transpose(x_nchw, (0, 2, 3, 1)).astype(jnp.bfloat16)  # NCHW -> NHWC
    n = x.shape[0]

    # Layers 1-3: Conv + BatchNorm + LeakyReLU.
    for li in range(3):
        cin, cout, k, s, pd, _ = cfgs[li]
        patches, oh, ow = im2col(x, k, k, s, pd)
        patches = patches.reshape(n * oh * ow, k * k * cin)
        w = jnp.transpose(params[li]["w"], (2, 3, 1, 0)).reshape(k * k * cin, cout)
        y = conv_bn_leaky(patches, w, params[li]["gamma"], params[li]["beta"])
        x = y.reshape(n, oh, ow, cout)

    # Layers 4 + 5 (fused head when the DCGAN 4x4 geometry matches).
    cin4, cout4, k4, s4, pd4, _ = cfgs[3]
    cin5, cout5, k5, s5, pd5, _ = cfgs[4]
    patches4, oh4, ow4 = im2col(x, k4, k4, s4, pd4)
    if oh4 == k5 and ow4 == k5 and s5 == 1 and pd5 == 0:
        out = conv_bn_leaky_plus_final(patches4, params[3], params[4],
                                       cfgs[3], cfgs[4])           # (N, 1)
        return out.reshape(n, 1, 1, 1)

    # Fallback: un-fused tail for non-DCGAN geometries.
    p4 = patches4.reshape(n * oh4 * ow4, k4 * k4 * cin4)
    w4 = jnp.transpose(params[3]["w"], (2, 3, 1, 0)).reshape(k4 * k4 * cin4, cout4)
    y4 = conv_bn_leaky(p4, w4, params[3]["gamma"], params[3]["beta"])
    x = y4.reshape(n, oh4, ow4, cout4)
    patches5, oh5, ow5 = im2col(x, k5, k5, s5, pd5)
    p5 = patches5.reshape(n * oh5 * ow5, k5 * k5 * cin5)
    w5 = jnp.transpose(params[4]["w"], (2, 3, 1, 0)).reshape(k5 * k5 * cin5, cout5)
    y5 = conv_bn_act_resident(p5, w5, None, None, "sigmoid")
    out = y5.reshape(n, oh5, ow5, cout5)
    return jnp.transpose(out, (0, 3, 1, 2))


if __name__ == "__main__":
    ndf = 8
    key = jax.random.PRNGKey(0)
    pkey, xkey = jax.random.split(key)
    params = init_params(pkey, ndf)
    # 96x96 input: 96 -> 32 -> 16 -> 8 -> 4 -> 1 (DCGAN NetD geometry).
    # Layer 1 (M=2048) exercises the tiled/pipelined path, layers 2-3 the
    # resident fused path, and layers 4+5 the fused head kernel.
    x = jax.random.normal(xkey, (2, 3, 96, 96), dtype=jnp.float32)
    fwd = jax.jit(netd_forward, static_argnums=2)
    out = jax.block_until_ready(fwd(x, params, ndf))
    assert out.shape == (2, 1, 1, 1), out.shape
    assert bool(jnp.all(jnp.isfinite(out)))
    assert bool(jnp.all((out >= 0.0) & (out <= 1.0)))
    print("KERNEL_OK")
</pallas_src>

<mosaic_0001>
module attributes {stable_mosaic.version = 11 : i64} {
  func.func @_matmul_stats_kernel(%arg0: i32, %arg1: memref<512x128xbf16, #tpu.memory_space<vmem>>, %arg2: memref<128x128xbf16, #tpu.memory_space<vmem>>, %arg3: memref<512x128xbf16, #tpu.memory_space<vmem>>, %arg4: memref<1x128xf32, #tpu.memory_space<vmem>>, %arg5: memref<1x128xf32, #tpu.memory_space<vmem>>) attributes {dimension_semantics = [#tpu.dimension_semantics<arbitrary>], iteration_bounds = array<i64: 4>, scalar_prefetch = 0 : i64, scratch_operands = 0 : i64, tpu.core_type = #tpu.core_type<tc>, window_params = [{transform_indices = @transform_0, window_bounds = array<i64: 512, 128>}, {pipeline_mode = #tpu.pipeline_mode<synchronous>, transform_indices = @transform_1, window_bounds = array<i64: 128, 128>}, {transform_indices = @transform_2, window_bounds = array<i64: 512, 128>}, {pipeline_mode = #tpu.pipeline_mode<synchronous>, transform_indices = @transform_3, window_bounds = array<i64: 1, 128>}, {pipeline_mode = #tpu.pipeline_mode<synchronous>, transform_indices = @transform_4, window_bounds = array<i64: 1, 128>}]} {
    %c0_i32 = arith.constant 0 : i32
    %0 = arith.cmpi eq, %arg0, %c0_i32 : i32
    %1 = arith.extui %0 : i1 to i32
    %c0_i32_0 = arith.constant 0 : i32
    %2 = arith.cmpi ne, %1, %c0_i32_0 : i32
    scf.if %2 {
      %cst_16 = arith.constant 0.000000e+00 : f32
      %19 = vector.broadcast %cst_16 : f32 to vector<1x128xf32>
      %c0_17 = arith.constant 0 : index
      %c0_18 = arith.constant 0 : index
      %20 = vector.load %arg4[%c0_17, %c0_18] : memref<1x128xf32, #tpu.memory_space<vmem>>, vector<1x128xf32>
      tpu.vector_store %arg4[%c0_17, %c0_18], %19 {strides = array<i32>} : memref<1x128xf32, #tpu.memory_space<vmem>>, vector<1x128xf32>,
      %cst_19 = arith.constant 0.000000e+00 : f32
      %21 = vector.broadcast %cst_19 : f32 to vector<1x128xf32>
      %c0_20 = arith.constant 0 : index
      %c0_21 = arith.constant 0 : index
      %22 = vector.load %arg5[%c0_20, %c0_21] : memref<1x128xf32, #tpu.memory_space<vmem>>, vector<1x128xf32>
      tpu.vector_store %arg5[%c0_20, %c0_21], %21 {strides = array<i32>} : memref<1x128xf32, #tpu.memory_space<vmem>>, vector<1x128xf32>,
    } else {
    }
    %c0 = arith.constant 0 : index
    %c0_1 = arith.constant 0 : index
    %3 = vector.load %arg1[%c0, %c0_1] : memref<512x128xbf16, #tpu.memory_space<vmem>>, vector<512x128xbf16>
    %c0_2 = arith.constant 0 : index
    %c0_3 = arith.constant 0 : index
    %4 = vector.load %arg2[%c0_2, %c0_3] : memref<128x128xbf16, #tpu.memory_space<vmem>>, vector<128x128xbf16>
    %cst = arith.constant dense<0.000000e+00> : vector<512x128xf32>
    %5 = tpu.matmul %3, %4, %cst {dimension_numbers = #tpu.dot_dimension_numbers<[1], [0], [0], [1], [0, 0, 1, 1], [], []>} : vector<512x128xbf16>, vector<128x128xbf16>, vector<512x128xf32> -> vector<512x128xf32>
    %c0_4 = arith.constant 0 : index
    %c0_5 = arith.constant 0 : index
    %6 = vector.load %arg4[%c0_4, %c0_5] : memref<1x128xf32, #tpu.memory_space<vmem>>, vector<1x128xf32>
    %cst_6 = arith.constant dense<0.000000e+00> : vector<128xf32>
    %7 = vector.multi_reduction <add>, %5, %cst_6 [0] : vector<512x128xf32> to vector<128xf32>
    %8 = vector.shape_cast %7 : vector<128xf32> to vector<1x128xf32>
    %9 = arith.addf %6, %8 : vector<1x128xf32>
    %c0_7 = arith.constant 0 : index
    %c0_8 = arith.constant 0 : index
    %10 = vector.load %arg4[%c0_7, %c0_8] : memref<1x128xf32, #tpu.memory_space<vmem>>, vector<1x128xf32>
    tpu.vector_store %arg4[%c0_7, %c0_8], %9 {strides = array<i32>} : memref<1x128xf32, #tpu.memory_space<vmem>>, vector<1x128xf32>,
    %c0_9 = arith.constant 0 : index
    %c0_10 = arith.constant 0 : index
    %11 = vector.load %arg5[%c0_9, %c0_10] : memref<1x128xf32, #tpu.memory_space<vmem>>, vector<1x128xf32>
    %12 = arith.mulf %5, %5 : vector<512x128xf32>
    %cst_11 = arith.constant dense<0.000000e+00> : vector<128xf32>
    %13 = vector.multi_reduction <add>, %12, %cst_11 [0] : vector<512x128xf32> to vector<128xf32>
    %14 = vector.shape_cast %13 : vector<128xf32> to vector<1x128xf32>
    %15 = arith.addf %11, %14 : vector<1x128xf32>
    %c0_12 = arith.constant 0 : index
    %c0_13 = arith.constant 0 : index
    %16 = vector.load %arg5[%c0_12, %c0_13] : memref<1x128xf32, #tpu.memory_space<vmem>>, vector<1x128xf32>
    tpu.vector_store %arg5[%c0_12, %c0_13], %15 {strides = array<i32>} : memref<1x128xf32, #tpu.memory_space<vmem>>, vector<1x128xf32>,
    %17 = arith.truncf %5 : vector<512x128xf32> to vector<512x128xbf16>
    %c0_14 = arith.constant 0 : index
    %c0_15 = arith.constant 0 : index
    %18 = vector.load %arg3[%c0_14, %c0_15] : memref<512x128xbf16, #tpu.memory_space<vmem>>, vector<512x128xbf16>
    tpu.vector_store %arg3[%c0_14, %c0_15], %17 {strides = array<i32>} : memref<512x128xbf16, #tpu.memory_space<vmem>>, vector<512x128xbf16>,
    return
  }
  func.func @transform_0(%arg0: i32) -> (i32, i32) {
    %c0_i32 = arith.constant 0 : i32
    %c0_i32_0 = arith.constant 0 : i32
    return %arg0, %c0_i32 : i32, i32
  }
  func.func @transform_1(%arg0: i32) -> (i32, i32) {
    %c0_i32 = arith.constant 0 : i32
    %c0_i32_0 = arith.constant 0 : i32
    %c0_i32_1 = arith.constant 0 : i32
    return %c0_i32, %c0_i32_0 : i32, i32
  }
  func.func @transform_2(%arg0: i32) -> (i32, i32) {
    %c0_i32 = arith.constant 0 : i32
    %c0_i32_0 = arith.constant 0 : i32
    return %arg0, %c0_i32 : i32, i32
  }
  func.func @transform_3(%arg0: i32) -> (i32, i32) {
    %c0_i32 = arith.constant 0 : i32
    %c0_i32_0 = arith.constant 0 : i32
    %c0_i32_1 = arith.constant 0 : i32
    return %c0_i32, %c0_i32_0 : i32, i32
  }
  func.func @transform_4(%arg0: i32) -> (i32, i32) {
    %c0_i32 = arith.constant 0 : i32
    %c0_i32_0 = arith.constant 0 : i32
    %c0_i32_1 = arith.constant 0 : i32
    return %c0_i32, %c0_i32_0 : i32, i32
  }
}

module attributes {stable_mosaic.version = 11 : i64} {
  func.func @_bn_act_kernel(%arg0: i32, %arg1: memref<512x128xbf16, #tpu.memory_space<vmem>>, %arg2: memref<1x128xf32, #tpu.memory_space<vmem>>, %arg3: memref<1x128xf32, #tpu.memory_space<vmem>>, %arg4: memref<512x128xbf16, #tpu.memory_space<vmem>>) attributes {dimension_semantics = [#tpu.dimension_semantics<parallel>], iteration_bounds = array<i64: 4>, scalar_prefetch = 0 : i64, scratch_operands = 0 : i64, tpu.core_type = #tpu.core_type<tc>, window_params = [{transform_indices = @transform_0, window_bounds = array<i64: 512, 128>}, {pipeline_mode = #tpu.pipeline_mode<synchronous>, transform_indices = @transform_1, window_bounds = array<i64: 1, 128>}, {pipeline_mode = #tpu.pipeline_mode<synchronous>, transform_indices = @transform_2, window_bounds = array<i64: 1, 128>}, {transform_indices = @transform_3, window_bounds = array<i64: 512, 128>}]} {
    %c0 = arith.constant 0 : index
    %c0_0 = arith.constant 0 : index
    %0 = vector.load %arg1[%c0, %c0_0] : memref<512x128xbf16, #tpu.memory_space<vmem>>, vector<512x128xbf16>
    %1 = arith.extf %0 : vector<512x128xbf16> to vector<512x128xf32>
    %c0_1 = arith.constant 0 : index
    %c0_2 = arith.constant 0 : index
    %2 = vector.load %arg2[%c0_1, %c0_2] : memref<1x128xf32, #tpu.memory_space<vmem>>, vector<1x128xf32>
    %3 = vector.broadcast %2 : vector<1x128xf32> to vector<512x128xf32>
    %4 = arith.mulf %1, %3 : vector<512x128xf32>
    %c0_3 = arith.constant 0 : index
    %c0_4 = arith.constant 0 : index
    %5 = vector.load %arg3[%c0_3, %c0_4] : memref<1x128xf32, #tpu.memory_space<vmem>>, vector<1x128xf32>
    %6 = vector.broadcast %5 : vector<1x128xf32> to vector<512x128xf32>
    %7 = arith.addf %4, %6 : vector<512x128xf32>
    %cst = arith.constant 2.000000e-01 : f32
    %8 = vector.broadcast %cst : f32 to vector<512x128xf32>
    %9 = arith.mulf %8, %7 : vector<512x128xf32>
    %10 = arith.maximumf %7, %9 : vector<512x128xf32>
    %11 = arith.truncf %10 : vector<512x128xf32> to vector<512x128xbf16>
    %c0_5 = arith.constant 0 : index
    %c0_6 = arith.constant 0 : index
    %12 = vector.load %arg4[%c0_5, %c0_6] : memref<512x128xbf16, #tpu.memory_space<vmem>>, vector<512x128xbf16>
    tpu.vector_store %arg4[%c0_5, %c0_6], %11 {strides = array<i32>} : memref<512x128xbf16, #tpu.memory_space<vmem>>, vector<512x128xbf16>,
    return
  }
  func.func @transform_0(%arg0: i32) -> (i32, i32) {
    %c0_i32 = arith.constant 0 : i32
    %c0_i32_0 = arith.constant 0 : i32
    return %arg0, %c0_i32 : i32, i32
  }
  func.func @transform_1(%arg0: i32) -> (i32, i32) {
    %c0_i32 = arith.constant 0 : i32
    %c0_i32_0 = arith.constant 0 : i32
    %c0_i32_1 = arith.constant 0 : i32
    return %c0_i32, %c0_i32_0 : i32, i32
  }
  func.func @transform_2(%arg0: i32) -> (i32, i32) {
    %c0_i32 = arith.constant 0 : i32
    %c0_i32_0 = arith.constant 0 : i32
    %c0_i32_1 = arith.constant 0 : i32
    return %c0_i32, %c0_i32_0 : i32, i32
  }
  func.func @transform_3(%arg0: i32) -> (i32, i32) {
    %c0_i32 = arith.constant 0 : i32
    %c0_i32_0 = arith.constant 0 : i32
    return %arg0, %c0_i32 : i32, i32
  }
}

module attributes {stable_mosaic.version = 11 : i64} {
  func.func @_fused_layer_kernel(%arg0: i32, %arg1: memref<512x128xbf16, #tpu.memory_space<vmem>>, %arg2: memref<128x128xbf16, #tpu.memory_space<vmem>>, %arg3: memref<1x128xf32, #tpu.memory_space<vmem>>, %arg4: memref<1x128xf32, #tpu.memory_space<vmem>>, %arg5: memref<512x128xbf16, #tpu.memory_space<vmem>>) attributes {dimension_semantics = [#tpu.dimension_semantics<arbitrary>], iteration_bounds = array<i64: 1>, scalar_prefetch = 0 : i64, scratch_operands = 0 : i64, tpu.core_type = #tpu.core_type<tc>, window_params = [{pipeline_mode = #tpu.pipeline_mode<synchronous>, transform_indices = @transform_0, window_bounds = array<i64: 512, 128>}, {pipeline_mode = #tpu.pipeline_mode<synchronous>, transform_indices = @transform_1, window_bounds = array<i64: 128, 128>}, {pipeline_mode = #tpu.pipeline_mode<synchronous>, transform_indices = @transform_2, window_bounds = array<i64: 1, 128>}, {pipeline_mode = #tpu.pipeline_mode<synchronous>, transform_indices = @transform_3, window_bounds = array<i64: 1, 128>}, {pipeline_mode = #tpu.pipeline_mode<synchronous>, transform_indices = @transform_4, window_bounds = array<i64: 512, 128>}]} {
    %c0 = arith.constant 0 : index
    %c0_0 = arith.constant 0 : index
    %0 = vector.load %arg1[%c0, %c0_0] : memref<512x128xbf16, #tpu.memory_space<vmem>>, vector<512x128xbf16>
    %c0_1 = arith.constant 0 : index
    %c0_2 = arith.constant 0 : index
    %1 = vector.load %arg2[%c0_1, %c0_2] : memref<128x128xbf16, #tpu.memory_space<vmem>>, vector<128x128xbf16>
    %cst = arith.constant dense<0.000000e+00> : vector<512x128xf32>
    %2 = tpu.matmul %0, %1, %cst {dimension_numbers = #tpu.dot_dimension_numbers<[1], [0], [0], [1], [0, 0, 1, 1], [], []>} : vector<512x128xbf16>, vector<128x128xbf16>, vector<512x128xf32> -> vector<512x128xf32>
    %cst_3 = arith.constant dense<0.000000e+00> : vector<128xf32>
    %3 = vector.multi_reduction <add>, %2, %cst_3 [0] : vector<512x128xf32> to vector<128xf32>
    %4 = vector.shape_cast %3 : vector<128xf32> to vector<1x128xf32>
    %cst_4 = arith.constant 5.120000e+02 : f32
    %5 = vector.broadcast %cst_4 : f32 to vector<1x128xf32>
    %6 = arith.divf %4, %5 : vector<1x128xf32>
    %7 = vector.broadcast %6 : vector<1x128xf32> to vector<512x128xf32>
    %8 = arith.subf %2, %7 : vector<512x128xf32>
    %9 = arith.mulf %8, %8 : vector<512x128xf32>
    %cst_5 = arith.constant dense<0.000000e+00> : vector<128xf32>
    %10 = vector.multi_reduction <add>, %9, %cst_5 [0] : vector<512x128xf32> to vector<128xf32>
    %11 = vector.shape_cast %10 : vector<128xf32> to vector<1x128xf32>
    %cst_6 = arith.constant 5.120000e+02 : f32
    %12 = vector.broadcast %cst_6 : f32 to vector<1x128xf32>
    %13 = arith.divf %11, %12 : vector<1x128xf32>
    %c0_7 = arith.constant 0 : index
    %c0_8 = arith.constant 0 : index
    %14 = vector.load %arg3[%c0_7, %c0_8] : memref<1x128xf32, #tpu.memory_space<vmem>>, vector<1x128xf32>
    %cst_9 = arith.constant 9.99999974E-6 : f32
    %15 = vector.broadcast %cst_9 : f32 to vector<1x128xf32>
    %16 = arith.addf %13, %15 : vector<1x128xf32>
    %17 = math.rsqrt %16 : vector<1x128xf32>
    %18 = arith.mulf %14, %17 : vector<1x128xf32>
    %19 = vector.broadcast %18 : vector<1x128xf32> to vector<512x128xf32>
    %20 = arith.mulf %8, %19 : vector<512x128xf32>
    %c0_10 = arith.constant 0 : index
    %c0_11 = arith.constant 0 : index
    %21 = vector.load %arg4[%c0_10, %c0_11] : memref<1x128xf32, #tpu.memory_space<vmem>>, vector<1x128xf32>
    %22 = vector.broadcast %21 : vector<1x128xf32> to vector<512x128xf32>
    %23 = arith.addf %20, %22 : vector<512x128xf32>
    %cst_12 = arith.constant 2.000000e-01 : f32
    %24 = vector.broadcast %cst_12 : f32 to vector<512x128xf32>
    %25 = arith.mulf %24, %23 : vector<512x128xf32>
    %26 = arith.maximumf %23, %25 : vector<512x128xf32>
    %27 = arith.truncf %26 : vector<512x128xf32> to vector<512x128xbf16>
    %c0_13 = arith.constant 0 : index
    %c0_14 = arith.constant 0 : index
    %28 = vector.load %arg5[%c0_13, %c0_14] : memref<512x128xbf16, #tpu.memory_space<vmem>>, vector<512x128xbf16>
    tpu.vector_store %arg5[%c0_13, %c0_14], %27 {strides = array<i32>} : memref<512x128xbf16, #tpu.memory_space<vmem>>, vector<512x128xbf16>,
    return
  }
  func.func @transform_0(%arg0: i32) -> (i32, i32) {
    %c0_i32 = arith.constant 0 : i32
    %c0_i32_0 = arith.constant 0 : i32
    %c0_i32_1 = arith.constant 0 : i32
    return %c0_i32, %c0_i32_0 : i32, i32
  }
  func.func @transform_1(%arg0: i32) -> (i32, i32) {
    %c0_i32 = arith.constant 0 : i32
    %c0_i32_0 = arith.constant 0 : i32
    %c0_i32_1 = arith.constant 0 : i32
    return %c0_i32, %c0_i32_0 : i32, i32
  }
  func.func @transform_2(%arg0: i32) -> (i32, i32) {
    %c0_i32 = arith.constant 0 : i32
    %c0_i32_0 = arith.constant 0 : i32
    %c0_i32_1 = arith.constant 0 : i32
    return %c0_i32, %c0_i32_0 : i32, i32
  }
  func.func @transform_3(%arg0: i32) -> (i32, i32) {
    %c0_i32 = arith.constant 0 : i32
    %c0_i32_0 = arith.constant 0 : i32
    %c0_i32_1 = arith.constant 0 : i32
    return %c0_i32, %c0_i32_0 : i32, i32
  }
  func.func @transform_4(%arg0: i32) -> (i32, i32) {
    %c0_i32 = arith.constant 0 : i32
    %c0_i32_0 = arith.constant 0 : i32
    %c0_i32_1 = arith.constant 0 : i32
    return %c0_i32, %c0_i32_0 : i32, i32
  }
}

module attributes {stable_mosaic.version = 11 : i64} {
  func.func @_fused_layer_kernel(%arg0: i32, %arg1: memref<128x256xbf16, #tpu.memory_space<vmem>>, %arg2: memref<256x128xbf16, #tpu.memory_space<vmem>>, %arg3: memref<1x128xf32, #tpu.memory_space<vmem>>, %arg4: memref<1x128xf32, #tpu.memory_space<vmem>>, %arg5: memref<128x128xbf16, #tpu.memory_space<vmem>>) attributes {dimension_semantics = [#tpu.dimension_semantics<arbitrary>], iteration_bounds = array<i64: 1>, scalar_prefetch = 0 : i64, scratch_operands = 0 : i64, tpu.core_type = #tpu.core_type<tc>, window_params = [{pipeline_mode = #tpu.pipeline_mode<synchronous>, transform_indices = @transform_0, window_bounds = array<i64: 128, 256>}, {pipeline_mode = #tpu.pipeline_mode<synchronous>, transform_indices = @transform_1, window_bounds = array<i64: 256, 128>}, {pipeline_mode = #tpu.pipeline_mode<synchronous>, transform_indices = @transform_2, window_bounds = array<i64: 1, 128>}, {pipeline_mode = #tpu.pipeline_mode<synchronous>, transform_indices = @transform_3, window_bounds = array<i64: 1, 128>}, {pipeline_mode = #tpu.pipeline_mode<synchronous>, transform_indices = @transform_4, window_bounds = array<i64: 128, 128>}]} {
    %c0 = arith.constant 0 : index
    %c0_0 = arith.constant 0 : index
    %0 = vector.load %arg1[%c0, %c0_0] : memref<128x256xbf16, #tpu.memory_space<vmem>>, vector<128x256xbf16>
    %c0_1 = arith.constant 0 : index
    %c0_2 = arith.constant 0 : index
    %1 = vector.load %arg2[%c0_1, %c0_2] : memref<256x128xbf16, #tpu.memory_space<vmem>>, vector<256x128xbf16>
    %cst = arith.constant dense<0.000000e+00> : vector<128x128xf32>
    %2 = tpu.matmul %0, %1, %cst {dimension_numbers = #tpu.dot_dimension_numbers<[1], [0], [0], [1], [0, 0, 1, 1], [], []>} : vector<128x256xbf16>, vector<256x128xbf16>, vector<128x128xf32> -> vector<128x128xf32>
    %cst_3 = arith.constant dense<0.000000e+00> : vector<128xf32>
    %3 = vector.multi_reduction <add>, %2, %cst_3 [0] : vector<128x128xf32> to vector<128xf32>
    %4 = vector.shape_cast %3 : vector<128xf32> to vector<1x128xf32>
    %cst_4 = arith.constant 1.280000e+02 : f32
    %5 = vector.broadcast %cst_4 : f32 to vector<1x128xf32>
    %6 = arith.divf %4, %5 : vector<1x128xf32>
    %7 = vector.broadcast %6 : vector<1x128xf32> to vector<128x128xf32>
    %8 = arith.subf %2, %7 : vector<128x128xf32>
    %9 = arith.mulf %8, %8 : vector<128x128xf32>
    %cst_5 = arith.constant dense<0.000000e+00> : vector<128xf32>
    %10 = vector.multi_reduction <add>, %9, %cst_5 [0] : vector<128x128xf32> to vector<128xf32>
    %11 = vector.shape_cast %10 : vector<128xf32> to vector<1x128xf32>
    %cst_6 = arith.constant 1.280000e+02 : f32
    %12 = vector.broadcast %cst_6 : f32 to vector<1x128xf32>
    %13 = arith.divf %11, %12 : vector<1x128xf32>
    %c0_7 = arith.constant 0 : index
    %c0_8 = arith.constant 0 : index
    %14 = vector.load %arg3[%c0_7, %c0_8] : memref<1x128xf32, #tpu.memory_space<vmem>>, vector<1x128xf32>
    %cst_9 = arith.constant 9.99999974E-6 : f32
    %15 = vector.broadcast %cst_9 : f32 to vector<1x128xf32>
    %16 = arith.addf %13, %15 : vector<1x128xf32>
    %17 = math.rsqrt %16 : vector<1x128xf32>
    %18 = arith.mulf %14, %17 : vector<1x128xf32>
    %19 = vector.broadcast %18 : vector<1x128xf32> to vector<128x128xf32>
    %20 = arith.mulf %8, %19 : vector<128x128xf32>
    %c0_10 = arith.constant 0 : index
    %c0_11 = arith.constant 0 : index
    %21 = vector.load %arg4[%c0_10, %c0_11] : memref<1x128xf32, #tpu.memory_space<vmem>>, vector<1x128xf32>
    %22 = vector.broadcast %21 : vector<1x128xf32> to vector<128x128xf32>
    %23 = arith.addf %20, %22 : vector<128x128xf32>
    %cst_12 = arith.constant 2.000000e-01 : f32
    %24 = vector.broadcast %cst_12 : f32 to vector<128x128xf32>
    %25 = arith.mulf %24, %23 : vector<128x128xf32>
    %26 = arith.maximumf %23, %25 : vector<128x128xf32>
    %27 = arith.truncf %26 : vector<128x128xf32> to vector<128x128xbf16>
    %c0_13 = arith.constant 0 : index
    %c0_14 = arith.constant 0 : index
    %28 = vector.load %arg5[%c0_13, %c0_14] : memref<128x128xbf16, #tpu.memory_space<vmem>>, vector<128x128xbf16>
    tpu.vector_store %arg5[%c0_13, %c0_14], %27 {strides = array<i32>} : memref<128x128xbf16, #tpu.memory_space<vmem>>, vector<128x128xbf16>,
    return
  }
  func.func @transform_0(%arg0: i32) -> (i32, i32) {
    %c0_i32 = arith.constant 0 : i32
    %c0_i32_0 = arith.constant 0 : i32
    %c0_i32_1 = arith.constant 0 : i32
    return %c0_i32, %c0_i32_0 : i32, i32
  }
  func.func @transform_1(%arg0: i32) -> (i32, i32) {
    %c0_i32 = arith.constant 0 : i32
    %c0_i32_0 = arith.constant 0 : i32
    %c0_i32_1 = arith.constant 0 : i32
    return %c0_i32, %c0_i32_0 : i32, i32
  }
  func.func @transform_2(%arg0: i32) -> (i32, i32) {
    %c0_i32 = arith.constant 0 : i32
    %c0_i32_0 = arith.constant 0 : i32
    %c0_i32_1 = arith.constant 0 : i32
    return %c0_i32, %c0_i32_0 : i32, i32
  }
  func.func @transform_3(%arg0: i32) -> (i32, i32) {
    %c0_i32 = arith.constant 0 : i32
    %c0_i32_0 = arith.constant 0 : i32
    %c0_i32_1 = arith.constant 0 : i32
    return %c0_i32, %c0_i32_0 : i32, i32
  }
  func.func @transform_4(%arg0: i32) -> (i32, i32) {
    %c0_i32 = arith.constant 0 : i32
    %c0_i32_0 = arith.constant 0 : i32
    %c0_i32_1 = arith.constant 0 : i32
    return %c0_i32, %c0_i32_0 : i32, i32
  }
}

module attributes {stable_mosaic.version = 11 : i64} {
  func.func @_fused_tail_kernel(%arg0: i32, %arg1: memref<128x512xbf16, #tpu.memory_space<vmem>>, %arg2: memref<512x128xbf16, #tpu.memory_space<vmem>>, %arg3: memref<1x128xf32, #tpu.memory_space<vmem>>, %arg4: memref<1x128xf32, #tpu.memory_space<vmem>>, %arg5: memref<2048x128xbf16, #tpu.memory_space<vmem>>, %arg6: memref<8x128xf32, #tpu.memory_space<vmem>>) attributes {dimension_semantics = [#tpu.dimension_semantics<arbitrary>], iteration_bounds = array<i64: 1>, scalar_prefetch = 0 : i64, scratch_operands = 0 : i64, tpu.core_type = #tpu.core_type<tc>, window_params = [{pipeline_mode = #tpu.pipeline_mode<synchronous>, transform_indices = @transform_0, window_bounds = array<i64: 128, 512>}, {pipeline_mode = #tpu.pipeline_mode<synchronous>, transform_indices = @transform_1, window_bounds = array<i64: 512, 128>}, {pipeline_mode = #tpu.pipeline_mode<synchronous>, transform_indices = @transform_2, window_bounds = array<i64: 1, 128>}, {pipeline_mode = #tpu.pipeline_mode<synchronous>, transform_indices = @transform_3, window_bounds = array<i64: 1, 128>}, {pipeline_mode = #tpu.pipeline_mode<synchronous>, transform_indices = @transform_4, window_bounds = array<i64: 2048, 128>}, {pipeline_mode = #tpu.pipeline_mode<synchronous>, transform_indices = @transform_5, window_bounds = array<i64: 8, 128>}]} {
    %c0 = arith.constant 0 : index
    %c0_0 = arith.constant 0 : index
    %0 = vector.load %arg1[%c0, %c0_0] : memref<128x512xbf16, #tpu.memory_space<vmem>>, vector<128x512xbf16>
    %c0_1 = arith.constant 0 : index
    %c0_2 = arith.constant 0 : index
    %1 = vector.load %arg2[%c0_1, %c0_2] : memref<512x128xbf16, #tpu.memory_space<vmem>>, vector<512x128xbf16>
    %cst = arith.constant dense<0.000000e+00> : vector<128x128xf32>
    %2 = tpu.matmul %0, %1, %cst {dimension_numbers = #tpu.dot_dimension_numbers<[1], [0], [0], [1], [0, 0, 1, 1], [], []>} : vector<128x512xbf16>, vector<512x128xbf16>, vector<128x128xf32> -> vector<128x128xf32>
    %cst_3 = arith.constant dense<0.000000e+00> : vector<128xf32>
    %3 = vector.multi_reduction <add>, %2, %cst_3 [0] : vector<128x128xf32> to vector<128xf32>
    %4 = vector.shape_cast %3 : vector<128xf32> to vector<1x128xf32>
    %cst_4 = arith.constant 3.125000e-02 : f32
    %5 = vector.broadcast %cst_4 : f32 to vector<1x128xf32>
    %6 = arith.mulf %4, %5 : vector<1x128xf32>
    %7 = arith.mulf %2, %2 : vector<128x128xf32>
    %cst_5 = arith.constant dense<0.000000e+00> : vector<128xf32>
    %8 = vector.multi_reduction <add>, %7, %cst_5 [0] : vector<128x128xf32> to vector<128xf32>
    %9 = vector.shape_cast %8 : vector<128xf32> to vector<1x128xf32>
    %cst_6 = arith.constant 3.125000e-02 : f32
    %10 = vector.broadcast %cst_6 : f32 to vector<1x128xf32>
    %11 = arith.mulf %9, %10 : vector<1x128xf32>
    %12 = arith.mulf %6, %6 : vector<1x128xf32>
    %13 = arith.subf %11, %12 : vector<1x128xf32>
    %cst_7 = arith.constant 0.000000e+00 : f32
    %14 = vector.broadcast %cst_7 : f32 to vector<1x128xf32>
    %15 = arith.maximumf %13, %14 : vector<1x128xf32>
    %c0_8 = arith.constant 0 : index
    %c0_9 = arith.constant 0 : index
    %16 = vector.load %arg3[%c0_8, %c0_9] : memref<1x128xf32, #tpu.memory_space<vmem>>, vector<1x128xf32>
    %cst_10 = arith.constant 9.99999974E-6 : f32
    %17 = vector.broadcast %cst_10 : f32 to vector<1x128xf32>
    %18 = arith.addf %15, %17 : vector<1x128xf32>
    %19 = math.rsqrt %18 : vector<1x128xf32>
    %20 = arith.mulf %16, %19 : vector<1x128xf32>
    %21 = vector.broadcast %6 : vector<1x128xf32> to vector<128x128xf32>
    %22 = arith.subf %2, %21 : vector<128x128xf32>
    %23 = vector.broadcast %20 : vector<1x128xf32> to vector<128x128xf32>
    %24 = arith.mulf %22, %23 : vector<128x128xf32>
    %c0_11 = arith.constant 0 : index
    %c0_12 = arith.constant 0 : index
    %25 = vector.load %arg4[%c0_11, %c0_12] : memref<1x128xf32, #tpu.memory_space<vmem>>, vector<1x128xf32>
    %26 = vector.broadcast %25 : vector<1x128xf32> to vector<128x128xf32>
    %27 = arith.addf %24, %26 : vector<128x128xf32>
    %cst_13 = arith.constant 2.000000e-01 : f32
    %28 = vector.broadcast %cst_13 : f32 to vector<128x128xf32>
    %29 = arith.mulf %28, %27 : vector<128x128xf32>
    %30 = arith.maximumf %27, %29 : vector<128x128xf32>
    %31 = vector.extract_strided_slice %30 {offsets = [0, 0], sizes = [8, 128], strides = [1, 1]} : vector<128x128xf32> to vector<8x128xf32>
    %32 = vector.extract_strided_slice %30 {offsets = [8, 0], sizes = [8, 128], strides = [1, 1]} : vector<128x128xf32> to vector<8x128xf32>
    %33 = vector.extract_strided_slice %30 {offsets = [16, 0], sizes = [8, 128], strides = [1, 1]} : vector<128x128xf32> to vector<8x128xf32>
    %34 = vector.extract_strided_slice %30 {offsets = [24, 0], sizes = [8, 128], strides = [1, 1]} : vector<128x128xf32> to vector<8x128xf32>
    %35 = vector.extract_strided_slice %30 {offsets = [32, 0], sizes = [8, 128], strides = [1, 1]} : vector<128x128xf32> to vector<8x128xf32>
    %36 = vector.extract_strided_slice %30 {offsets = [40, 0], sizes = [8, 128], strides = [1, 1]} : vector<128x128xf32> to vector<8x128xf32>
    %37 = vector.extract_strided_slice %30 {offsets = [48, 0], sizes = [8, 128], strides = [1, 1]} : vector<128x128xf32> to vector<8x128xf32>
    %38 = vector.extract_strided_slice %30 {offsets = [56, 0], sizes = [8, 128], strides = [1, 1]} : vector<128x128xf32> to vector<8x128xf32>
    %39 = vector.extract_strided_slice %30 {offsets = [64, 0], sizes = [8, 128], strides = [1, 1]} : vector<128x128xf32> to vector<8x128xf32>
    %40 = vector.extract_strided_slice %30 {offsets = [72, 0], sizes = [8, 128], strides = [1, 1]} : vector<128x128xf32> to vector<8x128xf32>
    %41 = vector.extract_strided_slice %30 {offsets = [80, 0], sizes = [8, 128], strides = [1, 1]} : vector<128x128xf32> to vector<8x128xf32>
    %42 = vector.extract_strided_slice %30 {offsets = [88, 0], sizes = [8, 128], strides = [1, 1]} : vector<128x128xf32> to vector<8x128xf32>
    %43 = vector.extract_strided_slice %30 {offsets = [96, 0], sizes = [8, 128], strides = [1, 1]} : vector<128x128xf32> to vector<8x128xf32>
    %44 = vector.extract_strided_slice %30 {offsets = [104, 0], sizes = [8, 128], strides = [1, 1]} : vector<128x128xf32> to vector<8x128xf32>
    %45 = vector.extract_strided_slice %30 {offsets = [112, 0], sizes = [8, 128], strides = [1, 1]} : vector<128x128xf32> to vector<8x128xf32>
    %46 = vector.extract_strided_slice %30 {offsets = [120, 0], sizes = [8, 128], strides = [1, 1]} : vector<128x128xf32> to vector<8x128xf32>
    %47 = tpu.concatenate %31, %32, %33, %34, %35, %36, %37, %38, %39, %40, %41, %42, %43, %44, %45, %46 in 1 : vector<8x128xf32>, vector<8x128xf32>, vector<8x128xf32>, vector<8x128xf32>, vector<8x128xf32>, vector<8x128xf32>, vector<8x128xf32>, vector<8x128xf32>, vector<8x128xf32>, vector<8x128xf32>, vector<8x128xf32>, vector<8x128xf32>, vector<8x128xf32>, vector<8x128xf32>, vector<8x128xf32>, vector<8x128xf32> -> vector<8x2048xf32>
    %48 = arith.truncf %47 : vector<8x2048xf32> to vector<8x2048xbf16>
    %c0_14 = arith.constant 0 : index
    %c0_15 = arith.constant 0 : index
    %49 = vector.load %arg5[%c0_14, %c0_15] : memref<2048x128xbf16, #tpu.memory_space<vmem>>, vector<2048x128xbf16>
    %cst_16 = arith.constant dense<0.000000e+00> : vector<8x128xf32>
    %50 = tpu.matmul %48, %49, %cst_16 {dimension_numbers = #tpu.dot_dimension_numbers<[1], [0], [0], [1], [0, 0, 1, 1], [], []>} : vector<8x2048xbf16>, vector<2048x128xbf16>, vector<8x128xf32> -> vector<8x128xf32>
    %51 = arith.negf %50 : vector<8x128xf32>
    %52 = math.exp %51 : vector<8x128xf32>
    %cst_17 = arith.constant 1.000000e+00 : f32
    %53 = vector.broadcast %cst_17 : f32 to vector<8x128xf32>
    %54 = arith.addf %53, %52 : vector<8x128xf32>
    %55 = arith.divf %53, %54 : vector<8x128xf32>
    %c0_18 = arith.constant 0 : index
    %c0_19 = arith.constant 0 : index
    %56 = vector.load %arg6[%c0_18, %c0_19] : memref<8x128xf32, #tpu.memory_space<vmem>>, vector<8x128xf32>
    tpu.vector_store %arg6[%c0_18, %c0_19], %55 {strides = array<i32>} : memref<8x128xf32, #tpu.memory_space<vmem>>, vector<8x128xf32>,
    return
  }
  func.func @transform_0(%arg0: i32) -> (i32, i32) {
    %c0_i32 = arith.constant 0 : i32
    %c0_i32_0 = arith.constant 0 : i32
    %c0_i32_1 = arith.constant 0 : i32
    return %c0_i32, %c0_i32_0 : i32, i32
  }
  func.func @transform_1(%arg0: i32) -> (i32, i32) {
    %c0_i32 = arith.constant 0 : i32
    %c0_i32_0 = arith.constant 0 : i32
    %c0_i32_1 = arith.constant 0 : i32
    return %c0_i32, %c0_i32_0 : i32, i32
  }
  func.func @transform_2(%arg0: i32) -> (i32, i32) {
    %c0_i32 = arith.constant 0 : i32
    %c0_i32_0 = arith.constant 0 : i32
    %c0_i32_1 = arith.constant 0 : i32
    return %c0_i32, %c0_i32_0 : i32, i32
  }
  func.func @transform_3(%arg0: i32) -> (i32, i32) {
    %c0_i32 = arith.constant 0 : i32
    %c0_i32_0 = arith.constant 0 : i32
    %c0_i32_1 = arith.constant 0 : i32
    return %c0_i32, %c0_i32_0 : i32, i32
  }
  func.func @transform_4(%arg0: i32) -> (i32, i32) {
    %c0_i32 = arith.constant 0 : i32
    %c0_i32_0 = arith.constant 0 : i32
    %c0_i32_1 = arith.constant 0 : i32
    return %c0_i32, %c0_i32_0 : i32, i32
  }
  func.func @transform_5(%arg0: i32) -> (i32, i32) {
    %c0_i32 = arith.constant 0 : i32
    %c0_i32_0 = arith.constant 0 : i32
    %c0_i32_1 = arith.constant 0 : i32
    return %c0_i32, %c0_i32_0 : i32, i32
  }
}

</mosaic_0001>

<llo_original>
// kernel: netd_forward.5
$region0: #{netd_forward.5}
  #allocation0 [shape = 'u32[]', space=smem, size = 0x4, offset = 0x4, fixed_abs, tag = 'smem constant byte address 0x4 - core index']
  #allocation1 [shape = 'u32[72,128]{1,0:T(1,128)}', space=vmem, size = 0x9000, scoped, tag = 'internal scratch']
  %s0 = inlined_call_operand.vmem [shape: bf16[2048,128], index: 0, kind: input, shape index: {}]
  %s1 = inlined_call_operand.vmem [shape: bf16[128,128], index: 1, kind: input, shape index: {}]
  %s2 = inlined_call_operand.vmem [shape: bf16[2048,128], index: 2, kind: output, shape index: {0}]
  %s3 = inlined_call_operand.vmem [shape: f32[1,128], index: 3, kind: output, shape index: {1}]
  %s4 = inlined_call_operand.vmem [shape: f32[1,128], index: 4, kind: output, shape index: {2}]
  %5 = xla_tuple %s2, %s3, %s4
  %s6 = sld [smem:[#allocation0]]
  $region61: #{netd_forward.5} parent=0
    _
  %s8 = ssub.s32 1, %s6
  %s9 = scalar_select 0, %s8, %s6
  loop: start=0, step=1, limit=6
  $region2: #{netd_forward.5} parent=0 // loop_pre_header
    _
  $region3: #{netd_forward.5} parent=0 // loop_header
    %s11 = sphi 0, %s15
    %p12 = scmp.ge.s32.totalorder %s11, 6
    %s21 = sphi 0, %s23
    %s24 = sphi 0, %s21
    %s25 = sphi 0, %s24
    %s41 = sphi 0, %s25
    %s45 = sphi 0, %s45
    %s47 = sphi 0, %s45
    %s48 = sphi 0, %s47
    %s62 = sphi 0, %s48
    %s68 = sphi 0, %s70
    %s71 = sphi 0, %s68
    %s72 = sphi 0, %s71
    %s88 = sphi 0, %s72
    %s92 = sphi 0, %s92
    %s94 = sphi 0, %s92
    %s95 = sphi 0, %s94
    %s109 = sphi 0, %s95
    %s113 = sphi 0, %s113
    %s115 = sphi 0, %s113
    %s116 = sphi 0, %s115
    %s130 = sphi 0, %s116
  $region4: #{netd_forward.5} parent=0 // loop_header_branch
    %14 = sbr.rel (%p12) target = $region8
  $region5: #{netd_forward.5} parent=0 // loop_body
    %s16 = ssub.s32 %s11, 1
    %s17 = ssub.s32 %s11, 2
    %s18 = sadd.s32 %s11, 1
    %s19 = ssub.s32 %s11, %s18
    %p20 = scmp.eq.s32.totalorder %s19, 0
    %s22 = sadd.s32 %s21, 1
    %s23 = scalar_select %p20, %s21, %s22
    %p26 = pneg %p20
    %p27 = scmp.eq.s32.totalorder %s11, 3
    %p28 = por %p26, %p27
    %p29 = scmp.ne.s32.totalorder %s21, %s24
    %p30 = scmp.eq.s32.totalorder %s11, 0
    %p31 = por %p29, %p30
    %p32 = scmp.ne.s32.totalorder %s21, %s24
    %p33 = scmp.eq.s32.totalorder %s16, 3
    %p34 = por %p32, %p33
    %p35 = scmp.ne.s32.totalorder %s24, %s25
    %p36 = scmp.eq.s32.totalorder %s16, 0
    %p37 = por %p35, %p36
    %p38 = scmp.ne.s32.totalorder %s24, %s25
    %p39 = scmp.eq.s32.totalorder %s17, 3
    %p40 = por %p38, %p39
    %p42 = scmp.ne.s32.totalorder %s25, %s41
    %p43 = scmp.eq.s32.totalorder %s17, 0
    %p44 = por %p42, %p43
    %s46 = sadd.s32 %s45, 1
    %p49 = scmp.eq.s32.totalorder %s11, 3
    %p50 = scmp.ne.s32.totalorder %s45, %s47
    %p51 = scmp.eq.s32.totalorder %s11, 0
    %p52 = por %p50, %p51
    %p53 = scmp.ne.s32.totalorder %s45, %s47
    %p54 = scmp.eq.s32.totalorder %s16, 3
    %p55 = por %p53, %p54
    %p56 = scmp.ne.s32.totalorder %s47, %s48
    %p57 = scmp.eq.s32.totalorder %s16, 0
    %p58 = por %p56, %p57
    %p59 = scmp.ne.s32.totalorder %s47, %s48
    %p60 = scmp.eq.s32.totalorder %s17, 3
    %p61 = por %p59, %p60
    %p63 = scmp.ne.s32.totalorder %s48, %s62
    %p64 = scmp.eq.s32.totalorder %s17, 0
    %p65 = por %p63, %p64
    %s66 = ssub.s32 %s11, %s18
    %p67 = scmp.eq.s32.totalorder %s66, 0
    %s69 = sadd.s32 %s68, 1
    %s70 = scalar_select %p67, %s68, %s69
    %p73 = pneg %p67
    %p74 = scmp.eq.s32.totalorder %s11, 3
    %p75 = por %p73, %p74
    %p76 = scmp.ne.s32.totalorder %s68, %s71
    %p77 = scmp.eq.s32.totalorder %s11, 0
    %p78 = por %p76, %p77
    %p79 = scmp.ne.s32.totalorder %s68, %s71
    %p80 = scmp.eq.s32.totalorder %s16, 3
    %p81 = por %p79, %p80
    %p82 = scmp.ne.s32.totalorder %s71, %s72
    %p83 = scmp.eq.s32.totalorder %s16, 0
    %p84 = por %p82, %p83
    %p85 = scmp.ne.s32.totalorder %s71, %s72
    %p86 = scmp.eq.s32.totalorder %s17, 3
    %p87 = por %p85, %p86
    %p89 = scmp.ne.s32.totalorder %s72, %s88
    %p90 = scmp.eq.s32.totalorder %s17, 0
    %p91 = por %p89, %p90
    %s93 = sadd.s32 %s92, 1
    %p96 = scmp.eq.s32.totalorder %s11, 3
    %p97 = scmp.ne.s32.totalorder %s92, %s94
    %p98 = scmp.eq.s32.totalorder %s11, 0
    %p99 = por %p97, %p98
    %p100 = scmp.ne.s32.totalorder %s92, %s94
    %p101 = scmp.eq.s32.totalorder %s16, 3
    %p102 = por %p100, %p101
    %p103 = scmp.ne.s32.totalorder %s94, %s95
    %p104 = scmp.eq.s32.totalorder %s16, 0
    %p105 = por %p103, %p104
    %p106 = scmp.ne.s32.totalorder %s94, %s95
    %p107 = scmp.eq.s32.totalorder %s17, 3
    %p108 = por %p106, %p107
    %p110 = scmp.ne.s32.totalorder %s95, %s109
    %p111 = scmp.eq.s32.totalorder %s17, 0
    %p112 = por %p110, %p111
    %s114 = sadd.s32 %s113, 1
    %p117 = scmp.eq.s32.totalorder %s11, 3
    %p118 = scmp.ne.s32.totalorder %s113, %s115
    %p119 = scmp.eq.s32.totalorder %s11, 0
    %p120 = por %p118, %p119
    %p121 = scmp.ne.s32.totalorder %s113, %s115
    %p122 = scmp.eq.s32.totalorder %s16, 3
    %p123 = por %p121, %p122
    %p124 = scmp.ne.s32.totalorder %s115, %s116
    %p125 = scmp.eq.s32.totalorder %s16, 0
    %p126 = por %p124, %p125
    %p127 = scmp.ne.s32.totalorder %s115, %s116
    %p128 = scmp.eq.s32.totalorder %s17, 3
    %p129 = por %p127, %p128
    %p131 = scmp.ne.s32.totalorder %s116, %s130
    %p132 = scmp.eq.s32.totalorder %s17, 0
    %p133 = por %p131, %p132
    %p134 = scmp.le.s32.totalorder 1, %s11
    %p135 = scmp.lt.s32.totalorder %s11, 5
    %p136 = pnand %p134, %p135
    %p137 = pneg %p136
    // Predicated region
    $region9: #{netd_forward.5} parent=5 // pred_check
      _
    $region10: #{netd_forward.5} parent=5 // pred_check_branch
      %139 = sbr.rel (%p136) target = $region12
    $region11: #{netd_forward.5} parent=5 // pred_region
      %s140 = ssub.s32 %s11, 1
      // Predicated region
      $region13: #{netd_forward.5} parent=11 // pred_check
        %p141 = pneg %p58
      $region14: #{netd_forward.5} parent=11 // pred_check_branch
        %143 = sbr.rel (%p141) target = $region16
      $region15: #{netd_forward.5} parent=11 // pred_region
        _
      $region16: #{netd_forward.5} parent=11 // pred_fallthru
        _
    $region12: #{netd_forward.5} parent=5 // pred_fallthru
      _
    %p144 = scmp.lt.s32.totalorder %s11, 4
    // Predicated region
    $region17: #{netd_forward.5} parent=5 // pred_check
      %p145 = pneg %p144
    $region18: #{netd_forward.5} parent=5 // pred_check_branch
      %147 = sbr.rel (%p145) target = $region20
    $region19: #{netd_forward.5} parent=5 // pred_region
      // Predicated region
      $region21: #{netd_forward.5} parent=19 // pred_check
        %p148 = pneg %p31
      $region22: #{netd_forward.5} parent=19 // pred_check_branch
        %150 = sbr.rel (%p148) target = $region24
      $region23: #{netd_forward.5} parent=19 // pred_region
        %s151 = smul.u32 64, %s11
        %p152 = scmp.lt.s32.totalorder %s151, 255
        %s153 = scalar_select %p152, %s151, 255
        %s154 = smul.addr %s153, 4
        %s155 = scalar_lea.vmem %s0, %s154
        %s156 = smul.u32 64, %s11
      $region24: #{netd_forward.5} parent=19 // pred_fallthru
        _
    $region20: #{netd_forward.5} parent=5 // pred_fallthru
      _
    %p157 = scmp.le.s32.totalorder 1, %s11
    %p158 = scmp.lt.s32.totalorder %s11, 5
    %p159 = pnand %p157, %p158
    %p160 = pneg %p159
    // Predicated region
    $region25: #{netd_forward.5} parent=5 // pred_check
      _
    $region26: #{netd_forward.5} parent=5 // pred_check_branch
      %162 = sbr.rel (%p159) target = $region28
    $region27: #{netd_forward.5} parent=5 // pred_region
      %s163 = ssub.s32 %s11, 1
      %s164 = smul.u32 64, %s16
      %p165 = scmp.lt.s32.totalorder %s164, 255
      %s166 = scalar_select %p165, %s164, 255
      %s167 = smul.addr %s166, 4
      %s168 = scalar_lea.vmem %s0, %s167
      %p169 = pneg %p37
      %p170 = pneg %p34
      %p171 = pneg %p58
      %p172 = pneg %p55
      %p173 = pneg %p84
      %p174 = pneg %p81
      %s175 = smul.u32 64, %s16
      %p176 = scmp.lt.s32.totalorder %s175, 255
      %s177 = scalar_select %p176, %s175, 255
      %s178 = smul.addr %s177, 4
      %s179 = scalar_lea.vmem %s2, %s178
      %p180 = pneg %p105
      %p181 = pneg %p102
      %p182 = pneg %p126
      %p183 = pneg %p123
      %s184 = smul.u32 64, %s16
      %p185 = scmp.lt.s32.totalorder %s184, 255
      %s186 = scalar_select %p185, %s184, 255
      %s187 = smul.addr %s186, 4
      %s188 = scalar_lea.vmem %s0, %s187
      %s189 = smul.u32 64, %s16
      %s190 = smul.u32 64, %s16
      %p191 = scmp.lt.s32.totalorder %s190, 255
      %s192 = scalar_select %p191, %s190, 255
      %s193 = smul.addr %s192, 4
      %s194 = scalar_lea.vmem %s2, %s193
      %s195 = smul.u32 64, %s16
      %p196 = scmp.eq.s32.totalorder %s16, 0
      // Predicated region
      $region29: #{netd_forward.5} parent=27 // pred_check
        %p197 = pneg %p196
      $region30: #{netd_forward.5} parent=27 // pred_check_branch
        %199 = sbr.rel (%p197) target = $region32
      $region31: #{netd_forward.5} parent=27 // pred_region
        %200 = vst [vmem:[%s3] sm:$0x1] 0.0
        %201 = vst [vmem:[%s4] sm:$0x1] 0.0
      $region32: #{netd_forward.5} parent=27 // pred_fallthru
        _
      %v202 = vld [vmem:[%s188] sm:$0xf]
      %v203 = vld [vmem:[%s188 + $0x4] sm:$0xf]
      %v204 = vld [vmem:[%s188 + $0x8] sm:$0xf]
      %v205 = vld [vmem:[%s188 + $0xc] sm:$0xf]
      %v206 = vld [vmem:[%s188 + $0x10] sm:$0xf]
      %v207 = vld [vmem:[%s188 + $0x14] sm:$0xf]
      %v208 = vld [vmem:[%s188 + $0x18] sm:$0xf]
      %v209 = vld [vmem:[%s188 + $0x1c] sm:$0xf]
      %v210 = vld [vmem:[%s188 + $0x20] sm:$0xf]
      %v211 = vld [vmem:[%s188 + $0x24] sm:$0xf]
      %v212 = vld [vmem:[%s188 + $0x28] sm:$0xf]
      %v213 = vld [vmem:[%s188 + $0x2c] sm:$0xf]
      %v214 = vld [vmem:[%s188 + $0x30] sm:$0xf]
      %v215 = vld [vmem:[%s188 + $0x34] sm:$0xf]
      %v216 = vld [vmem:[%s188 + $0x38] sm:$0xf]
      %v217 = vld [vmem:[%s188 + $0x3c] sm:$0xf]
      %v218 = vld [vmem:[%s188 + $0x40] sm:$0xf]
      %v219 = vld [vmem:[%s188 + $0x44] sm:$0xf]
      %v220 = vld [vmem:[%s188 + $0x48] sm:$0xf]
      %v221 = vld [vmem:[%s188 + $0x4c] sm:$0xf]
      %v222 = vld [vmem:[%s188 + $0x50] sm:$0xf]
      %v223 = vld [vmem:[%s188 + $0x54] sm:$0xf]
      %v224 = vld [vmem:[%s188 + $0x58] sm:$0xf]
      %v225 = vld [vmem:[%s188 + $0x5c] sm:$0xf]
      %v226 = vld [vmem:[%s188 + $0x60] sm:$0xf]
      %v227 = vld [vmem:[%s188 + $0x64] sm:$0xf]
      %v228 = vld [vmem:[%s188 + $0x68] sm:$0xf]
      %v229 = vld [vmem:[%s188 + $0x6c] sm:$0xf]
      %v230 = vld [vmem:[%s188 + $0x70] sm:$0xf]
      %v231 = vld [vmem:[%s188 + $0x74] sm:$0xf]
      %v232 = vld [vmem:[%s188 + $0x78] sm:$0xf]
      %v233 = vld [vmem:[%s188 + $0x7c] sm:$0xf]
      %v234 = vld [vmem:[%s188 + $0x80] sm:$0xf]
      %v235 = vld [vmem:[%s188 + $0x84] sm:$0xf]
      %v236 = vld [vmem:[%s188 + $0x88] sm:$0xf]
      %v237 = vld [vmem:[%s188 + $0x8c] sm:$0xf]
      %v238 = vld [vmem:[%s188 + $0x90] sm:$0xf]
      %v239 = vld [vmem:[%s188 + $0x94] sm:$0xf]
      %v240 = vld [vmem:[%s188 + $0x98] sm:$0xf]
      %v241 = vld [vmem:[%s188 + $0x9c] sm:$0xf]
      %v242 = vld [vmem:[%s188 + $0xa0] sm:$0xf]
      %v243 = vld [vmem:[%s188 + $0xa4] sm:$0xf]
      %v244 = vld [vmem:[%s188 + $0xa8] sm:$0xf]
      %v245 = vld [vmem:[%s188 + $0xac] sm:$0xf]
      %v246 = vld [vmem:[%s188 + $0xb0] sm:$0xf]
      %v247 = vld [vmem:[%s188 + $0xb4] sm:$0xf]
      %v248 = vld [vmem:[%s188 + $0xb8] sm:$0xf]
      %v249 = vld [vmem:[%s188 + $0xbc] sm:$0xf]
      %v250 = vld [vmem:[%s188 + $0xc0] sm:$0xf]
      %v251 = vld [vmem:[%s188 + $0xc4] sm:$0xf]
      %v252 = vld [vmem:[%s188 + $0xc8] sm:$0xf]
      %v253 = vld [vmem:[%s188 + $0xcc] sm:$0xf]
      %v254 = vld [vmem:[%s188 + $0xd0] sm:$0xf]
      %v255 = vld [vmem:[%s188 + $0xd4] sm:$0xf]
      %v256 = vld [vmem:[%s188 + $0xd8] sm:$0xf]
      %v257 = vld [vmem:[%s188 + $0xdc] sm:$0xf]
      %v258 = vld [vmem:[%s188 + $0xe0] sm:$0xf]
      %v259 = vld [vmem:[%s188 + $0xe4] sm:$0xf]
      %v260 = vld [vmem:[%s188 + $0xe8] sm:$0xf]
      %v261 = vld [vmem:[%s188 + $0xec] sm:$0xf]
      %v262 = vld [vmem:[%s188 + $0xf0] sm:$0xf]
      %v263 = vld [vmem:[%s188 + $0xf4] sm:$0xf]
      %v264 = vld [vmem:[%s188 + $0xf8] sm:$0xf]
      %v265 = vld [vmem:[%s188 + $0xfc] sm:$0xf]
      %v266 = vld [vmem:[%s1] sm:$0xf]
      %v267 = vld [vmem:[%s1 + $0x4] sm:$0xf]
      %v268 = vld [vmem:[%s1 + $0x8] sm:$0xf]
      %v269 = vld [vmem:[%s1 + $0xc] sm:$0xf]
      %v270 = vld [vmem:[%s1 + $0x10] sm:$0xf]
      %v271 = vld [vmem:[%s1 + $0x14] sm:$0xf]
      %v272 = vld [vmem:[%s1 + $0x18] sm:$0xf]
      %v273 = vld [vmem:[%s1 + $0x1c] sm:$0xf]
      %v274 = vld [vmem:[%s1 + $0x20] sm:$0xf]
      %v275 = vld [vmem:[%s1 + $0x24] sm:$0xf]
      %v276 = vld [vmem:[%s1 + $0x28] sm:$0xf]
      %v277 = vld [vmem:[%s1 + $0x2c] sm:$0xf]
      %v278 = vld [vmem:[%s1 + $0x30] sm:$0xf]
      %v279 = vld [vmem:[%s1 + $0x34] sm:$0xf]
      %v280 = vld [vmem:[%s1 + $0x38] sm:$0xf]
      %v281 = vld [vmem:[%s1 + $0x3c] sm:$0xf]
      %v346 = vunpack.c.l.b16 %v202
      %v347 = vunpack.c.l.b16 %v203
      %v348 = vunpack.c.l.b16 %v204
      %v349 = vunpack.c.l.b16 %v205
      %v350 = vunpack.c.l.b16 %v206
      %v351 = vunpack.c.l.b16 %v207
      %v352 = vunpack.c.l.b16 %v208
      %v353 = vunpack.c.l.b16 %v209
      %v354 = vunpack.c.l.b16 %v210
      %v355 = vunpack.c.l.b16 %v211
      %v356 = vunpack.c.l.b16 %v212
      %v357 = vunpack.c.l.b16 %v213
      %v358 = vunpack.c.l.b16 %v214
      %v359 = vunpack.c.l.b16 %v215
      %v360 = vunpack.c.l.b16 %v216
      %v361 = vunpack.c.l.b16 %v217
      %v362 = vunpack.c.l.b16 %v218
      %v363 = vunpack.c.l.b16 %v219
      %v364 = vunpack.c.l.b16 %v220
      %v365 = vunpack.c.l.b16 %v221
      %v366 = vunpack.c.l.b16 %v222
      %v367 = vunpack.c.l.b16 %v223
      %v368 = vunpack.c.l.b16 %v224
      %v369 = vunpack.c.l.b16 %v225
      %v370 = vunpack.c.l.b16 %v226
      %v371 = vunpack.c.l.b16 %v227
      %v372 = vunpack.c.l.b16 %v228
      %v373 = vunpack.c.l.b16 %v229
      %v374 = vunpack.c.l.b16 %v230
      %v375 = vunpack.c.l.b16 %v231
      %v376 = vunpack.c.l.b16 %v232
      %v377 = vunpack.c.l.b16 %v233
      %v378 = vunpack.c.l.b16 %v234
      %v379 = vunpack.c.l.b16 %v235
      %v380 = vunpack.c.l.b16 %v236
      %v381 = vunpack.c.l.b16 %v237
      %v382 = vunpack.c.l.b16 %v238
      %v383 = vunpack.c.l.b16 %v239
      %v384 = vunpack.c.l.b16 %v240
      %v385 = vunpack.c.l.b16 %v241
      %v386 = vunpack.c.l.b16 %v242
      %v387 = vunpack.c.l.b16 %v243
      %v388 = vunpack.c.l.b16 %v244
      %v389 = vunpack.c.l.b16 %v245
      %v390 = vunpack.c.l.b16 %v246
      %v391 = vunpack.c.l.b16 %v247
      %v392 = vunpack.c.l.b16 %v248
      %v393 = vunpack.c.l.b16 %v249
      %v394 = vunpack.c.l.b16 %v250
      %v395 = vunpack.c.l.b16 %v251
      %v396 = vunpack.c.l.b16 %v252
      %v397 = vunpack.c.l.b16 %v253
      %v398 = vunpack.c.l.b16 %v254
      %v399 = vunpack.c.l.b16 %v255
      %v400 = vunpack.c.l.b16 %v256
      %v401 = vunpack.c.l.b16 %v257
      %v402 = vunpack.c.l.b16 %v258
      %v403 = vunpack.c.l.b16 %v259
      %v404 = vunpack.c.l.b16 %v260
      %v405 = vunpack.c.l.b16 %v261
      %v406 = vunpack.c.l.b16 %v262
      %v407 = vunpack.c.l.b16 %v263
      %v408 = vunpack.c.l.b16 %v264
      %v409 = vunpack.c.l.b16 %v265
      %v410 = vpack.c.b16 %v347, %v346
      %v411 = vpack.c.b16 %v349, %v348
      %v412 = vpack.c.b16 %v351, %v350
      %v413 = vpack.c.b16 %v353, %v352
      %v414 = vpack.c.b16 %v355, %v354
      %v415 = vpack.c.b16 %v357, %v356
      %v416 = vpack.c.b16 %v359, %v358
      %v417 = vpack.c.b16 %v361, %v360
      %v418 = vpack.c.b16 %v363, %v362
      %v419 = vpack.c.b16 %v365, %v364
      %v420 = vpack.c.b16 %v367, %v366
      %v421 = vpack.c.b16 %v369, %v368
      %v422 = vpack.c.b16 %v371, %v370
      %v423 = vpack.c.b16 %v373, %v372
      %v424 = vpack.c.b16 %v375, %v374
      %v425 = vpack.c.b16 %v377, %v376
      %v426 = vpack.c.b16 %v379, %v378
      %v427 = vpack.c.b16 %v381, %v380
      %v428 = vpack.c.b16 %v383, %v382
      %v429 = vpack.c.b16 %v385, %v384
      %v430 = vpack.c.b16 %v387, %v386
      %v431 = vpack.c.b16 %v389, %v388
      %v432 = vpack.c.b16 %v391, %v390
      %v433 = vpack.c.b16 %v393, %v392
      %v434 = vpack.c.b16 %v395, %v394
      %v435 = vpack.c.b16 %v397, %v396
      %v436 = vpack.c.b16 %v399, %v398
      %v437 = vpack.c.b16 %v401, %v400
      %v438 = vpack.c.b16 %v403, %v402
      %v439 = vpack.c.b16 %v405, %v404
      %v440 = vpack.c.b16 %v407, %v406
      %v441 = vpack.c.b16 %v409, %v408
      %v490 = vunpack.c.l.b16 %v266
      %v491 = vunpack.c.l.b16 %v267
      %v492 = vunpack.c.l.b16 %v268
      %v493 = vunpack.c.l.b16 %v269
      %v494 = vunpack.c.l.b16 %v270
      %v495 = vunpack.c.l.b16 %v271
      %v496 = vunpack.c.l.b16 %v272
      %v497 = vunpack.c.l.b16 %v273
      %v498 = vunpack.c.l.b16 %v274
      %v499 = vunpack.c.l.b16 %v275
      %v500 = vunpack.c.l.b16 %v276
      %v501 = vunpack.c.l.b16 %v277
      %v502 = vunpack.c.l.b16 %v278
      %v503 = vunpack.c.l.b16 %v279
      %v504 = vunpack.c.l.b16 %v280
      %v505 = vunpack.c.l.b16 %v281
      %v506 = vpack.c.b16 %v491, %v490
      %v507 = vpack.c.b16 %v493, %v492
      %v508 = vpack.c.b16 %v495, %v494
      %v509 = vpack.c.b16 %v497, %v496
      %v510 = vpack.c.b16 %v499, %v498
      %v511 = vpack.c.b16 %v501, %v500
      %v512 = vpack.c.b16 %v503, %v502
      %v513 = vpack.c.b16 %v505, %v504
      %522 = vmatpush.bf16.msra.mxu0 %v513
      %523 = vmatpush.bf16.msra.mxu0 %v512
      %524 = vmatpush.bf16.msra.mxu0 %v511
      %525 = vmatpush.bf16.msra.mxu0 %v510
      %526 = vmatpush.bf16.msra.mxu0 %v509
      %527 = vmatpush.bf16.msra.mxu0 %v508
      %528 = vmatpush.bf16.msra.mxu0 %v507
      %529 = vmatpush.bf16.msra.mxu0 %v506
      %530 = vmatmul.bf16.gmra.mxu0 %v410
      %v531 = vpop.f32.mrf.mxu0
      %v532 = vadd.f32 0.0, %v531
      %v533 = vpop.f32.mrf.mxu0
      %v534 = vadd.f32 0.0, %v533
      %535 = vmatmul.bf16.gmra.mxu0 %v411
      %v536 = vpop.f32.mrf.mxu0
      %v537 = vadd.f32 0.0, %v536
      %v538 = vpop.f32.mrf.mxu0
      %v539 = vadd.f32 0.0, %v538
      %540 = vmatmul.bf16.gmra.mxu0 %v412
      %v541 = vpop.f32.mrf.mxu0
      %v542 = vadd.f32 0.0, %v541
      %v543 = vpop.f32.mrf.mxu0
      %v544 = vadd.f32 0.0, %v543
      %545 = vmatmul.bf16.gmra.mxu0 %v413
      %v546 = vpop.f32.mrf.mxu0
      %v547 = vadd.f32 0.0, %v546
      %v548 = vpop.f32.mrf.mxu0
      %v549 = vadd.f32 0.0, %v548
      %550 = vmatmul.bf16.gmra.mxu0 %v414
      %v551 = vpop.f32.mrf.mxu0
      %v552 = vadd.f32 0.0, %v551
      %v553 = vpop.f32.mrf.mxu0
      %v554 = vadd.f32 0.0, %v553
      %555 = vmatmul.bf16.gmra.mxu0 %v415
      %v556 = vpop.f32.mrf.mxu0
      %v557 = vadd.f32 0.0, %v556
      %v558 = vpop.f32.mrf.mxu0
      %v559 = vadd.f32 0.0, %v558
      %560 = vmatmul.bf16.gmra.mxu0 %v416
      %v561 = vpop.f32.mrf.mxu0
      %v562 = vadd.f32 0.0, %v561
      %v563 = vpop.f32.mrf.mxu0
      %v564 = vadd.f32 0.0, %v563
      %565 = vmatmul.bf16.gmra.mxu0 %v417
      %v566 = vpop.f32.mrf.mxu0
      %v567 = vadd.f32 0.0, %v566
      %v568 = vpop.f32.mrf.mxu0
      %v569 = vadd.f32 0.0, %v568
      %570 = vmatmul.bf16.gmra.mxu0 %v418
      %v571 = vpop.f32.mrf.mxu0
      %v572 = vadd.f32 0.0, %v571
      %v573 = vpop.f32.mrf.mxu0
      %v574 = vadd.f32 0.0, %v573
      %575 = vmatmul.bf16.gmra.mxu0 %v419
      %v576 = vpop.f32.mrf.mxu0
      %v577 = vadd.f32 0.0, %v576
      %v578 = vpop.f32.mrf.mxu0
      %v579 = vadd.f32 0.0, %v578
      %580 = vmatmul.bf16.gmra.mxu0 %v420
      %v581 = vpop.f32.mrf.mxu0
      %v582 = vadd.f32 0.0, %v581
      %v583 = vpop.f32.mrf.mxu0
      %v584 = vadd.f32 0.0, %v583
      %585 = vmatmul.bf16.gmra.mxu0 %v421
      %v586 = vpop.f32.mrf.mxu0
      %v587 = vadd.f32 0.0, %v586
      %v588 = vpop.f32.mrf.mxu0
      %v589 = vadd.f32 0.0, %v588
      %590 = vmatmul.bf16.gmra.mxu0 %v422
      %v591 = vpop.f32.mrf.mxu0
      %v592 = vadd.f32 0.0, %v591
      %v593 = vpop.f32.mrf.mxu0
      %v594 = vadd.f32 0.0, %v593
      %595 = vmatmul.bf16.gmra.mxu0 %v423
      %v596 = vpop.f32.mrf.mxu0
      %v597 = vadd.f32 0.0, %v596
      %v598 = vpop.f32.mrf.mxu0
      %v599 = vadd.f32 0.0, %v598
      %600 = vmatmul.bf16.gmra.mxu0 %v424
      %v601 = vpop.f32.mrf.mxu0
      %v602 = vadd.f32 0.0, %v601
      %v603 = vpop.f32.mrf.mxu0
      %v604 = vadd.f32 0.0, %v603
      %605 = vmatmul.bf16.gmra.mxu0 %v425
      %v606 = vpop.f32.mrf.mxu0
      %v607 = vadd.f32 0.0, %v606
      %v608 = vpop.f32.mrf.mxu0
      %v609 = vadd.f32 0.0, %v608
      %610 = vmatmul.bf16.gmra.mxu0 %v426
      %v611 = vpop.f32.mrf.mxu0
      %v612 = vadd.f32 0.0, %v611
      %v613 = vpop.f32.mrf.mxu0
      %v614 = vadd.f32 0.0, %v613
      %615 = vmatmul.bf16.gmra.mxu0 %v427
      %v616 = vpop.f32.mrf.mxu0
      %v617 = vadd.f32 0.0, %v616
      %v618 = vpop.f32.mrf.mxu0
      %v619 = vadd.f32 0.0, %v618
      %620 = vmatmul.bf16.gmra.mxu0 %v428
      %v621 = vpop.f32.mrf.mxu0
      %v622 = vadd.f32 0.0, %v621
      %v623 = vpop.f32.mrf.mxu0
      %v624 = vadd.f32 0.0, %v623
      %625 = vmatmul.bf16.gmra.mxu0 %v429
      %v626 = vpop.f32.mrf.mxu0
      %v627 = vadd.f32 0.0, %v626
      %v628 = vpop.f32.mrf.mxu0
      %v629 = vadd.f32 0.0, %v628
      %630 = vmatmul.bf16.gmra.mxu0 %v430
      %v631 = vpop.f32.mrf.mxu0
      %v632 = vadd.f32 0.0, %v631
      %v633 = vpop.f32.mrf.mxu0
      %v634 = vadd.f32 0.0, %v633
      %635 = vmatmul.bf16.gmra.mxu0 %v431
      %v636 = vpop.f32.mrf.mxu0
      %v637 = vadd.f32 0.0, %v636
      %v638 = vpop.f32.mrf.mxu0
      %v639 = vadd.f32 0.0, %v638
      %640 = vmatmul.bf16.gmra.mxu0 %v432
      %v641 = vpop.f32.mrf.mxu0
      %v642 = vadd.f32 0.0, %v641
      %v643 = vpop.f32.mrf.mxu0
      %v644 = vadd.f32 0.0, %v643
      %645 = vmatmul.bf16.gmra.mxu0 %v433
      %v646 = vpop.f32.mrf.mxu0
      %v647 = vadd.f32 0.0, %v646
      %v648 = vpop.f32.mrf.mxu0
      %v649 = vadd.f32 0.0, %v648
      %650 = vmatmul.bf16.gmra.mxu0 %v434
      %v651 = vpop.f32.mrf.mxu0
      %v652 = vadd.f32 0.0, %v651
      %v653 = vpop.f32.mrf.mxu0
      %v654 = vadd.f32 0.0, %v653
      %655 = vmatmul.bf16.gmra.mxu0 %v435
      %v656 = vpop.f32.mrf.mxu0
      %v657 = vadd.f32 0.0, %v656
      %v658 = vpop.f32.mrf.mxu0
      %v659 = vadd.f32 0.0, %v658
      %660 = vmatmul.bf16.gmra.mxu0 %v436
      %v661 = vpop.f32.mrf.mxu0
      %v662 = vadd.f32 0.0, %v661
      %v663 = vpop.f32.mrf.mxu0
      %v664 = vadd.f32 0.0, %v663
      %665 = vmatmul.bf16.gmra.mxu0 %v437
      %v666 = vpop.f32.mrf.mxu0
      %v667 = vadd.f32 0.0, %v666
      %v668 = vpop.f32.mrf.mxu0
      %v669 = vadd.f32 0.0, %v668
      %670 = vmatmul.bf16.gmra.mxu0 %v438
      %v671 = vpop.f32.mrf.mxu0
      %v672 = vadd.f32 0.0, %v671
      %v673 = vpop.f32.mrf.mxu0
      %v674 = vadd.f32 0.0, %v673
      %675 = vmatmul.bf16.gmra.mxu0 %v439
      %v676 = vpop.f32.mrf.mxu0
      %v677 = vadd.f32 0.0, %v676
      %v678 = vpop.f32.mrf.mxu0
      %v679 = vadd.f32 0.0, %v678
      %680 = vmatmul.bf16.gmra.mxu0 %v440
      %v681 = vpop.f32.mrf.mxu0
      %v682 = vadd.f32 0.0, %v681
      %v683 = vpop.f32.mrf.mxu0
      %v684 = vadd.f32 0.0, %v683
      %685 = vmatmul.bf16.gmra.mxu0 %v441
      %v686 = vpop.f32.mrf.mxu0
      %v687 = vadd.f32 0.0, %v686
      %v688 = vpop.f32.mrf.mxu0
      %v689 = vadd.f32 0.0, %v688
      %690 = vdwg.mxu0
      %v691 = vld [vmem:[%s3] sm:$0x1]
      %v692 = vadd.f32 %v532, %v534
      %v693 = vadd.f32 %v692, %v537
      %v694 = vadd.f32 %v693, %v539
      %v695 = vadd.f32 %v694, %v542
      %v696 = vadd.f32 %v695, %v544
      %v697 = vadd.f32 %v696, %v547
      %v698 = vadd.f32 %v697, %v549
      %v699 = vadd.f32 %v698, %v552
      %v700 = vadd.f32 %v699, %v554
      %v701 = vadd.f32 %v700, %v557
      %v702 = vadd.f32 %v701, %v559
      %v703 = vadd.f32 %v702, %v562
      %v704 = vadd.f32 %v703, %v564
      %v705 = vadd.f32 %v704, %v567
      %v706 = vadd.f32 %v705, %v569
      %v707 = vadd.f32 %v706, %v572
      %v708 = vadd.f32 %v707, %v574
      %v709 = vadd.f32 %v708, %v577
      %v710 = vadd.f32 %v709, %v579
      %v711 = vadd.f32 %v710, %v582
      %v712 = vadd.f32 %v711, %v584
      %v713 = vadd.f32 %v712, %v587
      %v714 = vadd.f32 %v713, %v589
      %v715 = vadd.f32 %v714, %v592
      %v716 = vadd.f32 %v715, %v594
      %v717 = vadd.f32 %v716, %v597
      %v718 = vadd.f32 %v717, %v599
      %v719 = vadd.f32 %v718, %v602
      %v720 = vadd.f32 %v719, %v604
      %v721 = vadd.f32 %v720, %v607
      %v722 = vadd.f32 %v721, %v609
      %v723 = vadd.f32 %v722, %v612
      %v724 = vadd.f32 %v723, %v614
      %v725 = vadd.f32 %v724, %v617
      %v726 = vadd.f32 %v725, %v619
      %v727 = vadd.f32 %v726, %v622
      %v728 = vadd.f32 %v727, %v624
      %v729 = vadd.f32 %v728, %v627
      %v730 = vadd.f32 %v729, %v629
      %v731 = vadd.f32 %v730, %v632
      %v732 = vadd.f32 %v731, %v634
      %v733 = vadd.f32 %v732, %v637
      %v734 = vadd.f32 %v733, %v639
      %v735 = vadd.f32 %v734, %v642
      %v736 = vadd.f32 %v735, %v644
      %v737 = vadd.f32 %v736, %v647
      %v738 = vadd.f32 %v737, %v649
      %v739 = vadd.f32 %v738, %v652
      %v740 = vadd.f32 %v739, %v654
      %v741 = vadd.f32 %v740, %v657
      %v742 = vadd.f32 %v741, %v659
      %v743 = vadd.f32 %v742, %v662
      %v744 = vadd.f32 %v743, %v664
      %v745 = vadd.f32 %v744, %v667
      %v746 = vadd.f32 %v745, %v669
      %v747 = vadd.f32 %v746, %v672
      %v748 = vadd.f32 %v747, %v674
      %v749 = vadd.f32 %v748, %v677
      %v750 = vadd.f32 %v749, %v679
      %v751 = vadd.f32 %v750, %v682
      %v752 = vadd.f32 %v751, %v684
      %v753 = vadd.f32 %v752, %v687
      %v754 = vadd.f32 %v753, %v689
      %v755 = vrot.slane %v754, 4
      %v756 = vadd.f32 %v754, %v755
      %v757 = vrot.slane %v756, 2
      %v758 = vadd.f32 %v756, %v757
      %v759 = vrot.slane %v758, 1
      %v760 = vadd.f32 %v758, %v759
      %v761 = vadd.f32 %v691, %v760
      %762 = vst [vmem:[%s3] sm:$0x1] %v761
      %v763 = vld [vmem:[%s4] sm:$0x1]
      %v764 = vmul.f32 %v532, %v532
      %v765 = vmul.f32 %v534, %v534
      %v766 = vmul.f32 %v537, %v537
      %v767 = vmul.f32 %v539, %v539
      %v768 = vmul.f32 %v542, %v542
      %v769 = vmul.f32 %v544, %v544
      %v770 = vmul.f32 %v547, %v547
      %v771 = vmul.f32 %v549, %v549
      %v772 = vmul.f32 %v552, %v552
      %v773 = vmul.f32 %v554, %v554
      %v774 = vmul.f32 %v557, %v557
      %v775 = vmul.f32 %v559, %v559
      %v776 = vmul.f32 %v562, %v562
      %v777 = vmul.f32 %v564, %v564
      %v778 = vmul.f32 %v567, %v567
      %v779 = vmul.f32 %v569, %v569
      %v780 = vmul.f32 %v572, %v572
      %v781 = vmul.f32 %v574, %v574
      %v782 = vmul.f32 %v577, %v577
      %v783 = vmul.f32 %v579, %v579
      %v784 = vmul.f32 %v582, %v582
      %v785 = vmul.f32 %v584, %v584
      %v786 = vmul.f32 %v587, %v587
      %v787 = vmul.f32 %v589, %v589
      %v788 = vmul.f32 %v592, %v592
      %v789 = vmul.f32 %v594, %v594
      %v790 = vmul.f32 %v597, %v597
      %v791 = vmul.f32 %v599, %v599
      %v792 = vmul.f32 %v602, %v602
      %v793 = vmul.f32 %v604, %v604
      %v794 = vmul.f32 %v607, %v607
      %v795 = vmul.f32 %v609, %v609
      %v796 = vmul.f32 %v612, %v612
      %v797 = vmul.f32 %v614, %v614
      %v798 = vmul.f32 %v617, %v617
      %v799 = vmul.f32 %v619, %v619
      %v800 = vmul.f32 %v622, %v622
      %v801 = vmul.f32 %v624, %v624
      %v802 = vmul.f32 %v627, %v627
      %v803 = vmul.f32 %v629, %v629
      %v804 = vmul.f32 %v632, %v632
      %v805 = vmul.f32 %v634, %v634
      %v806 = vmul.f32 %v637, %v637
      %v807 = vmul.f32 %v639, %v639
      %v808 = vmul.f32 %v642, %v642
      %v809 = vmul.f32 %v644, %v644
      %v810 = vmul.f32 %v647, %v647
      %v811 = vmul.f32 %v649, %v649
      %v812 = vmul.f32 %v652, %v652
      %v813 = vmul.f32 %v654, %v654
      %v814 = vmul.f32 %v657, %v657
      %v815 = vmul.f32 %v659, %v659
      %v816 = vmul.f32 %v662, %v662
      %v817 = vmul.f32 %v664, %v664
      %v818 = vmul.f32 %v667, %v667
      %v819 = vmul.f32 %v669, %v669
      %v820 = vmul.f32 %v672, %v672
      %v821 = vmul.f32 %v674, %v674
      %v822 = vmul.f32 %v677, %v677
      %v823 = vmul.f32 %v679, %v679
      %v824 = vmul.f32 %v682, %v682
      %v825 = vmul.f32 %v684, %v684
      %v826 = vmul.f32 %v687, %v687
      %v827 = vmul.f32 %v689, %v689
      %v828 = vadd.f32 %v764, %v765
      %v829 = vadd.f32 %v828, %v766
      %v830 = vadd.f32 %v829, %v767
      %v831 = vadd.f32 %v830, %v768
      %v832 = vadd.f32 %v831, %v769
      %v833 = vadd.f32 %v832, %v770
      %v834 = vadd.f32 %v833, %v771
      %v835 = vadd.f32 %v834, %v772
      %v836 = vadd.f32 %v835, %v773
      %v837 = vadd.f32 %v836, %v774
      %v838 = vadd.f32 %v837, %v775
      %v839 = vadd.f32 %v838, %v776
      %v840 = vadd.f32 %v839, %v777
      %v841 = vadd.f32 %v840, %v778
      %v842 = vadd.f32 %v841, %v779
      %v843 = vadd.f32 %v842, %v780
      %v844 = vadd.f32 %v843, %v781
      %v845 = vadd.f32 %v844, %v782
      %v846 = vadd.f32 %v845, %v783
      %v847 = vadd.f32 %v846, %v784
      %v848 = vadd.f32 %v847, %v785
      %v849 = vadd.f32 %v848, %v786
      %v850 = vadd.f32 %v849, %v787
      %v851 = vadd.f32 %v850, %v788
      %v852 = vadd.f32 %v851, %v789
      %v853 = vadd.f32 %v852, %v790
      %v854 = vadd.f32 %v853, %v791
      %v855 = vadd.f32 %v854, %v792
      %v856 = vadd.f32 %v855, %v793
      %v857 = vadd.f32 %v856, %v794
      %v858 = vadd.f32 %v857, %v795
      %v859 = vadd.f32 %v858, %v796
      %v860 = vadd.f32 %v859, %v797
      %v861 = vadd.f32 %v860, %v798
      %v862 = vadd.f32 %v861, %v799
      %v863 = vadd.f32 %v862, %v800
      %v864 = vadd.f32 %v863, %v801
      %v865 = vadd.f32 %v864, %v802
      %v866 = vadd.f32 %v865, %v803
      %v867 = vadd.f32 %v866, %v804
      %v868 = vadd.f32 %v867, %v805
      %v869 = vadd.f32 %v868, %v806
      %v870 = vadd.f32 %v869, %v807
      %v871 = vadd.f32 %v870, %v808
      %v872 = vadd.f32 %v871, %v809
      %v873 = vadd.f32 %v872, %v810
      %v874 = vadd.f32 %v873, %v811
      %v875 = vadd.f32 %v874, %v812
      %v876 = vadd.f32 %v875, %v813
      %v877 = vadd.f32 %v876, %v814
      %v878 = vadd.f32 %v877, %v815
      %v879 = vadd.f32 %v878, %v816
      %v880 = vadd.f32 %v879, %v817
      %v881 = vadd.f32 %v880, %v818
      %v882 = vadd.f32 %v881, %v819
      %v883 = vadd.f32 %v882, %v820
      %v884 = vadd.f32 %v883, %v821
      %v885 = vadd.f32 %v884, %v822
      %v886 = vadd.f32 %v885, %v823
      %v887 = vadd.f32 %v886, %v824
      %v888 = vadd.f32 %v887, %v825
      %v889 = vadd.f32 %v888, %v826
      %v890 = vadd.f32 %v889, %v827
      %v891 = vrot.slane %v890, 4
      %v892 = vadd.f32 %v890, %v891
      %v893 = vrot.slane %v892, 2
      %v894 = vadd.f32 %v892, %v893
      %v895 = vrot.slane %v894, 1
      %v896 = vadd.f32 %v894, %v895
      %v897 = vadd.f32 %v763, %v896
      %898 = vst [vmem:[%s4] sm:$0x1] %v897
      %v899 = vpack.c.bf16 %v532, %v532
      %v900 = vpack.c.bf16 %v534, %v534
      %v901 = vpack.c.bf16 %v537, %v537
      %v902 = vpack.c.bf16 %v539, %v539
      %v903 = vpack.c.bf16 %v542, %v542
      %v904 = vpack.c.bf16 %v544, %v544
      %v905 = vpack.c.bf16 %v547, %v547
      %v906 = vpack.c.bf16 %v549, %v549
      %v907 = vpack.c.bf16 %v552, %v552
      %v908 = vpack.c.bf16 %v554, %v554
      %v909 = vpack.c.bf16 %v557, %v557
      %v910 = vpack.c.bf16 %v559, %v559
      %v911 = vpack.c.bf16 %v562, %v562
      %v912 = vpack.c.bf16 %v564, %v564
      %v913 = vpack.c.bf16 %v567, %v567
      %v914 = vpack.c.bf16 %v569, %v569
      %v915 = vpack.c.bf16 %v572, %v572
      %v916 = vpack.c.bf16 %v574, %v574
      %v917 = vpack.c.bf16 %v577, %v577
      %v918 = vpack.c.bf16 %v579, %v579
      %v919 = vpack.c.bf16 %v582, %v582
      %v920 = vpack.c.bf16 %v584, %v584
      %v921 = vpack.c.bf16 %v587, %v587
      %v922 = vpack.c.bf16 %v589, %v589
      %v923 = vpack.c.bf16 %v592, %v592
      %v924 = vpack.c.bf16 %v594, %v594
      %v925 = vpack.c.bf16 %v597, %v597
      %v926 = vpack.c.bf16 %v599, %v599
      %v927 = vpack.c.bf16 %v602, %v602
      %v928 = vpack.c.bf16 %v604, %v604
      %v929 = vpack.c.bf16 %v607, %v607
      %v930 = vpack.c.bf16 %v609, %v609
      %v931 = vpack.c.bf16 %v612, %v612
      %v932 = vpack.c.bf16 %v614, %v614
      %v933 = vpack.c.bf16 %v617, %v617
      %v934 = vpack.c.bf16 %v619, %v619
      %v935 = vpack.c.bf16 %v622, %v622
      %v936 = vpack.c.bf16 %v624, %v624
      %v937 = vpack.c.bf16 %v627, %v627
      %v938 = vpack.c.bf16 %v629, %v629
      %v939 = vpack.c.bf16 %v632, %v632
      %v940 = vpack.c.bf16 %v634, %v634
      %v941 = vpack.c.bf16 %v637, %v637
      %v942 = vpack.c.bf16 %v639, %v639
      %v943 = vpack.c.bf16 %v642, %v642
      %v944 = vpack.c.bf16 %v644, %v644
      %v945 = vpack.c.bf16 %v647, %v647
      %v946 = vpack.c.bf16 %v649, %v649
      %v947 = vpack.c.bf16 %v652, %v652
      %v948 = vpack.c.bf16 %v654, %v654
      %v949 = vpack.c.bf16 %v657, %v657
      %v950 = vpack.c.bf16 %v659, %v659
      %v951 = vpack.c.bf16 %v662, %v662
      %v952 = vpack.c.bf16 %v664, %v664
      %v953 = vpack.c.bf16 %v667, %v667
      %v954 = vpack.c.bf16 %v669, %v669
      %v955 = vpack.c.bf16 %v672, %v672
      %v956 = vpack.c.bf16 %v674, %v674
      %v957 = vpack.c.bf16 %v677, %v677
      %v958 = vpack.c.bf16 %v679, %v679
      %v959 = vpack.c.bf16 %v682, %v682
      %v960 = vpack.c.bf16 %v684, %v684
      %v961 = vpack.c.bf16 %v687, %v687
      %v962 = vpack.c.bf16 %v689, %v689
      %963 = vst [vmem:[%s194] sm:$0xf] %v899
      %964 = vst [vmem:[%s194 + $0x4] sm:$0xf] %v900
      %965 = vst [vmem:[%s194 + $0x8] sm:$0xf] %v901
      %966 = vst [vmem:[%s194 + $0xc] sm:$0xf] %v902
      %967 = vst [vmem:[%s194 + $0x10] sm:$0xf] %v903
      %968 = vst [vmem:[%s194 + $0x14] sm:$0xf] %v904
      %969 = vst [vmem:[%s194 + $0x18] sm:$0xf] %v905
      %970 = vst [vmem:[%s194 + $0x1c] sm:$0xf] %v906
      %971 = vst [vmem:[%s194 + $0x20] sm:$0xf] %v907
      %972 = vst [vmem:[%s194 + $0x24] sm:$0xf] %v908
      %973 = vst [vmem:[%s194 + $0x28] sm:$0xf] %v909
      %974 = vst [vmem:[%s194 + $0x2c] sm:$0xf] %v910
      %975 = vst [vmem:[%s194 + $0x30] sm:$0xf] %v911
      %976 = vst [vmem:[%s194 + $0x34] sm:$0xf] %v912
      %977 = vst [vmem:[%s194 + $0x38] sm:$0xf] %v913
      %978 = vst [vmem:[%s194 + $0x3c] sm:$0xf] %v914
      %979 = vst [vmem:[%s194 + $0x40] sm:$0xf] %v915
      %980 = vst [vmem:[%s194 + $0x44] sm:$0xf] %v916
      %981 = vst [vmem:[%s194 + $0x48] sm:$0xf] %v917
      %982 = vst [vmem:[%s194 + $0x4c] sm:$0xf] %v918
      %983 = vst [vmem:[%s194 + $0x50] sm:$0xf] %v919
      %984 = vst [vmem:[%s194 + $0x54] sm:$0xf] %v920
      %985 = vst [vmem:[%s194 + $0x58] sm:$0xf] %v921
      %986 = vst [vmem:[%s194 + $0x5c] sm:$0xf] %v922
      %987 = vst [vmem:[%s194 + $0x60] sm:$0xf] %v923
      %988 = vst [vmem:[%s194 + $0x64] sm:$0xf] %v924
      %989 = vst [vmem:[%s194 + $0x68] sm:$0xf] %v925
      %990 = vst [vmem:[%s194 + $0x6c] sm:$0xf] %v926
      %991 = vst [vmem:[%s194 + $0x70] sm:$0xf] %v927
      %992 = vst [vmem:[%s194 + $0x74] sm:$0xf] %v928
      %993 = vst [vmem:[%s194 + $0x78] sm:$0xf] %v929
      %994 = vst [vmem:[%s194 + $0x7c] sm:$0xf] %v930
      %995 = vst [vmem:[%s194 + $0x80] sm:$0xf] %v931
      %996 = vst [vmem:[%s194 + $0x84] sm:$0xf] %v932
      %997 = vst [vmem:[%s194 + $0x88] sm:$0xf] %v933
      %998 = vst [vmem:[%s194 + $0x8c] sm:$0xf] %v934
      %999 = vst [vmem:[%s194 + $0x90] sm:$0xf] %v935
      %1000 = vst [vmem:[%s194 + $0x94] sm:$0xf] %v936
      %1001 = vst [vmem:[%s194 + $0x98] sm:$0xf] %v937
      %1002 = vst [vmem:[%s194 + $0x9c] sm:$0xf] %v938
      %1003 = vst [vmem:[%s194 + $0xa0] sm:$0xf] %v939
      %1004 = vst [vmem:[%s194 + $0xa4] sm:$0xf] %v940
      %1005 = vst [vmem:[%s194 + $0xa8] sm:$0xf] %v941
      %1006 = vst [vmem:[%s194 + $0xac] sm:$0xf] %v942
      %1007 = vst [vmem:[%s194 + $0xb0] sm:$0xf] %v943
      %1008 = vst [vmem:[%s194 + $0xb4] sm:$0xf] %v944
      %1009 = vst [vmem:[%s194 + $0xb8] sm:$0xf] %v945
      %1010 = vst [vmem:[%s194 + $0xbc] sm:$0xf] %v946
      %1011 = vst [vmem:[%s194 + $0xc0] sm:$0xf] %v947
      %1012 = vst [vmem:[%s194 + $0xc4] sm:$0xf] %v948
      %1013 = vst [vmem:[%s194 + $0xc8] sm:$0xf] %v949
      %1014 = vst [vmem:[%s194 + $0xcc] sm:$0xf] %v950
      %1015 = vst [vmem:[%s194 + $0xd0] sm:$0xf] %v951
      %1016 = vst [vmem:[%s194 + $0xd4] sm:$0xf] %v952
      %1017 = vst [vmem:[%s194 + $0xd8] sm:$0xf] %v953
      %1018 = vst [vmem:[%s194 + $0xdc] sm:$0xf] %v954
      %1019 = vst [vmem:[%s194 + $0xe0] sm:$0xf] %v955
      %1020 = vst [vmem:[%s194 + $0xe4] sm:$0xf] %v956
      %1021 = vst [vmem:[%s194 + $0xe8] sm:$0xf] %v957
      %1022 = vst [vmem:[%s194 + $0xec] sm:$0xf] %v958
      %1023 = vst [vmem:[%s194 + $0xf0] sm:$0xf] %v959
      %1024 = vst [vmem:[%s194 + $0xf4] sm:$0xf] %v960
      %1025 = vst [vmem:[%s194 + $0xf8] sm:$0xf] %v961
      %1026 = vst [vmem:[%s194 + $0xfc] sm:$0xf] %v962
      %s1027 = smul.u32 64, %s16
      %p1028 = scmp.lt.s32.totalorder %s1027, 255
      %s1029 = scalar_select %p1028, %s1027, 255
      %s1030 = smul.addr %s1029, 4
      %s1031 = scalar_lea.vmem %s2, %s1030
      // Predicated region
      $region33: #{netd_forward.5} parent=27 // pred_check
        %p1032 = pneg %p81
      $region34: #{netd_forward.5} parent=27 // pred_check_branch
        %1034 = sbr.rel (%p1032) target = $region36
      $region35: #{netd_forward.5} parent=27 // pred_region
        %s1035 = smul.u32 64, %s16
      $region36: #{netd_forward.5} parent=27 // pred_fallthru
        _
      // Predicated region
      $region37: #{netd_forward.5} parent=27 // pred_check
        %p1036 = pneg %p102
      $region38: #{netd_forward.5} parent=27 // pred_check_branch
        %1038 = sbr.rel (%p1036) target = $region40
      $region39: #{netd_forward.5} parent=27 // pred_region
        _
      $region40: #{netd_forward.5} parent=27 // pred_fallthru
        _
      // Predicated region
      $region41: #{netd_forward.5} parent=27 // pred_check
        %p1039 = pneg %p123
      $region42: #{netd_forward.5} parent=27 // pred_check_branch
        %1041 = sbr.rel (%p1039) target = $region44
      $region43: #{netd_forward.5} parent=27 // pred_region
        _
      $region44: #{netd_forward.5} parent=27 // pred_fallthru
        _
      // Predicated region
      $region45: #{netd_forward.5} parent=27 // pred_check
        %p1042 = pneg %p102
      $region46: #{netd_forward.5} parent=27 // pred_check_branch
        %1044 = sbr.rel (%p1042) target = $region48
      $region47: #{netd_forward.5} parent=27 // pred_region
        _
      $region48: #{netd_forward.5} parent=27 // pred_fallthru
        _
      // Predicated region
      $region49: #{netd_forward.5} parent=27 // pred_check
        %p1045 = pneg %p123
      $region50: #{netd_forward.5} parent=27 // pred_check_branch
        %1047 = sbr.rel (%p1045) target = $region52
      $region51: #{netd_forward.5} parent=27 // pred_region
        _
      $region52: #{netd_forward.5} parent=27 // pred_fallthru
        _
    $region28: #{netd_forward.5} parent=5 // pred_fallthru
      _
    %p1048 = scmp.le.s32.totalorder 2, %s11
    // Predicated region
    $region53: #{netd_forward.5} parent=5 // pred_check
      %p1049 = pneg %p1048
    $region54: #{netd_forward.5} parent=5 // pred_check_branch
      %1051 = sbr.rel (%p1049) target = $region56
    $region55: #{netd_forward.5} parent=5 // pred_region
      %s1052 = ssub.s32 %s11, 2
      // Predicated region
      $region57: #{netd_forward.5} parent=55 // pred_check
        %p1053 = pneg %p87
      $region58: #{netd_forward.5} parent=55 // pred_check_branch
        %1055 = sbr.rel (%p1053) target = $region60
      $region59: #{netd_forward.5} parent=55 // pred_region
        %s1056 = smul.u32 64, %s17
        %p1057 = scmp.lt.s32.totalorder %s1056, 255
        %s1058 = scalar_select %p1057, %s1056, 255
        %s1059 = smul.addr %s1058, 4
        %s1060 = scalar_lea.vmem %s2, %s1059
      $region60: #{netd_forward.5} parent=55 // pred_fallthru
        _
    $region56: #{netd_forward.5} parent=5 // pred_fallthru
      _
  $region6: #{netd_forward.5} parent=0 // loop_footer
    %s15 = sadd.s32 1, %s11
  $region7: #{netd_forward.5} parent=0 // loop_footer_branch
    %10 = sbr.rel target = $region3
  $region8: #{netd_forward.5} parent=0 // loop_exit
    _

// kernel: netd_forward.6
$region0: #{netd_forward.6}
  #allocation0 [shape = 'u32[]', space=smem, size = 0x4, offset = 0x4, fixed_abs, tag = 'smem constant byte address 0x4 - core index']
  #allocation1 [shape = 'u32[72,128]{1,0:T(1,128)}', space=vmem, size = 0x9000, scoped, tag = 'internal scratch']
  %s0 = inlined_call_operand.vmem [shape: bf16[2048,128], index: 0, kind: input, shape index: {}]
  %s1 = inlined_call_operand.vmem [shape: f32[1,128], index: 1, kind: input, shape index: {}]
  %s2 = inlined_call_operand.vmem [shape: f32[1,128], index: 2, kind: input, shape index: {}]
  %s3 = inlined_call_operand.vmem [shape: bf16[2048,128], index: 3, kind: output, shape index: {}]
  %s4 = sld [smem:[#allocation0]]
  $region45: #{netd_forward.6} parent=0
    _
  %s6 = ssub.s32 1, %s4
  %s7 = scalar_select 0, %s6, %s4
  loop: start=0, step=1, limit=6
  $region2: #{netd_forward.6} parent=0 // loop_pre_header
    _
  $region3: #{netd_forward.6} parent=0 // loop_header
    %s9 = sphi 0, %s13
    %p10 = scmp.ge.s32.totalorder %s9, 6
    %s19 = sphi 0, %s21
    %s22 = sphi 0, %s19
    %s23 = sphi 0, %s22
    %s39 = sphi 0, %s23
    %s43 = sphi 0, %s43
    %s45 = sphi 0, %s43
    %s46 = sphi 0, %s45
    %s60 = sphi 0, %s46
    %s64 = sphi 0, %s64
    %s66 = sphi 0, %s64
    %s67 = sphi 0, %s66
    %s81 = sphi 0, %s67
    %s87 = sphi 0, %s89
    %s90 = sphi 0, %s87
    %s91 = sphi 0, %s90
    %s107 = sphi 0, %s91
  $region4: #{netd_forward.6} parent=0 // loop_header_branch
    %12 = sbr.rel (%p10) target = $region8
  $region5: #{netd_forward.6} parent=0 // loop_body
    %s14 = ssub.s32 %s9, 1
    %s15 = ssub.s32 %s9, 2
    %s16 = sadd.s32 %s9, 1
    %s17 = ssub.s32 %s9, %s16
    %p18 = scmp.eq.s32.totalorder %s17, 0
    %s20 = sadd.s32 %s19, 1
    %s21 = scalar_select %p18, %s19, %s20
    %p24 = pneg %p18
    %p25 = scmp.eq.s32.totalorder %s9, 3
    %p26 = por %p24, %p25
    %p27 = scmp.ne.s32.totalorder %s19, %s22
    %p28 = scmp.eq.s32.totalorder %s9, 0
    %p29 = por %p27, %p28
    %p30 = scmp.ne.s32.totalorder %s19, %s22
    %p31 = scmp.eq.s32.totalorder %s14, 3
    %p32 = por %p30, %p31
    %p33 = scmp.ne.s32.totalorder %s22, %s23
    %p34 = scmp.eq.s32.totalorder %s14, 0
    %p35 = por %p33, %p34
    %p36 = scmp.ne.s32.totalorder %s22, %s23
    %p37 = scmp.eq.s32.totalorder %s15, 3
    %p38 = por %p36, %p37
    %p40 = scmp.ne.s32.totalorder %s23, %s39
    %p41 = scmp.eq.s32.totalorder %s15, 0
    %p42 = por %p40, %p41
    %s44 = sadd.s32 %s43, 1
    %p47 = scmp.eq.s32.totalorder %s9, 3
    %p48 = scmp.ne.s32.totalorder %s43, %s45
    %p49 = scmp.eq.s32.totalorder %s9, 0
    %p50 = por %p48, %p49
    %p51 = scmp.ne.s32.totalorder %s43, %s45
    %p52 = scmp.eq.s32.totalorder %s14, 3
    %p53 = por %p51, %p52
    %p54 = scmp.ne.s32.totalorder %s45, %s46
    %p55 = scmp.eq.s32.totalorder %s14, 0
    %p56 = por %p54, %p55
    %p57 = scmp.ne.s32.totalorder %s45, %s46
    %p58 = scmp.eq.s32.totalorder %s15, 3
    %p59 = por %p57, %p58
    %p61 = scmp.ne.s32.totalorder %s46, %s60
    %p62 = scmp.eq.s32.totalorder %s15, 0
    %p63 = por %p61, %p62
    %s65 = sadd.s32 %s64, 1
    %p68 = scmp.eq.s32.totalorder %s9, 3
    %p69 = scmp.ne.s32.totalorder %s64, %s66
    %p70 = scmp.eq.s32.totalorder %s9, 0
    %p71 = por %p69, %p70
    %p72 = scmp.ne.s32.totalorder %s64, %s66
    %p73 = scmp.eq.s32.totalorder %s14, 3
    %p74 = por %p72, %p73
    %p75 = scmp.ne.s32.totalorder %s66, %s67
    %p76 = scmp.eq.s32.totalorder %s14, 0
    %p77 = por %p75, %p76
    %p78 = scmp.ne.s32.totalorder %s66, %s67
    %p79 = scmp.eq.s32.totalorder %s15, 3
    %p80 = por %p78, %p79
    %p82 = scmp.ne.s32.totalorder %s67, %s81
    %p83 = scmp.eq.s32.totalorder %s15, 0
    %p84 = por %p82, %p83
    %s85 = ssub.s32 %s9, %s16
    %p86 = scmp.eq.s32.totalorder %s85, 0
    %s88 = sadd.s32 %s87, 1
    %s89 = scalar_select %p86, %s87, %s88
    %p92 = pneg %p86
    %p93 = scmp.eq.s32.totalorder %s9, 3
    %p94 = por %p92, %p93
    %p95 = scmp.ne.s32.totalorder %s87, %s90
    %p96 = scmp.eq.s32.totalorder %s9, 0
    %p97 = por %p95, %p96
    %p98 = scmp.ne.s32.totalorder %s87, %s90
    %p99 = scmp.eq.s32.totalorder %s14, 3
    %p100 = por %p98, %p99
    %p101 = scmp.ne.s32.totalorder %s90, %s91
    %p102 = scmp.eq.s32.totalorder %s14, 0
    %p103 = por %p101, %p102
    %p104 = scmp.ne.s32.totalorder %s90, %s91
    %p105 = scmp.eq.s32.totalorder %s15, 3
    %p106 = por %p104, %p105
    %p108 = scmp.ne.s32.totalorder %s91, %s107
    %p109 = scmp.eq.s32.totalorder %s15, 0
    %p110 = por %p108, %p109
    %p111 = scmp.le.s32.totalorder 1, %s9
    %p112 = scmp.lt.s32.totalorder %s9, 5
    %p113 = pnand %p111, %p112
    %p114 = pneg %p113
    // Predicated region
    $region9: #{netd_forward.6} parent=5 // pred_check
      _
    $region10: #{netd_forward.6} parent=5 // pred_check_branch
      %116 = sbr.rel (%p113) target = $region12
    $region11: #{netd_forward.6} parent=5 // pred_region
      %s117 = ssub.s32 %s9, 1
      // Predicated region
      $region13: #{netd_forward.6} parent=11 // pred_check
        %p118 = pneg %p56
      $region14: #{netd_forward.6} parent=11 // pred_check_branch
        %120 = sbr.rel (%p118) target = $region16
      $region15: #{netd_forward.6} parent=11 // pred_region
        _
      $region16: #{netd_forward.6} parent=11 // pred_fallthru
        _
      // Predicated region
      $region17: #{netd_forward.6} parent=11 // pred_check
        %p121 = pneg %p77
      $region18: #{netd_forward.6} parent=11 // pred_check_branch
        %123 = sbr.rel (%p121) target = $region20
      $region19: #{netd_forward.6} parent=11 // pred_region
        _
      $region20: #{netd_forward.6} parent=11 // pred_fallthru
        _
    $region12: #{netd_forward.6} parent=5 // pred_fallthru
      _
    %p124 = scmp.lt.s32.totalorder %s9, 4
    // Predicated region
    $region21: #{netd_forward.6} parent=5 // pred_check
      %p125 = pneg %p124
    $region22: #{netd_forward.6} parent=5 // pred_check_branch
      %127 = sbr.rel (%p125) target = $region24
    $region23: #{netd_forward.6} parent=5 // pred_region
      // Predicated region
      $region25: #{netd_forward.6} parent=23 // pred_check
        %p128 = pneg %p29
      $region26: #{netd_forward.6} parent=23 // pred_check_branch
        %130 = sbr.rel (%p128) target = $region28
      $region27: #{netd_forward.6} parent=23 // pred_region
        %s131 = smul.u32 64, %s9
        %p132 = scmp.lt.s32.totalorder %s131, 255
        %s133 = scalar_select %p132, %s131, 255
        %s134 = smul.addr %s133, 4
        %s135 = scalar_lea.vmem %s0, %s134
        %s136 = smul.u32 64, %s9
      $region28: #{netd_forward.6} parent=23 // pred_fallthru
        _
    $region24: #{netd_forward.6} parent=5 // pred_fallthru
      _
    %p137 = scmp.le.s32.totalorder 1, %s9
    %p138 = scmp.lt.s32.totalorder %s9, 5
    %p139 = pnand %p137, %p138
    %p140 = pneg %p139
    // Predicated region
    $region29: #{netd_forward.6} parent=5 // pred_check
      _
    $region30: #{netd_forward.6} parent=5 // pred_check_branch
      %142 = sbr.rel (%p139) target = $region32
    $region31: #{netd_forward.6} parent=5 // pred_region
      %s143 = ssub.s32 %s9, 1
      %s144 = smul.u32 64, %s14
      %p145 = scmp.lt.s32.totalorder %s144, 255
      %s146 = scalar_select %p145, %s144, 255
      %s147 = smul.addr %s146, 4
      %s148 = scalar_lea.vmem %s0, %s147
      %p149 = pneg %p35
      %p150 = pneg %p32
      %p151 = pneg %p56
      %p152 = pneg %p53
      %p153 = pneg %p77
      %p154 = pneg %p74
      %p155 = pneg %p103
      %p156 = pneg %p100
      %s157 = smul.u32 64, %s14
      %p158 = scmp.lt.s32.totalorder %s157, 255
      %s159 = scalar_select %p158, %s157, 255
      %s160 = smul.addr %s159, 4
      %s161 = scalar_lea.vmem %s3, %s160
      %s162 = smul.u32 64, %s14
      %p163 = scmp.lt.s32.totalorder %s162, 255
      %s164 = scalar_select %p163, %s162, 255
      %s165 = smul.addr %s164, 4
      %s166 = scalar_lea.vmem %s0, %s165
      %s167 = smul.u32 64, %s14
      %s168 = smul.u32 64, %s14
      %p169 = scmp.lt.s32.totalorder %s168, 255
      %s170 = scalar_select %p169, %s168, 255
      %s171 = smul.addr %s170, 4
      %s172 = scalar_lea.vmem %s3, %s171
      %s173 = smul.u32 64, %s14
      %v174 = vld [vmem:[%s166] sm:$0xf]
      %v175 = vld [vmem:[%s166 + $0x4] sm:$0xf]
      %v176 = vld [vmem:[%s166 + $0x8] sm:$0xf]
      %v177 = vld [vmem:[%s166 + $0xc] sm:$0xf]
      %v178 = vld [vmem:[%s166 + $0x10] sm:$0xf]
      %v179 = vld [vmem:[%s166 + $0x14] sm:$0xf]
      %v180 = vld [vmem:[%s166 + $0x18] sm:$0xf]
      %v181 = vld [vmem:[%s166 + $0x1c] sm:$0xf]
      %v182 = vld [vmem:[%s166 + $0x20] sm:$0xf]
      %v183 = vld [vmem:[%s166 + $0x24] sm:$0xf]
      %v184 = vld [vmem:[%s166 + $0x28] sm:$0xf]
      %v185 = vld [vmem:[%s166 + $0x2c] sm:$0xf]
      %v186 = vld [vmem:[%s166 + $0x30] sm:$0xf]
      %v187 = vld [vmem:[%s166 + $0x34] sm:$0xf]
      %v188 = vld [vmem:[%s166 + $0x38] sm:$0xf]
      %v189 = vld [vmem:[%s166 + $0x3c] sm:$0xf]
      %v190 = vld [vmem:[%s166 + $0x40] sm:$0xf]
      %v191 = vld [vmem:[%s166 + $0x44] sm:$0xf]
      %v192 = vld [vmem:[%s166 + $0x48] sm:$0xf]
      %v193 = vld [vmem:[%s166 + $0x4c] sm:$0xf]
      %v194 = vld [vmem:[%s166 + $0x50] sm:$0xf]
      %v195 = vld [vmem:[%s166 + $0x54] sm:$0xf]
      %v196 = vld [vmem:[%s166 + $0x58] sm:$0xf]
      %v197 = vld [vmem:[%s166 + $0x5c] sm:$0xf]
      %v198 = vld [vmem:[%s166 + $0x60] sm:$0xf]
      %v199 = vld [vmem:[%s166 + $0x64] sm:$0xf]
      %v200 = vld [vmem:[%s166 + $0x68] sm:$0xf]
      %v201 = vld [vmem:[%s166 + $0x6c] sm:$0xf]
      %v202 = vld [vmem:[%s166 + $0x70] sm:$0xf]
      %v203 = vld [vmem:[%s166 + $0x74] sm:$0xf]
      %v204 = vld [vmem:[%s166 + $0x78] sm:$0xf]
      %v205 = vld [vmem:[%s166 + $0x7c] sm:$0xf]
      %v206 = vld [vmem:[%s166 + $0x80] sm:$0xf]
      %v207 = vld [vmem:[%s166 + $0x84] sm:$0xf]
      %v208 = vld [vmem:[%s166 + $0x88] sm:$0xf]
      %v209 = vld [vmem:[%s166 + $0x8c] sm:$0xf]
      %v210 = vld [vmem:[%s166 + $0x90] sm:$0xf]
      %v211 = vld [vmem:[%s166 + $0x94] sm:$0xf]
      %v212 = vld [vmem:[%s166 + $0x98] sm:$0xf]
      %v213 = vld [vmem:[%s166 + $0x9c] sm:$0xf]
      %v214 = vld [vmem:[%s166 + $0xa0] sm:$0xf]
      %v215 = vld [vmem:[%s166 + $0xa4] sm:$0xf]
      %v216 = vld [vmem:[%s166 + $0xa8] sm:$0xf]
      %v217 = vld [vmem:[%s166 + $0xac] sm:$0xf]
      %v218 = vld [vmem:[%s166 + $0xb0] sm:$0xf]
      %v219 = vld [vmem:[%s166 + $0xb4] sm:$0xf]
      %v220 = vld [vmem:[%s166 + $0xb8] sm:$0xf]
      %v221 = vld [vmem:[%s166 + $0xbc] sm:$0xf]
      %v222 = vld [vmem:[%s166 + $0xc0] sm:$0xf]
      %v223 = vld [vmem:[%s166 + $0xc4] sm:$0xf]
      %v224 = vld [vmem:[%s166 + $0xc8] sm:$0xf]
      %v225 = vld [vmem:[%s166 + $0xcc] sm:$0xf]
      %v226 = vld [vmem:[%s166 + $0xd0] sm:$0xf]
      %v227 = vld [vmem:[%s166 + $0xd4] sm:$0xf]
      %v228 = vld [vmem:[%s166 + $0xd8] sm:$0xf]
      %v229 = vld [vmem:[%s166 + $0xdc] sm:$0xf]
      %v230 = vld [vmem:[%s166 + $0xe0] sm:$0xf]
      %v231 = vld [vmem:[%s166 + $0xe4] sm:$0xf]
      %v232 = vld [vmem:[%s166 + $0xe8] sm:$0xf]
      %v233 = vld [vmem:[%s166 + $0xec] sm:$0xf]
      %v234 = vld [vmem:[%s166 + $0xf0] sm:$0xf]
      %v235 = vld [vmem:[%s166 + $0xf4] sm:$0xf]
      %v236 = vld [vmem:[%s166 + $0xf8] sm:$0xf]
      %v237 = vld [vmem:[%s166 + $0xfc] sm:$0xf]
      %v238 = vunpack.c.l.bf16 %v174
      %v239 = vunpack.c.l.bf16 %v175
      %v240 = vunpack.c.l.bf16 %v176
      %v241 = vunpack.c.l.bf16 %v177
      %v242 = vunpack.c.l.bf16 %v178
      %v243 = vunpack.c.l.bf16 %v179
      %v244 = vunpack.c.l.bf16 %v180
      %v245 = vunpack.c.l.bf16 %v181
      %v246 = vunpack.c.l.bf16 %v182
      %v247 = vunpack.c.l.bf16 %v183
      %v248 = vunpack.c.l.bf16 %v184
      %v249 = vunpack.c.l.bf16 %v185
      %v250 = vunpack.c.l.bf16 %v186
      %v251 = vunpack.c.l.bf16 %v187
      %v252 = vunpack.c.l.bf16 %v188
      %v253 = vunpack.c.l.bf16 %v189
      %v254 = vunpack.c.l.bf16 %v190
      %v255 = vunpack.c.l.bf16 %v191
      %v256 = vunpack.c.l.bf16 %v192
      %v257 = vunpack.c.l.bf16 %v193
      %v258 = vunpack.c.l.bf16 %v194
      %v259 = vunpack.c.l.bf16 %v195
      %v260 = vunpack.c.l.bf16 %v196
      %v261 = vunpack.c.l.bf16 %v197
      %v262 = vunpack.c.l.bf16 %v198
      %v263 = vunpack.c.l.bf16 %v199
      %v264 = vunpack.c.l.bf16 %v200
      %v265 = vunpack.c.l.bf16 %v201
      %v266 = vunpack.c.l.bf16 %v202
      %v267 = vunpack.c.l.bf16 %v203
      %v268 = vunpack.c.l.bf16 %v204
      %v269 = vunpack.c.l.bf16 %v205
      %v270 = vunpack.c.l.bf16 %v206
      %v271 = vunpack.c.l.bf16 %v207
      %v272 = vunpack.c.l.bf16 %v208
      %v273 = vunpack.c.l.bf16 %v209
      %v274 = vunpack.c.l.bf16 %v210
      %v275 = vunpack.c.l.bf16 %v211
      %v276 = vunpack.c.l.bf16 %v212
      %v277 = vunpack.c.l.bf16 %v213
      %v278 = vunpack.c.l.bf16 %v214
      %v279 = vunpack.c.l.bf16 %v215
      %v280 = vunpack.c.l.bf16 %v216
      %v281 = vunpack.c.l.bf16 %v217
      %v282 = vunpack.c.l.bf16 %v218
      %v283 = vunpack.c.l.bf16 %v219
      %v284 = vunpack.c.l.bf16 %v220
      %v285 = vunpack.c.l.bf16 %v221
      %v286 = vunpack.c.l.bf16 %v222
      %v287 = vunpack.c.l.bf16 %v223
      %v288 = vunpack.c.l.bf16 %v224
      %v289 = vunpack.c.l.bf16 %v225
      %v290 = vunpack.c.l.bf16 %v226
      %v291 = vunpack.c.l.bf16 %v227
      %v292 = vunpack.c.l.bf16 %v228
      %v293 = vunpack.c.l.bf16 %v229
      %v294 = vunpack.c.l.bf16 %v230
      %v295 = vunpack.c.l.bf16 %v231
      %v296 = vunpack.c.l.bf16 %v232
      %v297 = vunpack.c.l.bf16 %v233
      %v298 = vunpack.c.l.bf16 %v234
      %v299 = vunpack.c.l.bf16 %v235
      %v300 = vunpack.c.l.bf16 %v236
      %v301 = vunpack.c.l.bf16 %v237
      %v302 = vld [vmem:[%s1] sm:$0x1]
      %v304 = vperm.slane %v302, 0
      %v306 = vmul.f32 %v238, %v304
      %v307 = vmul.f32 %v239, %v304
      %v308 = vmul.f32 %v240, %v304
      %v309 = vmul.f32 %v241, %v304
      %v310 = vmul.f32 %v242, %v304
      %v311 = vmul.f32 %v243, %v304
      %v312 = vmul.f32 %v244, %v304
      %v313 = vmul.f32 %v245, %v304
      %v314 = vmul.f32 %v246, %v304
      %v315 = vmul.f32 %v247, %v304
      %v316 = vmul.f32 %v248, %v304
      %v317 = vmul.f32 %v249, %v304
      %v318 = vmul.f32 %v250, %v304
      %v319 = vmul.f32 %v251, %v304
      %v320 = vmul.f32 %v252, %v304
      %v321 = vmul.f32 %v253, %v304
      %v322 = vmul.f32 %v254, %v304
      %v323 = vmul.f32 %v255, %v304
      %v324 = vmul.f32 %v256, %v304
      %v325 = vmul.f32 %v257, %v304
      %v326 = vmul.f32 %v258, %v304
      %v327 = vmul.f32 %v259, %v304
      %v328 = vmul.f32 %v260, %v304
      %v329 = vmul.f32 %v261, %v304
      %v330 = vmul.f32 %v262, %v304
      %v331 = vmul.f32 %v263, %v304
      %v332 = vmul.f32 %v264, %v304
      %v333 = vmul.f32 %v265, %v304
      %v334 = vmul.f32 %v266, %v304
      %v335 = vmul.f32 %v267, %v304
      %v336 = vmul.f32 %v268, %v304
      %v337 = vmul.f32 %v269, %v304
      %v338 = vmul.f32 %v270, %v304
      %v339 = vmul.f32 %v271, %v304
      %v340 = vmul.f32 %v272, %v304
      %v341 = vmul.f32 %v273, %v304
      %v342 = vmul.f32 %v274, %v304
      %v343 = vmul.f32 %v275, %v304
      %v344 = vmul.f32 %v276, %v304
      %v345 = vmul.f32 %v277, %v304
      %v346 = vmul.f32 %v278, %v304
      %v347 = vmul.f32 %v279, %v304
      %v348 = vmul.f32 %v280, %v304
      %v349 = vmul.f32 %v281, %v304
      %v350 = vmul.f32 %v282, %v304
      %v351 = vmul.f32 %v283, %v304
      %v352 = vmul.f32 %v284, %v304
      %v353 = vmul.f32 %v285, %v304
      %v354 = vmul.f32 %v286, %v304
      %v355 = vmul.f32 %v287, %v304
      %v356 = vmul.f32 %v288, %v304
      %v357 = vmul.f32 %v289, %v304
      %v358 = vmul.f32 %v290, %v304
      %v359 = vmul.f32 %v291, %v304
      %v360 = vmul.f32 %v292, %v304
      %v361 = vmul.f32 %v293, %v304
      %v362 = vmul.f32 %v294, %v304
      %v363 = vmul.f32 %v295, %v304
      %v364 = vmul.f32 %v296, %v304
      %v365 = vmul.f32 %v297, %v304
      %v366 = vmul.f32 %v298, %v304
      %v367 = vmul.f32 %v299, %v304
      %v368 = vmul.f32 %v300, %v304
      %v369 = vmul.f32 %v301, %v304
      %v370 = vld [vmem:[%s2] sm:$0x1]
      %v372 = vperm.slane %v370, 0
      %v374 = vadd.f32 %v306, %v372
      %v375 = vadd.f32 %v307, %v372
      %v376 = vadd.f32 %v308, %v372
      %v377 = vadd.f32 %v309, %v372
      %v378 = vadd.f32 %v310, %v372
      %v379 = vadd.f32 %v311, %v372
      %v380 = vadd.f32 %v312, %v372
      %v381 = vadd.f32 %v313, %v372
      %v382 = vadd.f32 %v314, %v372
      %v383 = vadd.f32 %v315, %v372
      %v384 = vadd.f32 %v316, %v372
      %v385 = vadd.f32 %v317, %v372
      %v386 = vadd.f32 %v318, %v372
      %v387 = vadd.f32 %v319, %v372
      %v388 = vadd.f32 %v320, %v372
      %v389 = vadd.f32 %v321, %v372
      %v390 = vadd.f32 %v322, %v372
      %v391 = vadd.f32 %v323, %v372
      %v392 = vadd.f32 %v324, %v372
      %v393 = vadd.f32 %v325, %v372
      %v394 = vadd.f32 %v326, %v372
      %v395 = vadd.f32 %v327, %v372
      %v396 = vadd.f32 %v328, %v372
      %v397 = vadd.f32 %v329, %v372
      %v398 = vadd.f32 %v330, %v372
      %v399 = vadd.f32 %v331, %v372
      %v400 = vadd.f32 %v332, %v372
      %v401 = vadd.f32 %v333, %v372
      %v402 = vadd.f32 %v334, %v372
      %v403 = vadd.f32 %v335, %v372
      %v404 = vadd.f32 %v336, %v372
      %v405 = vadd.f32 %v337, %v372
      %v406 = vadd.f32 %v338, %v372
      %v407 = vadd.f32 %v339, %v372
      %v408 = vadd.f32 %v340, %v372
      %v409 = vadd.f32 %v341, %v372
      %v410 = vadd.f32 %v342, %v372
      %v411 = vadd.f32 %v343, %v372
      %v412 = vadd.f32 %v344, %v372
      %v413 = vadd.f32 %v345, %v372
      %v414 = vadd.f32 %v346, %v372
      %v415 = vadd.f32 %v347, %v372
      %v416 = vadd.f32 %v348, %v372
      %v417 = vadd.f32 %v349, %v372
      %v418 = vadd.f32 %v350, %v372
      %v419 = vadd.f32 %v351, %v372
      %v420 = vadd.f32 %v352, %v372
      %v421 = vadd.f32 %v353, %v372
      %v422 = vadd.f32 %v354, %v372
      %v423 = vadd.f32 %v355, %v372
      %v424 = vadd.f32 %v356, %v372
      %v425 = vadd.f32 %v357, %v372
      %v426 = vadd.f32 %v358, %v372
      %v427 = vadd.f32 %v359, %v372
      %v428 = vadd.f32 %v360, %v372
      %v429 = vadd.f32 %v361, %v372
      %v430 = vadd.f32 %v362, %v372
      %v431 = vadd.f32 %v363, %v372
      %v432 = vadd.f32 %v364, %v372
      %v433 = vadd.f32 %v365, %v372
      %v434 = vadd.f32 %v366, %v372
      %v435 = vadd.f32 %v367, %v372
      %v436 = vadd.f32 %v368, %v372
      %v437 = vadd.f32 %v369, %v372
      %v438 = vmul.f32 %v374, 0.2
      %v439 = vmul.f32 %v375, 0.2
      %v440 = vmul.f32 %v376, 0.2
      %v441 = vmul.f32 %v377, 0.2
      %v442 = vmul.f32 %v378, 0.2
      %v443 = vmul.f32 %v379, 0.2
      %v444 = vmul.f32 %v380, 0.2
      %v445 = vmul.f32 %v381, 0.2
      %v446 = vmul.f32 %v382, 0.2
      %v447 = vmul.f32 %v383, 0.2
      %v448 = vmul.f32 %v384, 0.2
      %v449 = vmul.f32 %v385, 0.2
      %v450 = vmul.f32 %v386, 0.2
      %v451 = vmul.f32 %v387, 0.2
      %v452 = vmul.f32 %v388, 0.2
      %v453 = vmul.f32 %v389, 0.2
      %v454 = vmul.f32 %v390, 0.2
      %v455 = vmul.f32 %v391, 0.2
      %v456 = vmul.f32 %v392, 0.2
      %v457 = vmul.f32 %v393, 0.2
      %v458 = vmul.f32 %v394, 0.2
      %v459 = vmul.f32 %v395, 0.2
      %v460 = vmul.f32 %v396, 0.2
      %v461 = vmul.f32 %v397, 0.2
      %v462 = vmul.f32 %v398, 0.2
      %v463 = vmul.f32 %v399, 0.2
      %v464 = vmul.f32 %v400, 0.2
      %v465 = vmul.f32 %v401, 0.2
      %v466 = vmul.f32 %v402, 0.2
      %v467 = vmul.f32 %v403, 0.2
      %v468 = vmul.f32 %v404, 0.2
      %v469 = vmul.f32 %v405, 0.2
      %v470 = vmul.f32 %v406, 0.2
      %v471 = vmul.f32 %v407, 0.2
      %v472 = vmul.f32 %v408, 0.2
      %v473 = vmul.f32 %v409, 0.2
      %v474 = vmul.f32 %v410, 0.2
      %v475 = vmul.f32 %v411, 0.2
      %v476 = vmul.f32 %v412, 0.2
      %v477 = vmul.f32 %v413, 0.2
      %v478 = vmul.f32 %v414, 0.2
      %v479 = vmul.f32 %v415, 0.2
      %v480 = vmul.f32 %v416, 0.2
      %v481 = vmul.f32 %v417, 0.2
      %v482 = vmul.f32 %v418, 0.2
      %v483 = vmul.f32 %v419, 0.2
      %v484 = vmul.f32 %v420, 0.2
      %v485 = vmul.f32 %v421, 0.2
      %v486 = vmul.f32 %v422, 0.2
      %v487 = vmul.f32 %v423, 0.2
      %v488 = vmul.f32 %v424, 0.2
      %v489 = vmul.f32 %v425, 0.2
      %v490 = vmul.f32 %v426, 0.2
      %v491 = vmul.f32 %v427, 0.2
      %v492 = vmul.f32 %v428, 0.2
      %v493 = vmul.f32 %v429, 0.2
      %v494 = vmul.f32 %v430, 0.2
      %v495 = vmul.f32 %v431, 0.2
      %v496 = vmul.f32 %v432, 0.2
      %v497 = vmul.f32 %v433, 0.2
      %v498 = vmul.f32 %v434, 0.2
      %v499 = vmul.f32 %v435, 0.2
      %v500 = vmul.f32 %v436, 0.2
      %v501 = vmul.f32 %v437, 0.2
      %v502 = vmax.f32 %v374, %v438
      %v503 = vmax.f32 %v375, %v439
      %v504 = vmax.f32 %v376, %v440
      %v505 = vmax.f32 %v377, %v441
      %v506 = vmax.f32 %v378, %v442
      %v507 = vmax.f32 %v379, %v443
      %v508 = vmax.f32 %v380, %v444
      %v509 = vmax.f32 %v381, %v445
      %v510 = vmax.f32 %v382, %v446
      %v511 = vmax.f32 %v383, %v447
      %v512 = vmax.f32 %v384, %v448
      %v513 = vmax.f32 %v385, %v449
      %v514 = vmax.f32 %v386, %v450
      %v515 = vmax.f32 %v387, %v451
      %v516 = vmax.f32 %v388, %v452
      %v517 = vmax.f32 %v389, %v453
      %v518 = vmax.f32 %v390, %v454
      %v519 = vmax.f32 %v391, %v455
      %v520 = vmax.f32 %v392, %v456
      %v521 = vmax.f32 %v393, %v457
      %v522 = vmax.f32 %v394, %v458
      %v523 = vmax.f32 %v395, %v459
      %v524 = vmax.f32 %v396, %v460
      %v525 = vmax.f32 %v397, %v461
      %v526 = vmax.f32 %v398, %v462
      %v527 = vmax.f32 %v399, %v463
      %v528 = vmax.f32 %v400, %v464
      %v529 = vmax.f32 %v401, %v465
      %v530 = vmax.f32 %v402, %v466
      %v531 = vmax.f32 %v403, %v467
      %v532 = vmax.f32 %v404, %v468
      %v533 = vmax.f32 %v405, %v469
      %v534 = vmax.f32 %v406, %v470
      %v535 = vmax.f32 %v407, %v471
      %v536 = vmax.f32 %v408, %v472
      %v537 = vmax.f32 %v409, %v473
      %v538 = vmax.f32 %v410, %v474
      %v539 = vmax.f32 %v411, %v475
      %v540 = vmax.f32 %v412, %v476
      %v541 = vmax.f32 %v413, %v477
      %v542 = vmax.f32 %v414, %v478
      %v543 = vmax.f32 %v415, %v479
      %v544 = vmax.f32 %v416, %v480
      %v545 = vmax.f32 %v417, %v481
      %v546 = vmax.f32 %v418, %v482
      %v547 = vmax.f32 %v419, %v483
      %v548 = vmax.f32 %v420, %v484
      %v549 = vmax.f32 %v421, %v485
      %v550 = vmax.f32 %v422, %v486
      %v551 = vmax.f32 %v423, %v487
      %v552 = vmax.f32 %v424, %v488
      %v553 = vmax.f32 %v425, %v489
      %v554 = vmax.f32 %v426, %v490
      %v555 = vmax.f32 %v427, %v491
      %v556 = vmax.f32 %v428, %v492
      %v557 = vmax.f32 %v429, %v493
      %v558 = vmax.f32 %v430, %v494
      %v559 = vmax.f32 %v431, %v495
      %v560 = vmax.f32 %v432, %v496
      %v561 = vmax.f32 %v433, %v497
      %v562 = vmax.f32 %v434, %v498
      %v563 = vmax.f32 %v435, %v499
      %v564 = vmax.f32 %v436, %v500
      %v565 = vmax.f32 %v437, %v501
      %v566 = vpack.c.bf16 %v502, %v502
      %v567 = vpack.c.bf16 %v503, %v503
      %v568 = vpack.c.bf16 %v504, %v504
      %v569 = vpack.c.bf16 %v505, %v505
      %v570 = vpack.c.bf16 %v506, %v506
      %v571 = vpack.c.bf16 %v507, %v507
      %v572 = vpack.c.bf16 %v508, %v508
      %v573 = vpack.c.bf16 %v509, %v509
      %v574 = vpack.c.bf16 %v510, %v510
      %v575 = vpack.c.bf16 %v511, %v511
      %v576 = vpack.c.bf16 %v512, %v512
      %v577 = vpack.c.bf16 %v513, %v513
      %v578 = vpack.c.bf16 %v514, %v514
      %v579 = vpack.c.bf16 %v515, %v515
      %v580 = vpack.c.bf16 %v516, %v516
      %v581 = vpack.c.bf16 %v517, %v517
      %v582 = vpack.c.bf16 %v518, %v518
      %v583 = vpack.c.bf16 %v519, %v519
      %v584 = vpack.c.bf16 %v520, %v520
      %v585 = vpack.c.bf16 %v521, %v521
      %v586 = vpack.c.bf16 %v522, %v522
      %v587 = vpack.c.bf16 %v523, %v523
      %v588 = vpack.c.bf16 %v524, %v524
      %v589 = vpack.c.bf16 %v525, %v525
      %v590 = vpack.c.bf16 %v526, %v526
      %v591 = vpack.c.bf16 %v527, %v527
      %v592 = vpack.c.bf16 %v528, %v528
      %v593 = vpack.c.bf16 %v529, %v529
      %v594 = vpack.c.bf16 %v530, %v530
      %v595 = vpack.c.bf16 %v531, %v531
      %v596 = vpack.c.bf16 %v532, %v532
      %v597 = vpack.c.bf16 %v533, %v533
      %v598 = vpack.c.bf16 %v534, %v534
      %v599 = vpack.c.bf16 %v535, %v535
      %v600 = vpack.c.bf16 %v536, %v536
      %v601 = vpack.c.bf16 %v537, %v537
      %v602 = vpack.c.bf16 %v538, %v538
      %v603 = vpack.c.bf16 %v539, %v539
      %v604 = vpack.c.bf16 %v540, %v540
      %v605 = vpack.c.bf16 %v541, %v541
      %v606 = vpack.c.bf16 %v542, %v542
      %v607 = vpack.c.bf16 %v543, %v543
      %v608 = vpack.c.bf16 %v544, %v544
      %v609 = vpack.c.bf16 %v545, %v545
      %v610 = vpack.c.bf16 %v546, %v546
      %v611 = vpack.c.bf16 %v547, %v547
      %v612 = vpack.c.bf16 %v548, %v548
      %v613 = vpack.c.bf16 %v549, %v549
      %v614 = vpack.c.bf16 %v550, %v550
      %v615 = vpack.c.bf16 %v551, %v551
      %v616 = vpack.c.bf16 %v552, %v552
      %v617 = vpack.c.bf16 %v553, %v553
      %v618 = vpack.c.bf16 %v554, %v554
      %v619 = vpack.c.bf16 %v555, %v555
      %v620 = vpack.c.bf16 %v556, %v556
      %v621 = vpack.c.bf16 %v557, %v557
      %v622 = vpack.c.bf16 %v558, %v558
      %v623 = vpack.c.bf16 %v559, %v559
      %v624 = vpack.c.bf16 %v560, %v560
      %v625 = vpack.c.bf16 %v561, %v561
      %v626 = vpack.c.bf16 %v562, %v562
      %v627 = vpack.c.bf16 %v563, %v563
      %v628 = vpack.c.bf16 %v564, %v564
      %v629 = vpack.c.bf16 %v565, %v565
      %630 = vst [vmem:[%s172] sm:$0xf] %v566
      %631 = vst [vmem:[%s172 + $0x4] sm:$0xf] %v567
      %632 = vst [vmem:[%s172 + $0x8] sm:$0xf] %v568
      %633 = vst [vmem:[%s172 + $0xc] sm:$0xf] %v569
      %634 = vst [vmem:[%s172 + $0x10] sm:$0xf] %v570
      %635 = vst [vmem:[%s172 + $0x14] sm:$0xf] %v571
      %636 = vst [vmem:[%s172 + $0x18] sm:$0xf] %v572
      %637 = vst [vmem:[%s172 + $0x1c] sm:$0xf] %v573
      %638 = vst [vmem:[%s172 + $0x20] sm:$0xf] %v574
      %639 = vst [vmem:[%s172 + $0x24] sm:$0xf] %v575
      %640 = vst [vmem:[%s172 + $0x28] sm:$0xf] %v576
      %641 = vst [vmem:[%s172 + $0x2c] sm:$0xf] %v577
      %642 = vst [vmem:[%s172 + $0x30] sm:$0xf] %v578
      %643 = vst [vmem:[%s172 + $0x34] sm:$0xf] %v579
      %644 = vst [vmem:[%s172 + $0x38] sm:$0xf] %v580
      %645 = vst [vmem:[%s172 + $0x3c] sm:$0xf] %v581
      %646 = vst [vmem:[%s172 + $0x40] sm:$0xf] %v582
      %647 = vst [vmem:[%s172 + $0x44] sm:$0xf] %v583
      %648 = vst [vmem:[%s172 + $0x48] sm:$0xf] %v584
      %649 = vst [vmem:[%s172 + $0x4c] sm:$0xf] %v585
      %650 = vst [vmem:[%s172 + $0x50] sm:$0xf] %v586
      %651 = vst [vmem:[%s172 + $0x54] sm:$0xf] %v587
      %652 = vst [vmem:[%s172 + $0x58] sm:$0xf] %v588
      %653 = vst [vmem:[%s172 + $0x5c] sm:$0xf] %v589
      %654 = vst [vmem:[%s172 + $0x60] sm:$0xf] %v590
      %655 = vst [vmem:[%s172 + $0x64] sm:$0xf] %v591
      %656 = vst [vmem:[%s172 + $0x68] sm:$0xf] %v592
      %657 = vst [vmem:[%s172 + $0x6c] sm:$0xf] %v593
      %658 = vst [vmem:[%s172 + $0x70] sm:$0xf] %v594
      %659 = vst [vmem:[%s172 + $0x74] sm:$0xf] %v595
      %660 = vst [vmem:[%s172 + $0x78] sm:$0xf] %v596
      %661 = vst [vmem:[%s172 + $0x7c] sm:$0xf] %v597
      %662 = vst [vmem:[%s172 + $0x80] sm:$0xf] %v598
      %663 = vst [vmem:[%s172 + $0x84] sm:$0xf] %v599
      %664 = vst [vmem:[%s172 + $0x88] sm:$0xf] %v600
      %665 = vst [vmem:[%s172 + $0x8c] sm:$0xf] %v601
      %666 = vst [vmem:[%s172 + $0x90] sm:$0xf] %v602
      %667 = vst [vmem:[%s172 + $0x94] sm:$0xf] %v603
      %668 = vst [vmem:[%s172 + $0x98] sm:$0xf] %v604
      %669 = vst [vmem:[%s172 + $0x9c] sm:$0xf] %v605
      %670 = vst [vmem:[%s172 + $0xa0] sm:$0xf] %v606
      %671 = vst [vmem:[%s172 + $0xa4] sm:$0xf] %v607
      %672 = vst [vmem:[%s172 + $0xa8] sm:$0xf] %v608
      %673 = vst [vmem:[%s172 + $0xac] sm:$0xf] %v609
      %674 = vst [vmem:[%s172 + $0xb0] sm:$0xf] %v610
      %675 = vst [vmem:[%s172 + $0xb4] sm:$0xf] %v611
      %676 = vst [vmem:[%s172 + $0xb8] sm:$0xf] %v612
      %677 = vst [vmem:[%s172 + $0xbc] sm:$0xf] %v613
      %678 = vst [vmem:[%s172 + $0xc0] sm:$0xf] %v614
      %679 = vst [vmem:[%s172 + $0xc4] sm:$0xf] %v615
      %680 = vst [vmem:[%s172 + $0xc8] sm:$0xf] %v616
      %681 = vst [vmem:[%s172 + $0xcc] sm:$0xf] %v617
      %682 = vst [vmem:[%s172 + $0xd0] sm:$0xf] %v618
      %683 = vst [vmem:[%s172 + $0xd4] sm:$0xf] %v619
      %684 = vst [vmem:[%s172 + $0xd8] sm:$0xf] %v620
      %685 = vst [vmem:[%s172 + $0xdc] sm:$0xf] %v621
      %686 = vst [vmem:[%s172 + $0xe0] sm:$0xf] %v622
      %687 = vst [vmem:[%s172 + $0xe4] sm:$0xf] %v623
      %688 = vst [vmem:[%s172 + $0xe8] sm:$0xf] %v624
      %689 = vst [vmem:[%s172 + $0xec] sm:$0xf] %v625
      %690 = vst [vmem:[%s172 + $0xf0] sm:$0xf] %v626
      %691 = vst [vmem:[%s172 + $0xf4] sm:$0xf] %v627
      %692 = vst [vmem:[%s172 + $0xf8] sm:$0xf] %v628
      %693 = vst [vmem:[%s172 + $0xfc] sm:$0xf] %v629
      %s694 = smul.u32 64, %s14
      %p695 = scmp.lt.s32.totalorder %s694, 255
      %s696 = scalar_select %p695, %s694, 255
      %s697 = smul.addr %s696, 4
      %s698 = scalar_lea.vmem %s3, %s697
      // Predicated region
      $region33: #{netd_forward.6} parent=31 // pred_check
        %p699 = pneg %p100
      $region34: #{netd_forward.6} parent=31 // pred_check_branch
        %701 = sbr.rel (%p699) target = $region36
      $region35: #{netd_forward.6} parent=31 // pred_region
        %s702 = smul.u32 64, %s14
      $region36: #{netd_forward.6} parent=31 // pred_fallthru
        _
    $region32: #{netd_forward.6} parent=5 // pred_fallthru
      _
    %p703 = scmp.le.s32.totalorder 2, %s9
    // Predicated region
    $region37: #{netd_forward.6} parent=5 // pred_check
      %p704 = pneg %p703
    $region38: #{netd_forward.6} parent=5 // pred_check_branch
      %706 = sbr.rel (%p704) target = $region40
    $region39: #{netd_forward.6} parent=5 // pred_region
      %s707 = ssub.s32 %s9, 2
      // Predicated region
      $region41: #{netd_forward.6} parent=39 // pred_check
        %p708 = pneg %p106
      $region42: #{netd_forward.6} parent=39 // pred_check_branch
        %710 = sbr.rel (%p708) target = $region44
      $region43: #{netd_forward.6} parent=39 // pred_region
        %s711 = smul.u32 64, %s15
        %p712 = scmp.lt.s32.totalorder %s711, 255
        %s713 = scalar_select %p712, %s711, 255
        %s714 = smul.addr %s713, 4
        %s715 = scalar_lea.vmem %s3, %s714
      $region44: #{netd_forward.6} parent=39 // pred_fallthru
        _
    $region40: #{netd_forward.6} parent=5 // pred_fallthru
      _
  $region6: #{netd_forward.6} parent=0 // loop_footer
    %s13 = sadd.s32 1, %s9
  $region7: #{netd_forward.6} parent=0 // loop_footer_branch
    %8 = sbr.rel target = $region3
  $region8: #{netd_forward.6} parent=0 // loop_exit
    _

// kernel: netd_forward.7
$region0: #{netd_forward.7}
  #allocation0 [shape = 'u32[]', space=smem, size = 0x4, offset = 0x4, fixed_abs, tag = 'smem constant byte address 0x4 - core index']
  #allocation1 [shape = 'u32[72,128]{1,0:T(1,128)}', space=vmem, size = 0x9000, scoped, tag = 'internal scratch']
  %s0 = inlined_call_operand.vmem [shape: bf16[512,128], index: 0, kind: input, shape index: {}]
  %s1 = inlined_call_operand.vmem [shape: bf16[128,128], index: 1, kind: input, shape index: {}]
  %s2 = inlined_call_operand.vmem [shape: f32[1,128], index: 2, kind: input, shape index: {}]
  %s3 = inlined_call_operand.vmem [shape: f32[1,128], index: 3, kind: input, shape index: {}]
  %s4 = inlined_call_operand.vmem [shape: bf16[512,128], index: 4, kind: output, shape index: {}]
  %s5 = sld [smem:[#allocation0]]
  $region26: #{netd_forward.7} parent=0
    _
  %s7 = ssub.s32 1, %s5
  %s8 = scalar_select 0, %s7, %s5
  // Predicated region
  $region2: #{netd_forward.7} parent=0 // pred_check
    _
  $region3: #{netd_forward.7} parent=0 // pred_check_branch
    %10 = sbr.rel (0) target = $region5
  $region4: #{netd_forward.7} parent=0 // pred_region
    _
  $region5: #{netd_forward.7} parent=0 // pred_fallthru
    _
  // Predicated region
  $region6: #{netd_forward.7} parent=0 // pred_check
    _
  $region7: #{netd_forward.7} parent=0 // pred_check_branch
    %12 = sbr.rel (0) target = $region9
  $region8: #{netd_forward.7} parent=0 // pred_region
    _
  $region9: #{netd_forward.7} parent=0 // pred_fallthru
    _
  // Predicated region
  $region10: #{netd_forward.7} parent=0 // pred_check
    _
  $region11: #{netd_forward.7} parent=0 // pred_check_branch
    %14 = sbr.rel (0) target = $region13
  $region12: #{netd_forward.7} parent=0 // pred_region
    _
  $region13: #{netd_forward.7} parent=0 // pred_fallthru
    _
  // Predicated region
  $region14: #{netd_forward.7} parent=0 // pred_check
    _
  $region15: #{netd_forward.7} parent=0 // pred_check_branch
    %16 = sbr.rel (0) target = $region17
  $region16: #{netd_forward.7} parent=0 // pred_region
    _
  $region17: #{netd_forward.7} parent=0 // pred_fallthru
    _
  %v17 = vld [vmem:[%s0] sm:$0xf]
  %v18 = vld [vmem:[%s0 + $0x4] sm:$0xf]
  %v19 = vld [vmem:[%s0 + $0x8] sm:$0xf]
  %v20 = vld [vmem:[%s0 + $0xc] sm:$0xf]
  %v21 = vld [vmem:[%s0 + $0x10] sm:$0xf]
  %v22 = vld [vmem:[%s0 + $0x14] sm:$0xf]
  %v23 = vld [vmem:[%s0 + $0x18] sm:$0xf]
  %v24 = vld [vmem:[%s0 + $0x1c] sm:$0xf]
  %v25 = vld [vmem:[%s0 + $0x20] sm:$0xf]
  %v26 = vld [vmem:[%s0 + $0x24] sm:$0xf]
  %v27 = vld [vmem:[%s0 + $0x28] sm:$0xf]
  %v28 = vld [vmem:[%s0 + $0x2c] sm:$0xf]
  %v29 = vld [vmem:[%s0 + $0x30] sm:$0xf]
  %v30 = vld [vmem:[%s0 + $0x34] sm:$0xf]
  %v31 = vld [vmem:[%s0 + $0x38] sm:$0xf]
  %v32 = vld [vmem:[%s0 + $0x3c] sm:$0xf]
  %v33 = vld [vmem:[%s0 + $0x40] sm:$0xf]
  %v34 = vld [vmem:[%s0 + $0x44] sm:$0xf]
  %v35 = vld [vmem:[%s0 + $0x48] sm:$0xf]
  %v36 = vld [vmem:[%s0 + $0x4c] sm:$0xf]
  %v37 = vld [vmem:[%s0 + $0x50] sm:$0xf]
  %v38 = vld [vmem:[%s0 + $0x54] sm:$0xf]
  %v39 = vld [vmem:[%s0 + $0x58] sm:$0xf]
  %v40 = vld [vmem:[%s0 + $0x5c] sm:$0xf]
  %v41 = vld [vmem:[%s0 + $0x60] sm:$0xf]
  %v42 = vld [vmem:[%s0 + $0x64] sm:$0xf]
  %v43 = vld [vmem:[%s0 + $0x68] sm:$0xf]
  %v44 = vld [vmem:[%s0 + $0x6c] sm:$0xf]
  %v45 = vld [vmem:[%s0 + $0x70] sm:$0xf]
  %v46 = vld [vmem:[%s0 + $0x74] sm:$0xf]
  %v47 = vld [vmem:[%s0 + $0x78] sm:$0xf]
  %v48 = vld [vmem:[%s0 + $0x7c] sm:$0xf]
  %v49 = vld [vmem:[%s0 + $0x80] sm:$0xf]
  %v50 = vld [vmem:[%s0 + $0x84] sm:$0xf]
  %v51 = vld [vmem:[%s0 + $0x88] sm:$0xf]
  %v52 = vld [vmem:[%s0 + $0x8c] sm:$0xf]
  %v53 = vld [vmem:[%s0 + $0x90] sm:$0xf]
  %v54 = vld [vmem:[%s0 + $0x94] sm:$0xf]
  %v55 = vld [vmem:[%s0 + $0x98] sm:$0xf]
  %v56 = vld [vmem:[%s0 + $0x9c] sm:$0xf]
  %v57 = vld [vmem:[%s0 + $0xa0] sm:$0xf]
  %v58 = vld [vmem:[%s0 + $0xa4] sm:$0xf]
  %v59 = vld [vmem:[%s0 + $0xa8] sm:$0xf]
  %v60 = vld [vmem:[%s0 + $0xac] sm:$0xf]
  %v61 = vld [vmem:[%s0 + $0xb0] sm:$0xf]
  %v62 = vld [vmem:[%s0 + $0xb4] sm:$0xf]
  %v63 = vld [vmem:[%s0 + $0xb8] sm:$0xf]
  %v64 = vld [vmem:[%s0 + $0xbc] sm:$0xf]
  %v65 = vld [vmem:[%s0 + $0xc0] sm:$0xf]
  %v66 = vld [vmem:[%s0 + $0xc4] sm:$0xf]
  %v67 = vld [vmem:[%s0 + $0xc8] sm:$0xf]
  %v68 = vld [vmem:[%s0 + $0xcc] sm:$0xf]
  %v69 = vld [vmem:[%s0 + $0xd0] sm:$0xf]
  %v70 = vld [vmem:[%s0 + $0xd4] sm:$0xf]
  %v71 = vld [vmem:[%s0 + $0xd8] sm:$0xf]
  %v72 = vld [vmem:[%s0 + $0xdc] sm:$0xf]
  %v73 = vld [vmem:[%s0 + $0xe0] sm:$0xf]
  %v74 = vld [vmem:[%s0 + $0xe4] sm:$0xf]
  %v75 = vld [vmem:[%s0 + $0xe8] sm:$0xf]
  %v76 = vld [vmem:[%s0 + $0xec] sm:$0xf]
  %v77 = vld [vmem:[%s0 + $0xf0] sm:$0xf]
  %v78 = vld [vmem:[%s0 + $0xf4] sm:$0xf]
  %v79 = vld [vmem:[%s0 + $0xf8] sm:$0xf]
  %v80 = vld [vmem:[%s0 + $0xfc] sm:$0xf]
  %v81 = vld [vmem:[%s1] sm:$0xf]
  %v82 = vld [vmem:[%s1 + $0x4] sm:$0xf]
  %v83 = vld [vmem:[%s1 + $0x8] sm:$0xf]
  %v84 = vld [vmem:[%s1 + $0xc] sm:$0xf]
  %v85 = vld [vmem:[%s1 + $0x10] sm:$0xf]
  %v86 = vld [vmem:[%s1 + $0x14] sm:$0xf]
  %v87 = vld [vmem:[%s1 + $0x18] sm:$0xf]
  %v88 = vld [vmem:[%s1 + $0x1c] sm:$0xf]
  %v89 = vld [vmem:[%s1 + $0x20] sm:$0xf]
  %v90 = vld [vmem:[%s1 + $0x24] sm:$0xf]
  %v91 = vld [vmem:[%s1 + $0x28] sm:$0xf]
  %v92 = vld [vmem:[%s1 + $0x2c] sm:$0xf]
  %v93 = vld [vmem:[%s1 + $0x30] sm:$0xf]
  %v94 = vld [vmem:[%s1 + $0x34] sm:$0xf]
  %v95 = vld [vmem:[%s1 + $0x38] sm:$0xf]
  %v96 = vld [vmem:[%s1 + $0x3c] sm:$0xf]
  %v161 = vunpack.c.l.b16 %v17
  %v162 = vunpack.c.l.b16 %v18
  %v163 = vunpack.c.l.b16 %v19
  %v164 = vunpack.c.l.b16 %v20
  %v165 = vunpack.c.l.b16 %v21
  %v166 = vunpack.c.l.b16 %v22
  %v167 = vunpack.c.l.b16 %v23
  %v168 = vunpack.c.l.b16 %v24
  %v169 = vunpack.c.l.b16 %v25
  %v170 = vunpack.c.l.b16 %v26
  %v171 = vunpack.c.l.b16 %v27
  %v172 = vunpack.c.l.b16 %v28
  %v173 = vunpack.c.l.b16 %v29
  %v174 = vunpack.c.l.b16 %v30
  %v175 = vunpack.c.l.b16 %v31
  %v176 = vunpack.c.l.b16 %v32
  %v177 = vunpack.c.l.b16 %v33
  %v178 = vunpack.c.l.b16 %v34
  %v179 = vunpack.c.l.b16 %v35
  %v180 = vunpack.c.l.b16 %v36
  %v181 = vunpack.c.l.b16 %v37
  %v182 = vunpack.c.l.b16 %v38
  %v183 = vunpack.c.l.b16 %v39
  %v184 = vunpack.c.l.b16 %v40
  %v185 = vunpack.c.l.b16 %v41
  %v186 = vunpack.c.l.b16 %v42
  %v187 = vunpack.c.l.b16 %v43
  %v188 = vunpack.c.l.b16 %v44
  %v189 = vunpack.c.l.b16 %v45
  %v190 = vunpack.c.l.b16 %v46
  %v191 = vunpack.c.l.b16 %v47
  %v192 = vunpack.c.l.b16 %v48
  %v193 = vunpack.c.l.b16 %v49
  %v194 = vunpack.c.l.b16 %v50
  %v195 = vunpack.c.l.b16 %v51
  %v196 = vunpack.c.l.b16 %v52
  %v197 = vunpack.c.l.b16 %v53
  %v198 = vunpack.c.l.b16 %v54
  %v199 = vunpack.c.l.b16 %v55
  %v200 = vunpack.c.l.b16 %v56
  %v201 = vunpack.c.l.b16 %v57
  %v202 = vunpack.c.l.b16 %v58
  %v203 = vunpack.c.l.b16 %v59
  %v204 = vunpack.c.l.b16 %v60
  %v205 = vunpack.c.l.b16 %v61
  %v206 = vunpack.c.l.b16 %v62
  %v207 = vunpack.c.l.b16 %v63
  %v208 = vunpack.c.l.b16 %v64
  %v209 = vunpack.c.l.b16 %v65
  %v210 = vunpack.c.l.b16 %v66
  %v211 = vunpack.c.l.b16 %v67
  %v212 = vunpack.c.l.b16 %v68
  %v213 = vunpack.c.l.b16 %v69
  %v214 = vunpack.c.l.b16 %v70
  %v215 = vunpack.c.l.b16 %v71
  %v216 = vunpack.c.l.b16 %v72
  %v217 = vunpack.c.l.b16 %v73
  %v218 = vunpack.c.l.b16 %v74
  %v219 = vunpack.c.l.b16 %v75
  %v220 = vunpack.c.l.b16 %v76
  %v221 = vunpack.c.l.b16 %v77
  %v222 = vunpack.c.l.b16 %v78
  %v223 = vunpack.c.l.b16 %v79
  %v224 = vunpack.c.l.b16 %v80
  %v225 = vpack.c.b16 %v162, %v161
  %v226 = vpack.c.b16 %v164, %v163
  %v227 = vpack.c.b16 %v166, %v165
  %v228 = vpack.c.b16 %v168, %v167
  %v229 = vpack.c.b16 %v170, %v169
  %v230 = vpack.c.b16 %v172, %v171
  %v231 = vpack.c.b16 %v174, %v173
  %v232 = vpack.c.b16 %v176, %v175
  %v233 = vpack.c.b16 %v178, %v177
  %v234 = vpack.c.b16 %v180, %v179
  %v235 = vpack.c.b16 %v182, %v181
  %v236 = vpack.c.b16 %v184, %v183
  %v237 = vpack.c.b16 %v186, %v185
  %v238 = vpack.c.b16 %v188, %v187
  %v239 = vpack.c.b16 %v190, %v189
  %v240 = vpack.c.b16 %v192, %v191
  %v241 = vpack.c.b16 %v194, %v193
  %v242 = vpack.c.b16 %v196, %v195
  %v243 = vpack.c.b16 %v198, %v197
  %v244 = vpack.c.b16 %v200, %v199
  %v245 = vpack.c.b16 %v202, %v201
  %v246 = vpack.c.b16 %v204, %v203
  %v247 = vpack.c.b16 %v206, %v205
  %v248 = vpack.c.b16 %v208, %v207
  %v249 = vpack.c.b16 %v210, %v209
  %v250 = vpack.c.b16 %v212, %v211
  %v251 = vpack.c.b16 %v214, %v213
  %v252 = vpack.c.b16 %v216, %v215
  %v253 = vpack.c.b16 %v218, %v217
  %v254 = vpack.c.b16 %v220, %v219
  %v255 = vpack.c.b16 %v222, %v221
  %v256 = vpack.c.b16 %v224, %v223
  %v305 = vunpack.c.l.b16 %v81
  %v306 = vunpack.c.l.b16 %v82
  %v307 = vunpack.c.l.b16 %v83
  %v308 = vunpack.c.l.b16 %v84
  %v309 = vunpack.c.l.b16 %v85
  %v310 = vunpack.c.l.b16 %v86
  %v311 = vunpack.c.l.b16 %v87
  %v312 = vunpack.c.l.b16 %v88
  %v313 = vunpack.c.l.b16 %v89
  %v314 = vunpack.c.l.b16 %v90
  %v315 = vunpack.c.l.b16 %v91
  %v316 = vunpack.c.l.b16 %v92
  %v317 = vunpack.c.l.b16 %v93
  %v318 = vunpack.c.l.b16 %v94
  %v319 = vunpack.c.l.b16 %v95
  %v320 = vunpack.c.l.b16 %v96
  %v321 = vpack.c.b16 %v306, %v305
  %v322 = vpack.c.b16 %v308, %v307
  %v323 = vpack.c.b16 %v310, %v309
  %v324 = vpack.c.b16 %v312, %v311
  %v325 = vpack.c.b16 %v314, %v313
  %v326 = vpack.c.b16 %v316, %v315
  %v327 = vpack.c.b16 %v318, %v317
  %v328 = vpack.c.b16 %v320, %v319
  %337 = vmatpush.bf16.msra.mxu0 %v328
  %338 = vmatpush.bf16.msra.mxu0 %v327
  %339 = vmatpush.bf16.msra.mxu0 %v326
  %340 = vmatpush.bf16.msra.mxu0 %v325
  %341 = vmatpush.bf16.msra.mxu0 %v324
  %342 = vmatpush.bf16.msra.mxu0 %v323
  %343 = vmatpush.bf16.msra.mxu0 %v322
  %344 = vmatpush.bf16.msra.mxu0 %v321
  %345 = vmatmul.bf16.gmra.mxu0 %v225
  %v346 = vpop.f32.mrf.mxu0
  %v347 = vadd.f32 0.0, %v346
  %v348 = vpop.f32.mrf.mxu0
  %v349 = vadd.f32 0.0, %v348
  %350 = vmatmul.bf16.gmra.mxu0 %v226
  %v351 = vpop.f32.mrf.mxu0
  %v352 = vadd.f32 0.0, %v351
  %v353 = vpop.f32.mrf.mxu0
  %v354 = vadd.f32 0.0, %v353
  %355 = vmatmul.bf16.gmra.mxu0 %v227
  %v356 = vpop.f32.mrf.mxu0
  %v357 = vadd.f32 0.0, %v356
  %v358 = vpop.f32.mrf.mxu0
  %v359 = vadd.f32 0.0, %v358
  %360 = vmatmul.bf16.gmra.mxu0 %v228
  %v361 = vpop.f32.mrf.mxu0
  %v362 = vadd.f32 0.0, %v361
  %v363 = vpop.f32.mrf.mxu0
  %v364 = vadd.f32 0.0, %v363
  %365 = vmatmul.bf16.gmra.mxu0 %v229
  %v366 = vpop.f32.mrf.mxu0
  %v367 = vadd.f32 0.0, %v366
  %v368 = vpop.f32.mrf.mxu0
  %v369 = vadd.f32 0.0, %v368
  %370 = vmatmul.bf16.gmra.mxu0 %v230
  %v371 = vpop.f32.mrf.mxu0
  %v372 = vadd.f32 0.0, %v371
  %v373 = vpop.f32.mrf.mxu0
  %v374 = vadd.f32 0.0, %v373
  %375 = vmatmul.bf16.gmra.mxu0 %v231
  %v376 = vpop.f32.mrf.mxu0
  %v377 = vadd.f32 0.0, %v376
  %v378 = vpop.f32.mrf.mxu0
  %v379 = vadd.f32 0.0, %v378
  %380 = vmatmul.bf16.gmra.mxu0 %v232
  %v381 = vpop.f32.mrf.mxu0
  %v382 = vadd.f32 0.0, %v381
  %v383 = vpop.f32.mrf.mxu0
  %v384 = vadd.f32 0.0, %v383
  %385 = vmatmul.bf16.gmra.mxu0 %v233
  %v386 = vpop.f32.mrf.mxu0
  %v387 = vadd.f32 0.0, %v386
  %v388 = vpop.f32.mrf.mxu0
  %v389 = vadd.f32 0.0, %v388
  %390 = vmatmul.bf16.gmra.mxu0 %v234
  %v391 = vpop.f32.mrf.mxu0
  %v392 = vadd.f32 0.0, %v391
  %v393 = vpop.f32.mrf.mxu0
  %v394 = vadd.f32 0.0, %v393
  %395 = vmatmul.bf16.gmra.mxu0 %v235
  %v396 = vpop.f32.mrf.mxu0
  %v397 = vadd.f32 0.0, %v396
  %v398 = vpop.f32.mrf.mxu0
  %v399 = vadd.f32 0.0, %v398
  %400 = vmatmul.bf16.gmra.mxu0 %v236
  %v401 = vpop.f32.mrf.mxu0
  %v402 = vadd.f32 0.0, %v401
  %v403 = vpop.f32.mrf.mxu0
  %v404 = vadd.f32 0.0, %v403
  %405 = vmatmul.bf16.gmra.mxu0 %v237
  %v406 = vpop.f32.mrf.mxu0
  %v407 = vadd.f32 0.0, %v406
  %v408 = vpop.f32.mrf.mxu0
  %v409 = vadd.f32 0.0, %v408
  %410 = vmatmul.bf16.gmra.mxu0 %v238
  %v411 = vpop.f32.mrf.mxu0
  %v412 = vadd.f32 0.0, %v411
  %v413 = vpop.f32.mrf.mxu0
  %v414 = vadd.f32 0.0, %v413
  %415 = vmatmul.bf16.gmra.mxu0 %v239
  %v416 = vpop.f32.mrf.mxu0
  %v417 = vadd.f32 0.0, %v416
  %v418 = vpop.f32.mrf.mxu0
  %v419 = vadd.f32 0.0, %v418
  %420 = vmatmul.bf16.gmra.mxu0 %v240
  %v421 = vpop.f32.mrf.mxu0
  %v422 = vadd.f32 0.0, %v421
  %v423 = vpop.f32.mrf.mxu0
  %v424 = vadd.f32 0.0, %v423
  %425 = vmatmul.bf16.gmra.mxu0 %v241
  %v426 = vpop.f32.mrf.mxu0
  %v427 = vadd.f32 0.0, %v426
  %v428 = vpop.f32.mrf.mxu0
  %v429 = vadd.f32 0.0, %v428
  %430 = vmatmul.bf16.gmra.mxu0 %v242
  %v431 = vpop.f32.mrf.mxu0
  %v432 = vadd.f32 0.0, %v431
  %v433 = vpop.f32.mrf.mxu0
  %v434 = vadd.f32 0.0, %v433
  %435 = vmatmul.bf16.gmra.mxu0 %v243
  %v436 = vpop.f32.mrf.mxu0
  %v437 = vadd.f32 0.0, %v436
  %v438 = vpop.f32.mrf.mxu0
  %v439 = vadd.f32 0.0, %v438
  %440 = vmatmul.bf16.gmra.mxu0 %v244
  %v441 = vpop.f32.mrf.mxu0
  %v442 = vadd.f32 0.0, %v441
  %v443 = vpop.f32.mrf.mxu0
  %v444 = vadd.f32 0.0, %v443
  %445 = vmatmul.bf16.gmra.mxu0 %v245
  %v446 = vpop.f32.mrf.mxu0
  %v447 = vadd.f32 0.0, %v446
  %v448 = vpop.f32.mrf.mxu0
  %v449 = vadd.f32 0.0, %v448
  %450 = vmatmul.bf16.gmra.mxu0 %v246
  %v451 = vpop.f32.mrf.mxu0
  %v452 = vadd.f32 0.0, %v451
  %v453 = vpop.f32.mrf.mxu0
  %v454 = vadd.f32 0.0, %v453
  %455 = vmatmul.bf16.gmra.mxu0 %v247
  %v456 = vpop.f32.mrf.mxu0
  %v457 = vadd.f32 0.0, %v456
  %v458 = vpop.f32.mrf.mxu0
  %v459 = vadd.f32 0.0, %v458
  %460 = vmatmul.bf16.gmra.mxu0 %v248
  %v461 = vpop.f32.mrf.mxu0
  %v462 = vadd.f32 0.0, %v461
  %v463 = vpop.f32.mrf.mxu0
  %v464 = vadd.f32 0.0, %v463
  %465 = vmatmul.bf16.gmra.mxu0 %v249
  %v466 = vpop.f32.mrf.mxu0
  %v467 = vadd.f32 0.0, %v466
  %v468 = vpop.f32.mrf.mxu0
  %v469 = vadd.f32 0.0, %v468
  %470 = vmatmul.bf16.gmra.mxu0 %v250
  %v471 = vpop.f32.mrf.mxu0
  %v472 = vadd.f32 0.0, %v471
  %v473 = vpop.f32.mrf.mxu0
  %v474 = vadd.f32 0.0, %v473
  %475 = vmatmul.bf16.gmra.mxu0 %v251
  %v476 = vpop.f32.mrf.mxu0
  %v477 = vadd.f32 0.0, %v476
  %v478 = vpop.f32.mrf.mxu0
  %v479 = vadd.f32 0.0, %v478
  %480 = vmatmul.bf16.gmra.mxu0 %v252
  %v481 = vpop.f32.mrf.mxu0
  %v482 = vadd.f32 0.0, %v481
  %v483 = vpop.f32.mrf.mxu0
  %v484 = vadd.f32 0.0, %v483
  %485 = vmatmul.bf16.gmra.mxu0 %v253
  %v486 = vpop.f32.mrf.mxu0
  %v487 = vadd.f32 0.0, %v486
  %v488 = vpop.f32.mrf.mxu0
  %v489 = vadd.f32 0.0, %v488
  %490 = vmatmul.bf16.gmra.mxu0 %v254
  %v491 = vpop.f32.mrf.mxu0
  %v492 = vadd.f32 0.0, %v491
  %v493 = vpop.f32.mrf.mxu0
  %v494 = vadd.f32 0.0, %v493
  %495 = vmatmul.bf16.gmra.mxu0 %v255
  %v496 = vpop.f32.mrf.mxu0
  %v497 = vadd.f32 0.0, %v496
  %v498 = vpop.f32.mrf.mxu0
  %v499 = vadd.f32 0.0, %v498
  %500 = vmatmul.bf16.gmra.mxu0 %v256
  %v501 = vpop.f32.mrf.mxu0
  %v502 = vadd.f32 0.0, %v501
  %v503 = vpop.f32.mrf.mxu0
  %v504 = vadd.f32 0.0, %v503
  %505 = vdwg.mxu0
  %v506 = vadd.f32 %v347, %v349
  %v507 = vadd.f32 %v506, %v352
  %v508 = vadd.f32 %v507, %v354
  %v509 = vadd.f32 %v508, %v357
  %v510 = vadd.f32 %v509, %v359
  %v511 = vadd.f32 %v510, %v362
  %v512 = vadd.f32 %v511, %v364
  %v513 = vadd.f32 %v512, %v367
  %v514 = vadd.f32 %v513, %v369
  %v515 = vadd.f32 %v514, %v372
  %v516 = vadd.f32 %v515, %v374
  %v517 = vadd.f32 %v516, %v377
  %v518 = vadd.f32 %v517, %v379
  %v519 = vadd.f32 %v518, %v382
  %v520 = vadd.f32 %v519, %v384
  %v521 = vadd.f32 %v520, %v387
  %v522 = vadd.f32 %v521, %v389
  %v523 = vadd.f32 %v522, %v392
  %v524 = vadd.f32 %v523, %v394
  %v525 = vadd.f32 %v524, %v397
  %v526 = vadd.f32 %v525, %v399
  %v527 = vadd.f32 %v526, %v402
  %v528 = vadd.f32 %v527, %v404
  %v529 = vadd.f32 %v528, %v407
  %v530 = vadd.f32 %v529, %v409
  %v531 = vadd.f32 %v530, %v412
  %v532 = vadd.f32 %v531, %v414
  %v533 = vadd.f32 %v532, %v417
  %v534 = vadd.f32 %v533, %v419
  %v535 = vadd.f32 %v534, %v422
  %v536 = vadd.f32 %v535, %v424
  %v537 = vadd.f32 %v536, %v427
  %v538 = vadd.f32 %v537, %v429
  %v539 = vadd.f32 %v538, %v432
  %v540 = vadd.f32 %v539, %v434
  %v541 = vadd.f32 %v540, %v437
  %v542 = vadd.f32 %v541, %v439
  %v543 = vadd.f32 %v542, %v442
  %v544 = vadd.f32 %v543, %v444
  %v545 = vadd.f32 %v544, %v447
  %v546 = vadd.f32 %v545, %v449
  %v547 = vadd.f32 %v546, %v452
  %v548 = vadd.f32 %v547, %v454
  %v549 = vadd.f32 %v548, %v457
  %v550 = vadd.f32 %v549, %v459
  %v551 = vadd.f32 %v550, %v462
  %v552 = vadd.f32 %v551, %v464
  %v553 = vadd.f32 %v552, %v467
  %v554 = vadd.f32 %v553, %v469
  %v555 = vadd.f32 %v554, %v472
  %v556 = vadd.f32 %v555, %v474
  %v557 = vadd.f32 %v556, %v477
  %v558 = vadd.f32 %v557, %v479
  %v559 = vadd.f32 %v558, %v482
  %v560 = vadd.f32 %v559, %v484
  %v561 = vadd.f32 %v560, %v487
  %v562 = vadd.f32 %v561, %v489
  %v563 = vadd.f32 %v562, %v492
  %v564 = vadd.f32 %v563, %v494
  %v565 = vadd.f32 %v564, %v497
  %v566 = vadd.f32 %v565, %v499
  %v567 = vadd.f32 %v566, %v502
  %v568 = vadd.f32 %v567, %v504
  %v569 = vrot.slane %v568, 4
  %v570 = vadd.f32 %v568, %v569
  %v571 = vrot.slane %v570, 2
  %v572 = vadd.f32 %v570, %v571
  %v573 = vrot.slane %v572, 1
  %v574 = vadd.f32 %v572, %v573
  %v575 = vrcp.pop 512.0
  %v576 = vmul.f32 512.0, %v575
  %v577 = vsub.f32 1.0, %v576
  %v578 = vmul.f32 %v575, %v577
  %v579 = vadd.f32 %v575, %v578
  %vm580 = vweird.f32 %v575
  %v581 = vsel %vm580, %v575, %v579
  %v582 = vmul.f32 %v574, %v581
  %v583 = vsub.f32 %v347, %v582
  %v584 = vsub.f32 %v349, %v582
  %v585 = vsub.f32 %v352, %v582
  %v586 = vsub.f32 %v354, %v582
  %v587 = vsub.f32 %v357, %v582
  %v588 = vsub.f32 %v359, %v582
  %v589 = vsub.f32 %v362, %v582
  %v590 = vsub.f32 %v364, %v582
  %v591 = vsub.f32 %v367, %v582
  %v592 = vsub.f32 %v369, %v582
  %v593 = vsub.f32 %v372, %v582
  %v594 = vsub.f32 %v374, %v582
  %v595 = vsub.f32 %v377, %v582
  %v596 = vsub.f32 %v379, %v582
  %v597 = vsub.f32 %v382, %v582
  %v598 = vsub.f32 %v384, %v582
  %v599 = vsub.f32 %v387, %v582
  %v600 = vsub.f32 %v389, %v582
  %v601 = vsub.f32 %v392, %v582
  %v602 = vsub.f32 %v394, %v582
  %v603 = vsub.f32 %v397, %v582
  %v604 = vsub.f32 %v399, %v582
  %v605 = vsub.f32 %v402, %v582
  %v606 = vsub.f32 %v404, %v582
  %v607 = vsub.f32 %v407, %v582
  %v608 = vsub.f32 %v409, %v582
  %v609 = vsub.f32 %v412, %v582
  %v610 = vsub.f32 %v414, %v582
  %v611 = vsub.f32 %v417, %v582
  %v612 = vsub.f32 %v419, %v582
  %v613 = vsub.f32 %v422, %v582
  %v614 = vsub.f32 %v424, %v582
  %v615 = vsub.f32 %v427, %v582
  %v616 = vsub.f32 %v429, %v582
  %v617 = vsub.f32 %v432, %v582
  %v618 = vsub.f32 %v434, %v582
  %v619 = vsub.f32 %v437, %v582
  %v620 = vsub.f32 %v439, %v582
  %v621 = vsub.f32 %v442, %v582
  %v622 = vsub.f32 %v444, %v582
  %v623 = vsub.f32 %v447, %v582
  %v624 = vsub.f32 %v449, %v582
  %v625 = vsub.f32 %v452, %v582
  %v626 = vsub.f32 %v454, %v582
  %v627 = vsub.f32 %v457, %v582
  %v628 = vsub.f32 %v459, %v582
  %v629 = vsub.f32 %v462, %v582
  %v630 = vsub.f32 %v464, %v582
  %v631 = vsub.f32 %v467, %v582
  %v632 = vsub.f32 %v469, %v582
  %v633 = vsub.f32 %v472, %v582
  %v634 = vsub.f32 %v474, %v582
  %v635 = vsub.f32 %v477, %v582
  %v636 = vsub.f32 %v479, %v582
  %v637 = vsub.f32 %v482, %v582
  %v638 = vsub.f32 %v484, %v582
  %v639 = vsub.f32 %v487, %v582
  %v640 = vsub.f32 %v489, %v582
  %v641 = vsub.f32 %v492, %v582
  %v642 = vsub.f32 %v494, %v582
  %v643 = vsub.f32 %v497, %v582
  %v644 = vsub.f32 %v499, %v582
  %v645 = vsub.f32 %v502, %v582
  %v646 = vsub.f32 %v504, %v582
  %v647 = vmul.f32 %v583, %v583
  %v648 = vmul.f32 %v584, %v584
  %v649 = vmul.f32 %v585, %v585
  %v650 = vmul.f32 %v586, %v586
  %v651 = vmul.f32 %v587, %v587
  %v652 = vmul.f32 %v588, %v588
  %v653 = vmul.f32 %v589, %v589
  %v654 = vmul.f32 %v590, %v590
  %v655 = vmul.f32 %v591, %v591
  %v656 = vmul.f32 %v592, %v592
  %v657 = vmul.f32 %v593, %v593
  %v658 = vmul.f32 %v594, %v594
  %v659 = vmul.f32 %v595, %v595
  %v660 = vmul.f32 %v596, %v596
  %v661 = vmul.f32 %v597, %v597
  %v662 = vmul.f32 %v598, %v598
  %v663 = vmul.f32 %v599, %v599
  %v664 = vmul.f32 %v600, %v600
  %v665 = vmul.f32 %v601, %v601
  %v666 = vmul.f32 %v602, %v602
  %v667 = vmul.f32 %v603, %v603
  %v668 = vmul.f32 %v604, %v604
  %v669 = vmul.f32 %v605, %v605
  %v670 = vmul.f32 %v606, %v606
  %v671 = vmul.f32 %v607, %v607
  %v672 = vmul.f32 %v608, %v608
  %v673 = vmul.f32 %v609, %v609
  %v674 = vmul.f32 %v610, %v610
  %v675 = vmul.f32 %v611, %v611
  %v676 = vmul.f32 %v612, %v612
  %v677 = vmul.f32 %v613, %v613
  %v678 = vmul.f32 %v614, %v614
  %v679 = vmul.f32 %v615, %v615
  %v680 = vmul.f32 %v616, %v616
  %v681 = vmul.f32 %v617, %v617
  %v682 = vmul.f32 %v618, %v618
  %v683 = vmul.f32 %v619, %v619
  %v684 = vmul.f32 %v620, %v620
  %v685 = vmul.f32 %v621, %v621
  %v686 = vmul.f32 %v622, %v622
  %v687 = vmul.f32 %v623, %v623
  %v688 = vmul.f32 %v624, %v624
  %v689 = vmul.f32 %v625, %v625
  %v690 = vmul.f32 %v626, %v626
  %v691 = vmul.f32 %v627, %v627
  %v692 = vmul.f32 %v628, %v628
  %v693 = vmul.f32 %v629, %v629
  %v694 = vmul.f32 %v630, %v630
  %v695 = vmul.f32 %v631, %v631
  %v696 = vmul.f32 %v632, %v632
  %v697 = vmul.f32 %v633, %v633
  %v698 = vmul.f32 %v634, %v634
  %v699 = vmul.f32 %v635, %v635
  %v700 = vmul.f32 %v636, %v636
  %v701 = vmul.f32 %v637, %v637
  %v702 = vmul.f32 %v638, %v638
  %v703 = vmul.f32 %v639, %v639
  %v704 = vmul.f32 %v640, %v640
  %v705 = vmul.f32 %v641, %v641
  %v706 = vmul.f32 %v642, %v642
  %v707 = vmul.f32 %v643, %v643
  %v708 = vmul.f32 %v644, %v644
  %v709 = vmul.f32 %v645, %v645
  %v710 = vmul.f32 %v646, %v646
  %v711 = vadd.f32 %v647, %v648
  %v712 = vadd.f32 %v711, %v649
  %v713 = vadd.f32 %v712, %v650
  %v714 = vadd.f32 %v713, %v651
  %v715 = vadd.f32 %v714, %v652
  %v716 = vadd.f32 %v715, %v653
  %v717 = vadd.f32 %v716, %v654
  %v718 = vadd.f32 %v717, %v655
  %v719 = vadd.f32 %v718, %v656
  %v720 = vadd.f32 %v719, %v657
  %v721 = vadd.f32 %v720, %v658
  %v722 = vadd.f32 %v721, %v659
  %v723 = vadd.f32 %v722, %v660
  %v724 = vadd.f32 %v723, %v661
  %v725 = vadd.f32 %v724, %v662
  %v726 = vadd.f32 %v725, %v663
  %v727 = vadd.f32 %v726, %v664
  %v728 = vadd.f32 %v727, %v665
  %v729 = vadd.f32 %v728, %v666
  %v730 = vadd.f32 %v729, %v667
  %v731 = vadd.f32 %v730, %v668
  %v732 = vadd.f32 %v731, %v669
  %v733 = vadd.f32 %v732, %v670
  %v734 = vadd.f32 %v733, %v671
  %v735 = vadd.f32 %v734, %v672
  %v736 = vadd.f32 %v735, %v673
  %v737 = vadd.f32 %v736, %v674
  %v738 = vadd.f32 %v737, %v675
  %v739 = vadd.f32 %v738, %v676
  %v740 = vadd.f32 %v739, %v677
  %v741 = vadd.f32 %v740, %v678
  %v742 = vadd.f32 %v741, %v679
  %v743 = vadd.f32 %v742, %v680
  %v744 = vadd.f32 %v743, %v681
  %v745 = vadd.f32 %v744, %v682
  %v746 = vadd.f32 %v745, %v683
  %v747 = vadd.f32 %v746, %v684
  %v748 = vadd.f32 %v747, %v685
  %v749 = vadd.f32 %v748, %v686
  %v750 = vadd.f32 %v749, %v687
  %v751 = vadd.f32 %v750, %v688
  %v752 = vadd.f32 %v751, %v689
  %v753 = vadd.f32 %v752, %v690
  %v754 = vadd.f32 %v753, %v691
  %v755 = vadd.f32 %v754, %v692
  %v756 = vadd.f32 %v755, %v693
  %v757 = vadd.f32 %v756, %v694
  %v758 = vadd.f32 %v757, %v695
  %v759 = vadd.f32 %v758, %v696
  %v760 = vadd.f32 %v759, %v697
  %v761 = vadd.f32 %v760, %v698
  %v762 = vadd.f32 %v761, %v699
  %v763 = vadd.f32 %v762, %v700
  %v764 = vadd.f32 %v763, %v701
  %v765 = vadd.f32 %v764, %v702
  %v766 = vadd.f32 %v765, %v703
  %v767 = vadd.f32 %v766, %v704
  %v768 = vadd.f32 %v767, %v705
  %v769 = vadd.f32 %v768, %v706
  %v770 = vadd.f32 %v769, %v707
  %v771 = vadd.f32 %v770, %v708
  %v772 = vadd.f32 %v771, %v709
  %v773 = vadd.f32 %v772, %v710
  %v774 = vrot.slane %v773, 4
  %v775 = vadd.f32 %v773, %v774
  %v776 = vrot.slane %v775, 2
  %v777 = vadd.f32 %v775, %v776
  %v778 = vrot.slane %v777, 1
  %v779 = vadd.f32 %v777, %v778
  %v780 = vmul.f32 %v779, %v581
  %v781 = vld [vmem:[%s2] sm:$0x1]
  %v782 = vadd.f32 %v780, 1e-05
  %v783 = vrsqrt.pop %v782
  %v784 = vmul.f32 %v783, %v782
  %v785 = vmul.f32 %v784, %v783
  %v786 = vmul.f32 0.5, %v785
  %v787 = vsub.f32 1.5, %v786
  %v788 = vmul.f32 %v783, %v787
  %vm789 = vweird.f32 %v782
  %vm790 = vweird.f32 %v783
  %vm791 = vmor %vm789, %vm790
  %v792 = vsel %vm791, %v783, %v788
  %v793 = vmul.f32 %v781, %v792
  %v795 = vperm.slane %v793, 0
  %v797 = vmul.f32 %v583, %v795
  %v798 = vmul.f32 %v584, %v795
  %v799 = vmul.f32 %v585, %v795
  %v800 = vmul.f32 %v586, %v795
  %v801 = vmul.f32 %v587, %v795
  %v802 = vmul.f32 %v588, %v795
  %v803 = vmul.f32 %v589, %v795
  %v804 = vmul.f32 %v590, %v795
  %v805 = vmul.f32 %v591, %v795
  %v806 = vmul.f32 %v592, %v795
  %v807 = vmul.f32 %v593, %v795
  %v808 = vmul.f32 %v594, %v795
  %v809 = vmul.f32 %v595, %v795
  %v810 = vmul.f32 %v596, %v795
  %v811 = vmul.f32 %v597, %v795
  %v812 = vmul.f32 %v598, %v795
  %v813 = vmul.f32 %v599, %v795
  %v814 = vmul.f32 %v600, %v795
  %v815 = vmul.f32 %v601, %v795
  %v816 = vmul.f32 %v602, %v795
  %v817 = vmul.f32 %v603, %v795
  %v818 = vmul.f32 %v604, %v795
  %v819 = vmul.f32 %v605, %v795
  %v820 = vmul.f32 %v606, %v795
  %v821 = vmul.f32 %v607, %v795
  %v822 = vmul.f32 %v608, %v795
  %v823 = vmul.f32 %v609, %v795
  %v824 = vmul.f32 %v610, %v795
  %v825 = vmul.f32 %v611, %v795
  %v826 = vmul.f32 %v612, %v795
  %v827 = vmul.f32 %v613, %v795
  %v828 = vmul.f32 %v614, %v795
  %v829 = vmul.f32 %v615, %v795
  %v830 = vmul.f32 %v616, %v795
  %v831 = vmul.f32 %v617, %v795
  %v832 = vmul.f32 %v618, %v795
  %v833 = vmul.f32 %v619, %v795
  %v834 = vmul.f32 %v620, %v795
  %v835 = vmul.f32 %v621, %v795
  %v836 = vmul.f32 %v622, %v795
  %v837 = vmul.f32 %v623, %v795
  %v838 = vmul.f32 %v624, %v795
  %v839 = vmul.f32 %v625, %v795
  %v840 = vmul.f32 %v626, %v795
  %v841 = vmul.f32 %v627, %v795
  %v842 = vmul.f32 %v628, %v795
  %v843 = vmul.f32 %v629, %v795
  %v844 = vmul.f32 %v630, %v795
  %v845 = vmul.f32 %v631, %v795
  %v846 = vmul.f32 %v632, %v795
  %v847 = vmul.f32 %v633, %v795
  %v848 = vmul.f32 %v634, %v795
  %v849 = vmul.f32 %v635, %v795
  %v850 = vmul.f32 %v636, %v795
  %v851 = vmul.f32 %v637, %v795
  %v852 = vmul.f32 %v638, %v795
  %v853 = vmul.f32 %v639, %v795
  %v854 = vmul.f32 %v640, %v795
  %v855 = vmul.f32 %v641, %v795
  %v856 = vmul.f32 %v642, %v795
  %v857 = vmul.f32 %v643, %v795
  %v858 = vmul.f32 %v644, %v795
  %v859 = vmul.f32 %v645, %v795
  %v860 = vmul.f32 %v646, %v795
  %v861 = vld [vmem:[%s3] sm:$0x1]
  %v863 = vperm.slane %v861, 0
  %v865 = vadd.f32 %v797, %v863
  %v866 = vadd.f32 %v798, %v863
  %v867 = vadd.f32 %v799, %v863
  %v868 = vadd.f32 %v800, %v863
  %v869 = vadd.f32 %v801, %v863
  %v870 = vadd.f32 %v802, %v863
  %v871 = vadd.f32 %v803, %v863
  %v872 = vadd.f32 %v804, %v863
  %v873 = vadd.f32 %v805, %v863
  %v874 = vadd.f32 %v806, %v863
  %v875 = vadd.f32 %v807, %v863
  %v876 = vadd.f32 %v808, %v863
  %v877 = vadd.f32 %v809, %v863
  %v878 = vadd.f32 %v810, %v863
  %v879 = vadd.f32 %v811, %v863
  %v880 = vadd.f32 %v812, %v863
  %v881 = vadd.f32 %v813, %v863
  %v882 = vadd.f32 %v814, %v863
  %v883 = vadd.f32 %v815, %v863
  %v884 = vadd.f32 %v816, %v863
  %v885 = vadd.f32 %v817, %v863
  %v886 = vadd.f32 %v818, %v863
  %v887 = vadd.f32 %v819, %v863
  %v888 = vadd.f32 %v820, %v863
  %v889 = vadd.f32 %v821, %v863
  %v890 = vadd.f32 %v822, %v863
  %v891 = vadd.f32 %v823, %v863
  %v892 = vadd.f32 %v824, %v863
  %v893 = vadd.f32 %v825, %v863
  %v894 = vadd.f32 %v826, %v863
  %v895 = vadd.f32 %v827, %v863
  %v896 = vadd.f32 %v828, %v863
  %v897 = vadd.f32 %v829, %v863
  %v898 = vadd.f32 %v830, %v863
  %v899 = vadd.f32 %v831, %v863
  %v900 = vadd.f32 %v832, %v863
  %v901 = vadd.f32 %v833, %v863
  %v902 = vadd.f32 %v834, %v863
  %v903 = vadd.f32 %v835, %v863
  %v904 = vadd.f32 %v836, %v863
  %v905 = vadd.f32 %v837, %v863
  %v906 = vadd.f32 %v838, %v863
  %v907 = vadd.f32 %v839, %v863
  %v908 = vadd.f32 %v840, %v863
  %v909 = vadd.f32 %v841, %v863
  %v910 = vadd.f32 %v842, %v863
  %v911 = vadd.f32 %v843, %v863
  %v912 = vadd.f32 %v844, %v863
  %v913 = vadd.f32 %v845, %v863
  %v914 = vadd.f32 %v846, %v863
  %v915 = vadd.f32 %v847, %v863
  %v916 = vadd.f32 %v848, %v863
  %v917 = vadd.f32 %v849, %v863
  %v918 = vadd.f32 %v850, %v863
  %v919 = vadd.f32 %v851, %v863
  %v920 = vadd.f32 %v852, %v863
  %v921 = vadd.f32 %v853, %v863
  %v922 = vadd.f32 %v854, %v863
  %v923 = vadd.f32 %v855, %v863
  %v924 = vadd.f32 %v856, %v863
  %v925 = vadd.f32 %v857, %v863
  %v926 = vadd.f32 %v858, %v863
  %v927 = vadd.f32 %v859, %v863
  %v928 = vadd.f32 %v860, %v863
  %v929 = vmul.f32 %v865, 0.2
  %v930 = vmul.f32 %v866, 0.2
  %v931 = vmul.f32 %v867, 0.2
  %v932 = vmul.f32 %v868, 0.2
  %v933 = vmul.f32 %v869, 0.2
  %v934 = vmul.f32 %v870, 0.2
  %v935 = vmul.f32 %v871, 0.2
  %v936 = vmul.f32 %v872, 0.2
  %v937 = vmul.f32 %v873, 0.2
  %v938 = vmul.f32 %v874, 0.2
  %v939 = vmul.f32 %v875, 0.2
  %v940 = vmul.f32 %v876, 0.2
  %v941 = vmul.f32 %v877, 0.2
  %v942 = vmul.f32 %v878, 0.2
  %v943 = vmul.f32 %v879, 0.2
  %v944 = vmul.f32 %v880, 0.2
  %v945 = vmul.f32 %v881, 0.2
  %v946 = vmul.f32 %v882, 0.2
  %v947 = vmul.f32 %v883, 0.2
  %v948 = vmul.f32 %v884, 0.2
  %v949 = vmul.f32 %v885, 0.2
  %v950 = vmul.f32 %v886, 0.2
  %v951 = vmul.f32 %v887, 0.2
  %v952 = vmul.f32 %v888, 0.2
  %v953 = vmul.f32 %v889, 0.2
  %v954 = vmul.f32 %v890, 0.2
  %v955 = vmul.f32 %v891, 0.2
  %v956 = vmul.f32 %v892, 0.2
  %v957 = vmul.f32 %v893, 0.2
  %v958 = vmul.f32 %v894, 0.2
  %v959 = vmul.f32 %v895, 0.2
  %v960 = vmul.f32 %v896, 0.2
  %v961 = vmul.f32 %v897, 0.2
  %v962 = vmul.f32 %v898, 0.2
  %v963 = vmul.f32 %v899, 0.2
  %v964 = vmul.f32 %v900, 0.2
  %v965 = vmul.f32 %v901, 0.2
  %v966 = vmul.f32 %v902, 0.2
  %v967 = vmul.f32 %v903, 0.2
  %v968 = vmul.f32 %v904, 0.2
  %v969 = vmul.f32 %v905, 0.2
  %v970 = vmul.f32 %v906, 0.2
  %v971 = vmul.f32 %v907, 0.2
  %v972 = vmul.f32 %v908, 0.2
  %v973 = vmul.f32 %v909, 0.2
  %v974 = vmul.f32 %v910, 0.2
  %v975 = vmul.f32 %v911, 0.2
  %v976 = vmul.f32 %v912, 0.2
  %v977 = vmul.f32 %v913, 0.2
  %v978 = vmul.f32 %v914, 0.2
  %v979 = vmul.f32 %v915, 0.2
  %v980 = vmul.f32 %v916, 0.2
  %v981 = vmul.f32 %v917, 0.2
  %v982 = vmul.f32 %v918, 0.2
  %v983 = vmul.f32 %v919, 0.2
  %v984 = vmul.f32 %v920, 0.2
  %v985 = vmul.f32 %v921, 0.2
  %v986 = vmul.f32 %v922, 0.2
  %v987 = vmul.f32 %v923, 0.2
  %v988 = vmul.f32 %v924, 0.2
  %v989 = vmul.f32 %v925, 0.2
  %v990 = vmul.f32 %v926, 0.2
  %v991 = vmul.f32 %v927, 0.2
  %v992 = vmul.f32 %v928, 0.2
  %v993 = vmax.f32 %v865, %v929
  %v994 = vmax.f32 %v866, %v930
  %v995 = vmax.f32 %v867, %v931
  %v996 = vmax.f32 %v868, %v932
  %v997 = vmax.f32 %v869, %v933
  %v998 = vmax.f32 %v870, %v934
  %v999 = vmax.f32 %v871, %v935
  %v1000 = vmax.f32 %v872, %v936
  %v1001 = vmax.f32 %v873, %v937
  %v1002 = vmax.f32 %v874, %v938
  %v1003 = vmax.f32 %v875, %v939
  %v1004 = vmax.f32 %v876, %v940
  %v1005 = vmax.f32 %v877, %v941
  %v1006 = vmax.f32 %v878, %v942
  %v1007 = vmax.f32 %v879, %v943
  %v1008 = vmax.f32 %v880, %v944
  %v1009 = vmax.f32 %v881, %v945
  %v1010 = vmax.f32 %v882, %v946
  %v1011 = vmax.f32 %v883, %v947
  %v1012 = vmax.f32 %v884, %v948
  %v1013 = vmax.f32 %v885, %v949
  %v1014 = vmax.f32 %v886, %v950
  %v1015 = vmax.f32 %v887, %v951
  %v1016 = vmax.f32 %v888, %v952
  %v1017 = vmax.f32 %v889, %v953
  %v1018 = vmax.f32 %v890, %v954
  %v1019 = vmax.f32 %v891, %v955
  %v1020 = vmax.f32 %v892, %v956
  %v1021 = vmax.f32 %v893, %v957
  %v1022 = vmax.f32 %v894, %v958
  %v1023 = vmax.f32 %v895, %v959
  %v1024 = vmax.f32 %v896, %v960
  %v1025 = vmax.f32 %v897, %v961
  %v1026 = vmax.f32 %v898, %v962
  %v1027 = vmax.f32 %v899, %v963
  %v1028 = vmax.f32 %v900, %v964
  %v1029 = vmax.f32 %v901, %v965
  %v1030 = vmax.f32 %v902, %v966
  %v1031 = vmax.f32 %v903, %v967
  %v1032 = vmax.f32 %v904, %v968
  %v1033 = vmax.f32 %v905, %v969
  %v1034 = vmax.f32 %v906, %v970
  %v1035 = vmax.f32 %v907, %v971
  %v1036 = vmax.f32 %v908, %v972
  %v1037 = vmax.f32 %v909, %v973
  %v1038 = vmax.f32 %v910, %v974
  %v1039 = vmax.f32 %v911, %v975
  %v1040 = vmax.f32 %v912, %v976
  %v1041 = vmax.f32 %v913, %v977
  %v1042 = vmax.f32 %v914, %v978
  %v1043 = vmax.f32 %v915, %v979
  %v1044 = vmax.f32 %v916, %v980
  %v1045 = vmax.f32 %v917, %v981
  %v1046 = vmax.f32 %v918, %v982
  %v1047 = vmax.f32 %v919, %v983
  %v1048 = vmax.f32 %v920, %v984
  %v1049 = vmax.f32 %v921, %v985
  %v1050 = vmax.f32 %v922, %v986
  %v1051 = vmax.f32 %v923, %v987
  %v1052 = vmax.f32 %v924, %v988
  %v1053 = vmax.f32 %v925, %v989
  %v1054 = vmax.f32 %v926, %v990
  %v1055 = vmax.f32 %v927, %v991
  %v1056 = vmax.f32 %v928, %v992
  %v1057 = vpack.c.bf16 %v993, %v993
  %v1058 = vpack.c.bf16 %v994, %v994
  %v1059 = vpack.c.bf16 %v995, %v995
  %v1060 = vpack.c.bf16 %v996, %v996
  %v1061 = vpack.c.bf16 %v997, %v997
  %v1062 = vpack.c.bf16 %v998, %v998
  %v1063 = vpack.c.bf16 %v999, %v999
  %v1064 = vpack.c.bf16 %v1000, %v1000
  %v1065 = vpack.c.bf16 %v1001, %v1001
  %v1066 = vpack.c.bf16 %v1002, %v1002
  %v1067 = vpack.c.bf16 %v1003, %v1003
  %v1068 = vpack.c.bf16 %v1004, %v1004
  %v1069 = vpack.c.bf16 %v1005, %v1005
  %v1070 = vpack.c.bf16 %v1006, %v1006
  %v1071 = vpack.c.bf16 %v1007, %v1007
  %v1072 = vpack.c.bf16 %v1008, %v1008
  %v1073 = vpack.c.bf16 %v1009, %v1009
  %v1074 = vpack.c.bf16 %v1010, %v1010
  %v1075 = vpack.c.bf16 %v1011, %v1011
  %v1076 = vpack.c.bf16 %v1012, %v1012
  %v1077 = vpack.c.bf16 %v1013, %v1013
  %v1078 = vpack.c.bf16 %v1014, %v1014
  %v1079 = vpack.c.bf16 %v1015, %v1015
  %v1080 = vpack.c.bf16 %v1016, %v1016
  %v1081 = vpack.c.bf16 %v1017, %v1017
  %v1082 = vpack.c.bf16 %v1018, %v1018
  %v1083 = vpack.c.bf16 %v1019, %v1019
  %v1084 = vpack.c.bf16 %v1020, %v1020
  %v1085 = vpack.c.bf16 %v1021, %v1021
  %v1086 = vpack.c.bf16 %v1022, %v1022
  %v1087 = vpack.c.bf16 %v1023, %v1023
  %v1088 = vpack.c.bf16 %v1024, %v1024
  %v1089 = vpack.c.bf16 %v1025, %v1025
  %v1090 = vpack.c.bf16 %v1026, %v1026
  %v1091 = vpack.c.bf16 %v1027, %v1027
  %v1092 = vpack.c.bf16 %v1028, %v1028
  %v1093 = vpack.c.bf16 %v1029, %v1029
  %v1094 = vpack.c.bf16 %v1030, %v1030
  %v1095 = vpack.c.bf16 %v1031, %v1031
  %v1096 = vpack.c.bf16 %v1032, %v1032
  %v1097 = vpack.c.bf16 %v1033, %v1033
  %v1098 = vpack.c.bf16 %v1034, %v1034
  %v1099 = vpack.c.bf16 %v1035, %v1035
  %v1100 = vpack.c.bf16 %v1036, %v1036
  %v1101 = vpack.c.bf16 %v1037, %v1037
  %v1102 = vpack.c.bf16 %v1038, %v1038
  %v1103 = vpack.c.bf16 %v1039, %v1039
  %v1104 = vpack.c.bf16 %v1040, %v1040
  %v1105 = vpack.c.bf16 %v1041, %v1041
  %v1106 = vpack.c.bf16 %v1042, %v1042
  %v1107 = vpack.c.bf16 %v1043, %v1043
  %v1108 = vpack.c.bf16 %v1044, %v1044
  %v1109 = vpack.c.bf16 %v1045, %v1045
  %v1110 = vpack.c.bf16 %v1046, %v1046
  %v1111 = vpack.c.bf16 %v1047, %v1047
  %v1112 = vpack.c.bf16 %v1048, %v1048
  %v1113 = vpack.c.bf16 %v1049, %v1049
  %v1114 = vpack.c.bf16 %v1050, %v1050
  %v1115 = vpack.c.bf16 %v1051, %v1051
  %v1116 = vpack.c.bf16 %v1052, %v1052
  %v1117 = vpack.c.bf16 %v1053, %v1053
  %v1118 = vpack.c.bf16 %v1054, %v1054
  %v1119 = vpack.c.bf16 %v1055, %v1055
  %v1120 = vpack.c.bf16 %v1056, %v1056
  %1121 = vst [vmem:[%s4] sm:$0xf] %v1057
  %1122 = vst [vmem:[%s4 + $0x4] sm:$0xf] %v1058
  %1123 = vst [vmem:[%s4 + $0x8] sm:$0xf] %v1059
  %1124 = vst [vmem:[%s4 + $0xc] sm:$0xf] %v1060
  %1125 = vst [vmem:[%s4 + $0x10] sm:$0xf] %v1061
  %1126 = vst [vmem:[%s4 + $0x14] sm:$0xf] %v1062
  %1127 = vst [vmem:[%s4 + $0x18] sm:$0xf] %v1063
  %1128 = vst [vmem:[%s4 + $0x1c] sm:$0xf] %v1064
  %1129 = vst [vmem:[%s4 + $0x20] sm:$0xf] %v1065
  %1130 = vst [vmem:[%s4 + $0x24] sm:$0xf] %v1066
  %1131 = vst [vmem:[%s4 + $0x28] sm:$0xf] %v1067
  %1132 = vst [vmem:[%s4 + $0x2c] sm:$0xf] %v1068
  %1133 = vst [vmem:[%s4 + $0x30] sm:$0xf] %v1069
  %1134 = vst [vmem:[%s4 + $0x34] sm:$0xf] %v1070
  %1135 = vst [vmem:[%s4 + $0x38] sm:$0xf] %v1071
  %1136 = vst [vmem:[%s4 + $0x3c] sm:$0xf] %v1072
  %1137 = vst [vmem:[%s4 + $0x40] sm:$0xf] %v1073
  %1138 = vst [vmem:[%s4 + $0x44] sm:$0xf] %v1074
  %1139 = vst [vmem:[%s4 + $0x48] sm:$0xf] %v1075
  %1140 = vst [vmem:[%s4 + $0x4c] sm:$0xf] %v1076
  %1141 = vst [vmem:[%s4 + $0x50] sm:$0xf] %v1077
  %1142 = vst [vmem:[%s4 + $0x54] sm:$0xf] %v1078
  %1143 = vst [vmem:[%s4 + $0x58] sm:$0xf] %v1079
  %1144 = vst [vmem:[%s4 + $0x5c] sm:$0xf] %v1080
  %1145 = vst [vmem:[%s4 + $0x60] sm:$0xf] %v1081
  %1146 = vst [vmem:[%s4 + $0x64] sm:$0xf] %v1082
  %1147 = vst [vmem:[%s4 + $0x68] sm:$0xf] %v1083
  %1148 = vst [vmem:[%s4 + $0x6c] sm:$0xf] %v1084
  %1149 = vst [vmem:[%s4 + $0x70] sm:$0xf] %v1085
  %1150 = vst [vmem:[%s4 + $0x74] sm:$0xf] %v1086
  %1151 = vst [vmem:[%s4 + $0x78] sm:$0xf] %v1087
  %1152 = vst [vmem:[%s4 + $0x7c] sm:$0xf] %v1088
  %1153 = vst [vmem:[%s4 + $0x80] sm:$0xf] %v1089
  %1154 = vst [vmem:[%s4 + $0x84] sm:$0xf] %v1090
  %1155 = vst [vmem:[%s4 + $0x88] sm:$0xf] %v1091
  %1156 = vst [vmem:[%s4 + $0x8c] sm:$0xf] %v1092
  %1157 = vst [vmem:[%s4 + $0x90] sm:$0xf] %v1093
  %1158 = vst [vmem:[%s4 + $0x94] sm:$0xf] %v1094
  %1159 = vst [vmem:[%s4 + $0x98] sm:$0xf] %v1095
  %1160 = vst [vmem:[%s4 + $0x9c] sm:$0xf] %v1096
  %1161 = vst [vmem:[%s4 + $0xa0] sm:$0xf] %v1097
  %1162 = vst [vmem:[%s4 + $0xa4] sm:$0xf] %v1098
  %1163 = vst [vmem:[%s4 + $0xa8] sm:$0xf] %v1099
  %1164 = vst [vmem:[%s4 + $0xac] sm:$0xf] %v1100
  %1165 = vst [vmem:[%s4 + $0xb0] sm:$0xf] %v1101
  %1166 = vst [vmem:[%s4 + $0xb4] sm:$0xf] %v1102
  %1167 = vst [vmem:[%s4 + $0xb8] sm:$0xf] %v1103
  %1168 = vst [vmem:[%s4 + $0xbc] sm:$0xf] %v1104
  %1169 = vst [vmem:[%s4 + $0xc0] sm:$0xf] %v1105
  %1170 = vst [vmem:[%s4 + $0xc4] sm:$0xf] %v1106
  %1171 = vst [vmem:[%s4 + $0xc8] sm:$0xf] %v1107
  %1172 = vst [vmem:[%s4 + $0xcc] sm:$0xf] %v1108
  %1173 = vst [vmem:[%s4 + $0xd0] sm:$0xf] %v1109
  %1174 = vst [vmem:[%s4 + $0xd4] sm:$0xf] %v1110
  %1175 = vst [vmem:[%s4 + $0xd8] sm:$0xf] %v1111
  %1176 = vst [vmem:[%s4 + $0xdc] sm:$0xf] %v1112
  %1177 = vst [vmem:[%s4 + $0xe0] sm:$0xf] %v1113
  %1178 = vst [vmem:[%s4 + $0xe4] sm:$0xf] %v1114
  %1179 = vst [vmem:[%s4 + $0xe8] sm:$0xf] %v1115
  %1180 = vst [vmem:[%s4 + $0xec] sm:$0xf] %v1116
  %1181 = vst [vmem:[%s4 + $0xf0] sm:$0xf] %v1117
  %1182 = vst [vmem:[%s4 + $0xf4] sm:$0xf] %v1118
  %1183 = vst [vmem:[%s4 + $0xf8] sm:$0xf] %v1119
  %1184 = vst [vmem:[%s4 + $0xfc] sm:$0xf] %v1120
  // Predicated region
  $region18: #{netd_forward.7} parent=0 // pred_check
    _
  $region19: #{netd_forward.7} parent=0 // pred_check_branch
    %1186 = sbr.rel (0) target = $region21
  $region20: #{netd_forward.7} parent=0 // pred_region
    _
  $region21: #{netd_forward.7} parent=0 // pred_fallthru
    _
  // Predicated region
  $region22: #{netd_forward.7} parent=0 // pred_check
    _
  $region23: #{netd_forward.7} parent=0 // pred_check_branch
    %1188 = sbr.rel (0) target = $region25
  $region24: #{netd_forward.7} parent=0 // pred_region
    _
  $region25: #{netd_forward.7} parent=0 // pred_fallthru
    _

// kernel: netd_forward.8
$region0: #{netd_forward.8}
  #allocation0 [shape = 'u32[]', space=smem, size = 0x4, offset = 0x4, fixed_abs, tag = 'smem constant byte address 0x4 - core index']
  #allocation1 [shape = 'u32[72,128]{1,0:T(1,128)}', space=vmem, size = 0x9000, scoped, tag = 'internal scratch']
  %s0 = inlined_call_operand.vmem [shape: bf16[128,256], index: 0, kind: input, shape index: {}]
  %s1 = inlined_call_operand.vmem [shape: bf16[256,128], index: 1, kind: input, shape index: {}]
  %s2 = inlined_call_operand.vmem [shape: f32[1,128], index: 2, kind: input, shape index: {}]
  %s3 = inlined_call_operand.vmem [shape: f32[1,128], index: 3, kind: input, shape index: {}]
  %s4 = inlined_call_operand.vmem [shape: bf16[128,128], index: 4, kind: output, shape index: {}]
  %s5 = sld [smem:[#allocation0]]
  $region26: #{netd_forward.8} parent=0
    _
  %s7 = ssub.s32 1, %s5
  %s8 = scalar_select 0, %s7, %s5
  // Predicated region
  $region2: #{netd_forward.8} parent=0 // pred_check
    _
  $region3: #{netd_forward.8} parent=0 // pred_check_branch
    %10 = sbr.rel (0) target = $region5
  $region4: #{netd_forward.8} parent=0 // pred_region
    _
  $region5: #{netd_forward.8} parent=0 // pred_fallthru
    _
  // Predicated region
  $region6: #{netd_forward.8} parent=0 // pred_check
    _
  $region7: #{netd_forward.8} parent=0 // pred_check_branch
    %12 = sbr.rel (0) target = $region9
  $region8: #{netd_forward.8} parent=0 // pred_region
    _
  $region9: #{netd_forward.8} parent=0 // pred_fallthru
    _
  // Predicated region
  $region10: #{netd_forward.8} parent=0 // pred_check
    _
  $region11: #{netd_forward.8} parent=0 // pred_check_branch
    %14 = sbr.rel (0) target = $region13
  $region12: #{netd_forward.8} parent=0 // pred_region
    _
  $region13: #{netd_forward.8} parent=0 // pred_fallthru
    _
  // Predicated region
  $region14: #{netd_forward.8} parent=0 // pred_check
    _
  $region15: #{netd_forward.8} parent=0 // pred_check_branch
    %16 = sbr.rel (0) target = $region17
  $region16: #{netd_forward.8} parent=0 // pred_region
    _
  $region17: #{netd_forward.8} parent=0 // pred_fallthru
    _
  %v17 = vld [vmem:[%s0] sm:$0xff]
  %v18 = vld [vmem:[%s0 + $0x8] sm:$0xff]
  %v19 = vld [vmem:[%s0 + $0x10] sm:$0xff]
  %v20 = vld [vmem:[%s0 + $0x18] sm:$0xff]
  %v21 = vld [vmem:[%s0 + $0x20] sm:$0xff]
  %v22 = vld [vmem:[%s0 + $0x28] sm:$0xff]
  %v23 = vld [vmem:[%s0 + $0x30] sm:$0xff]
  %v24 = vld [vmem:[%s0 + $0x38] sm:$0xff]
  %v25 = vld [vmem:[%s0 + $0x40] sm:$0xff]
  %v26 = vld [vmem:[%s0 + $0x48] sm:$0xff]
  %v27 = vld [vmem:[%s0 + $0x50] sm:$0xff]
  %v28 = vld [vmem:[%s0 + $0x58] sm:$0xff]
  %v29 = vld [vmem:[%s0 + $0x60] sm:$0xff]
  %v30 = vld [vmem:[%s0 + $0x68] sm:$0xff]
  %v31 = vld [vmem:[%s0 + $0x70] sm:$0xff]
  %v32 = vld [vmem:[%s0 + $0x78] sm:$0xff]
  %v33 = vld [vmem:[%s1] sm:$0xf]
  %v34 = vld [vmem:[%s1 + $0x4] sm:$0xf]
  %v35 = vld [vmem:[%s1 + $0x8] sm:$0xf]
  %v36 = vld [vmem:[%s1 + $0xc] sm:$0xf]
  %v37 = vld [vmem:[%s1 + $0x10] sm:$0xf]
  %v38 = vld [vmem:[%s1 + $0x14] sm:$0xf]
  %v39 = vld [vmem:[%s1 + $0x18] sm:$0xf]
  %v40 = vld [vmem:[%s1 + $0x1c] sm:$0xf]
  %v41 = vld [vmem:[%s1 + $0x20] sm:$0xf]
  %v42 = vld [vmem:[%s1 + $0x24] sm:$0xf]
  %v43 = vld [vmem:[%s1 + $0x28] sm:$0xf]
  %v44 = vld [vmem:[%s1 + $0x2c] sm:$0xf]
  %v45 = vld [vmem:[%s1 + $0x30] sm:$0xf]
  %v46 = vld [vmem:[%s1 + $0x34] sm:$0xf]
  %v47 = vld [vmem:[%s1 + $0x38] sm:$0xf]
  %v48 = vld [vmem:[%s1 + $0x3c] sm:$0xf]
  %v49 = vld [vmem:[%s1 + $0x40] sm:$0xf]
  %v50 = vld [vmem:[%s1 + $0x44] sm:$0xf]
  %v51 = vld [vmem:[%s1 + $0x48] sm:$0xf]
  %v52 = vld [vmem:[%s1 + $0x4c] sm:$0xf]
  %v53 = vld [vmem:[%s1 + $0x50] sm:$0xf]
  %v54 = vld [vmem:[%s1 + $0x54] sm:$0xf]
  %v55 = vld [vmem:[%s1 + $0x58] sm:$0xf]
  %v56 = vld [vmem:[%s1 + $0x5c] sm:$0xf]
  %v57 = vld [vmem:[%s1 + $0x60] sm:$0xf]
  %v58 = vld [vmem:[%s1 + $0x64] sm:$0xf]
  %v59 = vld [vmem:[%s1 + $0x68] sm:$0xf]
  %v60 = vld [vmem:[%s1 + $0x6c] sm:$0xf]
  %v61 = vld [vmem:[%s1 + $0x70] sm:$0xf]
  %v62 = vld [vmem:[%s1 + $0x74] sm:$0xf]
  %v63 = vld [vmem:[%s1 + $0x78] sm:$0xf]
  %v64 = vld [vmem:[%s1 + $0x7c] sm:$0xf]
  %v81 = vunpack.c.l.b16 %v17
  %v82 = vunpack.c.h.b16 %v17
  %v83 = vunpack.c.l.b16 %v18
  %v84 = vunpack.c.h.b16 %v18
  %v85 = vunpack.c.l.b16 %v19
  %v86 = vunpack.c.h.b16 %v19
  %v87 = vunpack.c.l.b16 %v20
  %v88 = vunpack.c.h.b16 %v20
  %v89 = vunpack.c.l.b16 %v21
  %v90 = vunpack.c.h.b16 %v21
  %v91 = vunpack.c.l.b16 %v22
  %v92 = vunpack.c.h.b16 %v22
  %v93 = vunpack.c.l.b16 %v23
  %v94 = vunpack.c.h.b16 %v23
  %v95 = vunpack.c.l.b16 %v24
  %v96 = vunpack.c.h.b16 %v24
  %v97 = vunpack.c.l.b16 %v25
  %v98 = vunpack.c.h.b16 %v25
  %v99 = vunpack.c.l.b16 %v26
  %v100 = vunpack.c.h.b16 %v26
  %v101 = vunpack.c.l.b16 %v27
  %v102 = vunpack.c.h.b16 %v27
  %v103 = vunpack.c.l.b16 %v28
  %v104 = vunpack.c.h.b16 %v28
  %v105 = vunpack.c.l.b16 %v29
  %v106 = vunpack.c.h.b16 %v29
  %v107 = vunpack.c.l.b16 %v30
  %v108 = vunpack.c.h.b16 %v30
  %v109 = vunpack.c.l.b16 %v31
  %v110 = vunpack.c.h.b16 %v31
  %v111 = vunpack.c.l.b16 %v32
  %v112 = vunpack.c.h.b16 %v32
  %v113 = vpack.c.b16 %v83, %v81
  %v114 = vpack.c.b16 %v84, %v82
  %v115 = vpack.c.b16 %v87, %v85
  %v116 = vpack.c.b16 %v88, %v86
  %v117 = vpack.c.b16 %v91, %v89
  %v118 = vpack.c.b16 %v92, %v90
  %v119 = vpack.c.b16 %v95, %v93
  %v120 = vpack.c.b16 %v96, %v94
  %v121 = vpack.c.b16 %v99, %v97
  %v122 = vpack.c.b16 %v100, %v98
  %v123 = vpack.c.b16 %v103, %v101
  %v124 = vpack.c.b16 %v104, %v102
  %v125 = vpack.c.b16 %v107, %v105
  %v126 = vpack.c.b16 %v108, %v106
  %v127 = vpack.c.b16 %v111, %v109
  %v128 = vpack.c.b16 %v112, %v110
  %v177 = vunpack.c.l.b16 %v33
  %v178 = vunpack.c.l.b16 %v34
  %v179 = vunpack.c.l.b16 %v35
  %v180 = vunpack.c.l.b16 %v36
  %v181 = vunpack.c.l.b16 %v37
  %v182 = vunpack.c.l.b16 %v38
  %v183 = vunpack.c.l.b16 %v39
  %v184 = vunpack.c.l.b16 %v40
  %v185 = vunpack.c.l.b16 %v41
  %v186 = vunpack.c.l.b16 %v42
  %v187 = vunpack.c.l.b16 %v43
  %v188 = vunpack.c.l.b16 %v44
  %v189 = vunpack.c.l.b16 %v45
  %v190 = vunpack.c.l.b16 %v46
  %v191 = vunpack.c.l.b16 %v47
  %v192 = vunpack.c.l.b16 %v48
  %v193 = vunpack.c.l.b16 %v49
  %v194 = vunpack.c.l.b16 %v50
  %v195 = vunpack.c.l.b16 %v51
  %v196 = vunpack.c.l.b16 %v52
  %v197 = vunpack.c.l.b16 %v53
  %v198 = vunpack.c.l.b16 %v54
  %v199 = vunpack.c.l.b16 %v55
  %v200 = vunpack.c.l.b16 %v56
  %v201 = vunpack.c.l.b16 %v57
  %v202 = vunpack.c.l.b16 %v58
  %v203 = vunpack.c.l.b16 %v59
  %v204 = vunpack.c.l.b16 %v60
  %v205 = vunpack.c.l.b16 %v61
  %v206 = vunpack.c.l.b16 %v62
  %v207 = vunpack.c.l.b16 %v63
  %v208 = vunpack.c.l.b16 %v64
  %v209 = vpack.c.b16 %v178, %v177
  %v210 = vpack.c.b16 %v180, %v179
  %v211 = vpack.c.b16 %v182, %v181
  %v212 = vpack.c.b16 %v184, %v183
  %v213 = vpack.c.b16 %v186, %v185
  %v214 = vpack.c.b16 %v188, %v187
  %v215 = vpack.c.b16 %v190, %v189
  %v216 = vpack.c.b16 %v192, %v191
  %v217 = vpack.c.b16 %v194, %v193
  %v218 = vpack.c.b16 %v196, %v195
  %v219 = vpack.c.b16 %v198, %v197
  %v220 = vpack.c.b16 %v200, %v199
  %v221 = vpack.c.b16 %v202, %v201
  %v222 = vpack.c.b16 %v204, %v203
  %v223 = vpack.c.b16 %v206, %v205
  %v224 = vpack.c.b16 %v208, %v207
  %241 = vmatpush.bf16.msra.mxu0 %v216
  %242 = vmatpush.bf16.msra.mxu0 %v215
  %243 = vmatpush.bf16.msra.mxu0 %v214
  %244 = vmatpush.bf16.msra.mxu0 %v213
  %245 = vmatpush.bf16.msra.mxu0 %v212
  %246 = vmatpush.bf16.msra.mxu0 %v211
  %247 = vmatpush.bf16.msra.mxu0 %v210
  %248 = vmatpush.bf16.msra.mxu0 %v209
  %249 = vmatmul.bf16.gmra.mxu0 %v113
  %v250 = vpop.f32.mrf.mxu0
  %v251 = vadd.f32 0.0, %v250
  %v252 = vpop.f32.mrf.mxu0
  %v253 = vadd.f32 0.0, %v252
  %254 = vmatmul.bf16.gmra.mxu0 %v115
  %v255 = vpop.f32.mrf.mxu0
  %v256 = vadd.f32 0.0, %v255
  %v257 = vpop.f32.mrf.mxu0
  %v258 = vadd.f32 0.0, %v257
  %259 = vmatmul.bf16.gmra.mxu0 %v117
  %v260 = vpop.f32.mrf.mxu0
  %v261 = vadd.f32 0.0, %v260
  %v262 = vpop.f32.mrf.mxu0
  %v263 = vadd.f32 0.0, %v262
  %264 = vmatmul.bf16.gmra.mxu0 %v119
  %v265 = vpop.f32.mrf.mxu0
  %v266 = vadd.f32 0.0, %v265
  %v267 = vpop.f32.mrf.mxu0
  %v268 = vadd.f32 0.0, %v267
  %269 = vmatmul.bf16.gmra.mxu0 %v121
  %v270 = vpop.f32.mrf.mxu0
  %v271 = vadd.f32 0.0, %v270
  %v272 = vpop.f32.mrf.mxu0
  %v273 = vadd.f32 0.0, %v272
  %274 = vmatmul.bf16.gmra.mxu0 %v123
  %v275 = vpop.f32.mrf.mxu0
  %v276 = vadd.f32 0.0, %v275
  %v277 = vpop.f32.mrf.mxu0
  %v278 = vadd.f32 0.0, %v277
  %279 = vmatmul.bf16.gmra.mxu0 %v125
  %v280 = vpop.f32.mrf.mxu0
  %v281 = vadd.f32 0.0, %v280
  %v282 = vpop.f32.mrf.mxu0
  %v283 = vadd.f32 0.0, %v282
  %284 = vmatmul.bf16.gmra.mxu0 %v127
  %v285 = vpop.f32.mrf.mxu0
  %v286 = vadd.f32 0.0, %v285
  %v287 = vpop.f32.mrf.mxu0
  %v288 = vadd.f32 0.0, %v287
  %289 = vdwg.mxu0
  %290 = vmatpush.bf16.msra.mxu0 %v224
  %291 = vmatpush.bf16.msra.mxu0 %v223
  %292 = vmatpush.bf16.msra.mxu0 %v222
  %293 = vmatpush.bf16.msra.mxu0 %v221
  %294 = vmatpush.bf16.msra.mxu0 %v220
  %295 = vmatpush.bf16.msra.mxu0 %v219
  %296 = vmatpush.bf16.msra.mxu0 %v218
  %297 = vmatpush.bf16.msra.mxu0 %v217
  %298 = vmatmul.bf16.gmra.mxu0 %v114
  %v299 = vpop.f32.mrf.mxu0
  %v300 = vadd.f32 %v251, %v299
  %v301 = vpop.f32.mrf.mxu0
  %v302 = vadd.f32 %v253, %v301
  %303 = vmatmul.bf16.gmra.mxu0 %v116
  %v304 = vpop.f32.mrf.mxu0
  %v305 = vadd.f32 %v256, %v304
  %v306 = vpop.f32.mrf.mxu0
  %v307 = vadd.f32 %v258, %v306
  %308 = vmatmul.bf16.gmra.mxu0 %v118
  %v309 = vpop.f32.mrf.mxu0
  %v310 = vadd.f32 %v261, %v309
  %v311 = vpop.f32.mrf.mxu0
  %v312 = vadd.f32 %v263, %v311
  %313 = vmatmul.bf16.gmra.mxu0 %v120
  %v314 = vpop.f32.mrf.mxu0
  %v315 = vadd.f32 %v266, %v314
  %v316 = vpop.f32.mrf.mxu0
  %v317 = vadd.f32 %v268, %v316
  %318 = vmatmul.bf16.gmra.mxu0 %v122
  %v319 = vpop.f32.mrf.mxu0
  %v320 = vadd.f32 %v271, %v319
  %v321 = vpop.f32.mrf.mxu0
  %v322 = vadd.f32 %v273, %v321
  %323 = vmatmul.bf16.gmra.mxu0 %v124
  %v324 = vpop.f32.mrf.mxu0
  %v325 = vadd.f32 %v276, %v324
  %v326 = vpop.f32.mrf.mxu0
  %v327 = vadd.f32 %v278, %v326
  %328 = vmatmul.bf16.gmra.mxu0 %v126
  %v329 = vpop.f32.mrf.mxu0
  %v330 = vadd.f32 %v281, %v329
  %v331 = vpop.f32.mrf.mxu0
  %v332 = vadd.f32 %v283, %v331
  %333 = vmatmul.bf16.gmra.mxu0 %v128
  %v334 = vpop.f32.mrf.mxu0
  %v335 = vadd.f32 %v286, %v334
  %v336 = vpop.f32.mrf.mxu0
  %v337 = vadd.f32 %v288, %v336
  %338 = vdwg.mxu0
  %v339 = vadd.f32 %v300, %v302
  %v340 = vadd.f32 %v339, %v305
  %v341 = vadd.f32 %v340, %v307
  %v342 = vadd.f32 %v341, %v310
  %v343 = vadd.f32 %v342, %v312
  %v344 = vadd.f32 %v343, %v315
  %v345 = vadd.f32 %v344, %v317
  %v346 = vadd.f32 %v345, %v320
  %v347 = vadd.f32 %v346, %v322
  %v348 = vadd.f32 %v347, %v325
  %v349 = vadd.f32 %v348, %v327
  %v350 = vadd.f32 %v349, %v330
  %v351 = vadd.f32 %v350, %v332
  %v352 = vadd.f32 %v351, %v335
  %v353 = vadd.f32 %v352, %v337
  %v354 = vrot.slane %v353, 4
  %v355 = vadd.f32 %v353, %v354
  %v356 = vrot.slane %v355, 2
  %v357 = vadd.f32 %v355, %v356
  %v358 = vrot.slane %v357, 1
  %v359 = vadd.f32 %v357, %v358
  %v360 = vrcp.pop 128.0
  %v361 = vmul.f32 128.0, %v360
  %v362 = vsub.f32 1.0, %v361
  %v363 = vmul.f32 %v360, %v362
  %v364 = vadd.f32 %v360, %v363
  %vm365 = vweird.f32 %v360
  %v366 = vsel %vm365, %v360, %v364
  %v367 = vmul.f32 %v359, %v366
  %v368 = vsub.f32 %v300, %v367
  %v369 = vsub.f32 %v302, %v367
  %v370 = vsub.f32 %v305, %v367
  %v371 = vsub.f32 %v307, %v367
  %v372 = vsub.f32 %v310, %v367
  %v373 = vsub.f32 %v312, %v367
  %v374 = vsub.f32 %v315, %v367
  %v375 = vsub.f32 %v317, %v367
  %v376 = vsub.f32 %v320, %v367
  %v377 = vsub.f32 %v322, %v367
  %v378 = vsub.f32 %v325, %v367
  %v379 = vsub.f32 %v327, %v367
  %v380 = vsub.f32 %v330, %v367
  %v381 = vsub.f32 %v332, %v367
  %v382 = vsub.f32 %v335, %v367
  %v383 = vsub.f32 %v337, %v367
  %v384 = vmul.f32 %v368, %v368
  %v385 = vmul.f32 %v369, %v369
  %v386 = vmul.f32 %v370, %v370
  %v387 = vmul.f32 %v371, %v371
  %v388 = vmul.f32 %v372, %v372
  %v389 = vmul.f32 %v373, %v373
  %v390 = vmul.f32 %v374, %v374
  %v391 = vmul.f32 %v375, %v375
  %v392 = vmul.f32 %v376, %v376
  %v393 = vmul.f32 %v377, %v377
  %v394 = vmul.f32 %v378, %v378
  %v395 = vmul.f32 %v379, %v379
  %v396 = vmul.f32 %v380, %v380
  %v397 = vmul.f32 %v381, %v381
  %v398 = vmul.f32 %v382, %v382
  %v399 = vmul.f32 %v383, %v383
  %v400 = vadd.f32 %v384, %v385
  %v401 = vadd.f32 %v400, %v386
  %v402 = vadd.f32 %v401, %v387
  %v403 = vadd.f32 %v402, %v388
  %v404 = vadd.f32 %v403, %v389
  %v405 = vadd.f32 %v404, %v390
  %v406 = vadd.f32 %v405, %v391
  %v407 = vadd.f32 %v406, %v392
  %v408 = vadd.f32 %v407, %v393
  %v409 = vadd.f32 %v408, %v394
  %v410 = vadd.f32 %v409, %v395
  %v411 = vadd.f32 %v410, %v396
  %v412 = vadd.f32 %v411, %v397
  %v413 = vadd.f32 %v412, %v398
  %v414 = vadd.f32 %v413, %v399
  %v415 = vrot.slane %v414, 4
  %v416 = vadd.f32 %v414, %v415
  %v417 = vrot.slane %v416, 2
  %v418 = vadd.f32 %v416, %v417
  %v419 = vrot.slane %v418, 1
  %v420 = vadd.f32 %v418, %v419
  %v421 = vmul.f32 %v420, %v366
  %v422 = vld [vmem:[%s2] sm:$0x1]
  %v423 = vadd.f32 %v421, 1e-05
  %v424 = vrsqrt.pop %v423
  %v425 = vmul.f32 %v424, %v423
  %v426 = vmul.f32 %v425, %v424
  %v427 = vmul.f32 0.5, %v426
  %v428 = vsub.f32 1.5, %v427
  %v429 = vmul.f32 %v424, %v428
  %vm430 = vweird.f32 %v423
  %vm431 = vweird.f32 %v424
  %vm432 = vmor %vm430, %vm431
  %v433 = vsel %vm432, %v424, %v429
  %v434 = vmul.f32 %v422, %v433
  %v436 = vperm.slane %v434, 0
  %v438 = vmul.f32 %v368, %v436
  %v439 = vmul.f32 %v369, %v436
  %v440 = vmul.f32 %v370, %v436
  %v441 = vmul.f32 %v371, %v436
  %v442 = vmul.f32 %v372, %v436
  %v443 = vmul.f32 %v373, %v436
  %v444 = vmul.f32 %v374, %v436
  %v445 = vmul.f32 %v375, %v436
  %v446 = vmul.f32 %v376, %v436
  %v447 = vmul.f32 %v377, %v436
  %v448 = vmul.f32 %v378, %v436
  %v449 = vmul.f32 %v379, %v436
  %v450 = vmul.f32 %v380, %v436
  %v451 = vmul.f32 %v381, %v436
  %v452 = vmul.f32 %v382, %v436
  %v453 = vmul.f32 %v383, %v436
  %v454 = vld [vmem:[%s3] sm:$0x1]
  %v456 = vperm.slane %v454, 0
  %v458 = vadd.f32 %v438, %v456
  %v459 = vadd.f32 %v439, %v456
  %v460 = vadd.f32 %v440, %v456
  %v461 = vadd.f32 %v441, %v456
  %v462 = vadd.f32 %v442, %v456
  %v463 = vadd.f32 %v443, %v456
  %v464 = vadd.f32 %v444, %v456
  %v465 = vadd.f32 %v445, %v456
  %v466 = vadd.f32 %v446, %v456
  %v467 = vadd.f32 %v447, %v456
  %v468 = vadd.f32 %v448, %v456
  %v469 = vadd.f32 %v449, %v456
  %v470 = vadd.f32 %v450, %v456
  %v471 = vadd.f32 %v451, %v456
  %v472 = vadd.f32 %v452, %v456
  %v473 = vadd.f32 %v453, %v456
  %v474 = vmul.f32 %v458, 0.2
  %v475 = vmul.f32 %v459, 0.2
  %v476 = vmul.f32 %v460, 0.2
  %v477 = vmul.f32 %v461, 0.2
  %v478 = vmul.f32 %v462, 0.2
  %v479 = vmul.f32 %v463, 0.2
  %v480 = vmul.f32 %v464, 0.2
  %v481 = vmul.f32 %v465, 0.2
  %v482 = vmul.f32 %v466, 0.2
  %v483 = vmul.f32 %v467, 0.2
  %v484 = vmul.f32 %v468, 0.2
  %v485 = vmul.f32 %v469, 0.2
  %v486 = vmul.f32 %v470, 0.2
  %v487 = vmul.f32 %v471, 0.2
  %v488 = vmul.f32 %v472, 0.2
  %v489 = vmul.f32 %v473, 0.2
  %v490 = vmax.f32 %v458, %v474
  %v491 = vmax.f32 %v459, %v475
  %v492 = vmax.f32 %v460, %v476
  %v493 = vmax.f32 %v461, %v477
  %v494 = vmax.f32 %v462, %v478
  %v495 = vmax.f32 %v463, %v479
  %v496 = vmax.f32 %v464, %v480
  %v497 = vmax.f32 %v465, %v481
  %v498 = vmax.f32 %v466, %v482
  %v499 = vmax.f32 %v467, %v483
  %v500 = vmax.f32 %v468, %v484
  %v501 = vmax.f32 %v469, %v485
  %v502 = vmax.f32 %v470, %v486
  %v503 = vmax.f32 %v471, %v487
  %v504 = vmax.f32 %v472, %v488
  %v505 = vmax.f32 %v473, %v489
  %v506 = vpack.c.bf16 %v490, %v490
  %v507 = vpack.c.bf16 %v491, %v491
  %v508 = vpack.c.bf16 %v492, %v492
  %v509 = vpack.c.bf16 %v493, %v493
  %v510 = vpack.c.bf16 %v494, %v494
  %v511 = vpack.c.bf16 %v495, %v495
  %v512 = vpack.c.bf16 %v496, %v496
  %v513 = vpack.c.bf16 %v497, %v497
  %v514 = vpack.c.bf16 %v498, %v498
  %v515 = vpack.c.bf16 %v499, %v499
  %v516 = vpack.c.bf16 %v500, %v500
  %v517 = vpack.c.bf16 %v501, %v501
  %v518 = vpack.c.bf16 %v502, %v502
  %v519 = vpack.c.bf16 %v503, %v503
  %v520 = vpack.c.bf16 %v504, %v504
  %v521 = vpack.c.bf16 %v505, %v505
  %522 = vst [vmem:[%s4] sm:$0xf] %v506
  %523 = vst [vmem:[%s4 + $0x4] sm:$0xf] %v507
  %524 = vst [vmem:[%s4 + $0x8] sm:$0xf] %v508
  %525 = vst [vmem:[%s4 + $0xc] sm:$0xf] %v509
  %526 = vst [vmem:[%s4 + $0x10] sm:$0xf] %v510
  %527 = vst [vmem:[%s4 + $0x14] sm:$0xf] %v511
  %528 = vst [vmem:[%s4 + $0x18] sm:$0xf] %v512
  %529 = vst [vmem:[%s4 + $0x1c] sm:$0xf] %v513
  %530 = vst [vmem:[%s4 + $0x20] sm:$0xf] %v514
  %531 = vst [vmem:[%s4 + $0x24] sm:$0xf] %v515
  %532 = vst [vmem:[%s4 + $0x28] sm:$0xf] %v516
  %533 = vst [vmem:[%s4 + $0x2c] sm:$0xf] %v517
  %534 = vst [vmem:[%s4 + $0x30] sm:$0xf] %v518
  %535 = vst [vmem:[%s4 + $0x34] sm:$0xf] %v519
  %536 = vst [vmem:[%s4 + $0x38] sm:$0xf] %v520
  %537 = vst [vmem:[%s4 + $0x3c] sm:$0xf] %v521
  // Predicated region
  $region18: #{netd_forward.8} parent=0 // pred_check
    _
  $region19: #{netd_forward.8} parent=0 // pred_check_branch
    %539 = sbr.rel (0) target = $region21
  $region20: #{netd_forward.8} parent=0 // pred_region
    _
  $region21: #{netd_forward.8} parent=0 // pred_fallthru
    _
  // Predicated region
  $region22: #{netd_forward.8} parent=0 // pred_check
    _
  $region23: #{netd_forward.8} parent=0 // pred_check_branch
    %541 = sbr.rel (0) target = $region25
  $region24: #{netd_forward.8} parent=0 // pred_region
    _
  $region25: #{netd_forward.8} parent=0 // pred_fallthru
    _

// kernel: netd_forward.9
$region0: #{netd_forward.9}
  #allocation0 [shape = 'u32[]', space=smem, size = 0x4, offset = 0x4, fixed_abs, tag = 'smem constant byte address 0x4 - core index']
  #allocation1 [shape = 'u32[72,128]{1,0:T(1,128)}', space=vmem, size = 0x9000, scoped, tag = 'internal scratch']
  %s0 = inlined_call_operand.vmem [shape: bf16[128,512], index: 0, kind: input, shape index: {}]
  %s1 = inlined_call_operand.vmem [shape: bf16[512,128], index: 1, kind: input, shape index: {}]
  %s2 = inlined_call_operand.vmem [shape: f32[1,128], index: 2, kind: input, shape index: {}]
  %s3 = inlined_call_operand.vmem [shape: f32[1,128], index: 3, kind: input, shape index: {}]
  %s4 = inlined_call_operand.vmem [shape: bf16[2048,128], index: 4, kind: input, shape index: {}]
  %s5 = inlined_call_operand.vmem [shape: f32[8,128], index: 5, kind: output, shape index: {}]
  %s6 = sld [smem:[#allocation0]]
  $region30: #{netd_forward.9} parent=0
    _
  %s8 = ssub.s32 1, %s6
  %s9 = scalar_select 0, %s8, %s6
  // Predicated region
  $region2: #{netd_forward.9} parent=0 // pred_check
    _
  $region3: #{netd_forward.9} parent=0 // pred_check_branch
    %11 = sbr.rel (0) target = $region5
  $region4: #{netd_forward.9} parent=0 // pred_region
    _
  $region5: #{netd_forward.9} parent=0 // pred_fallthru
    _
  // Predicated region
  $region6: #{netd_forward.9} parent=0 // pred_check
    _
  $region7: #{netd_forward.9} parent=0 // pred_check_branch
    %13 = sbr.rel (0) target = $region9
  $region8: #{netd_forward.9} parent=0 // pred_region
    _
  $region9: #{netd_forward.9} parent=0 // pred_fallthru
    _
  // Predicated region
  $region10: #{netd_forward.9} parent=0 // pred_check
    _
  $region11: #{netd_forward.9} parent=0 // pred_check_branch
    %15 = sbr.rel (0) target = $region13
  $region12: #{netd_forward.9} parent=0 // pred_region
    _
  $region13: #{netd_forward.9} parent=0 // pred_fallthru
    _
  // Predicated region
  $region14: #{netd_forward.9} parent=0 // pred_check
    _
  $region15: #{netd_forward.9} parent=0 // pred_check_branch
    %17 = sbr.rel (0) target = $region17
  $region16: #{netd_forward.9} parent=0 // pred_region
    _
  $region17: #{netd_forward.9} parent=0 // pred_fallthru
    _
  // Predicated region
  $region18: #{netd_forward.9} parent=0 // pred_check
    _
  $region19: #{netd_forward.9} parent=0 // pred_check_branch
    %19 = sbr.rel (0) target = $region21
  $region20: #{netd_forward.9} parent=0 // pred_region
    _
  $region21: #{netd_forward.9} parent=0 // pred_fallthru
    _
  %v20 = vld [vmem:[%s0] sm:$0xff]
  %v21 = vld [vmem:[%s0 + $0x8] sm:$0xff]
  %v22 = vld [vmem:[%s0 + $0x10] sm:$0xff]
  %v23 = vld [vmem:[%s0 + $0x18] sm:$0xff]
  %v24 = vld [vmem:[%s0 + $0x20] sm:$0xff]
  %v25 = vld [vmem:[%s0 + $0x28] sm:$0xff]
  %v26 = vld [vmem:[%s0 + $0x30] sm:$0xff]
  %v27 = vld [vmem:[%s0 + $0x38] sm:$0xff]
  %v28 = vld [vmem:[%s0 + $0x40] sm:$0xff]
  %v29 = vld [vmem:[%s0 + $0x48] sm:$0xff]
  %v30 = vld [vmem:[%s0 + $0x50] sm:$0xff]
  %v31 = vld [vmem:[%s0 + $0x58] sm:$0xff]
  %v32 = vld [vmem:[%s0 + $0x60] sm:$0xff]
  %v33 = vld [vmem:[%s0 + $0x68] sm:$0xff]
  %v34 = vld [vmem:[%s0 + $0x70] sm:$0xff]
  %v35 = vld [vmem:[%s0 + $0x78] sm:$0xff]
  %v36 = vld [vmem:[%s0 + $0x80] sm:$0xff]
  %v37 = vld [vmem:[%s0 + $0x88] sm:$0xff]
  %v38 = vld [vmem:[%s0 + $0x90] sm:$0xff]
  %v39 = vld [vmem:[%s0 + $0x98] sm:$0xff]
  %v40 = vld [vmem:[%s0 + $0xa0] sm:$0xff]
  %v41 = vld [vmem:[%s0 + $0xa8] sm:$0xff]
  %v42 = vld [vmem:[%s0 + $0xb0] sm:$0xff]
  %v43 = vld [vmem:[%s0 + $0xb8] sm:$0xff]
  %v44 = vld [vmem:[%s0 + $0xc0] sm:$0xff]
  %v45 = vld [vmem:[%s0 + $0xc8] sm:$0xff]
  %v46 = vld [vmem:[%s0 + $0xd0] sm:$0xff]
  %v47 = vld [vmem:[%s0 + $0xd8] sm:$0xff]
  %v48 = vld [vmem:[%s0 + $0xe0] sm:$0xff]
  %v49 = vld [vmem:[%s0 + $0xe8] sm:$0xff]
  %v50 = vld [vmem:[%s0 + $0xf0] sm:$0xff]
  %v51 = vld [vmem:[%s0 + $0xf8] sm:$0xff]
  %v52 = vld [vmem:[%s1] sm:$0xf]
  %v53 = vld [vmem:[%s1 + $0x4] sm:$0xf]
  %v54 = vld [vmem:[%s1 + $0x8] sm:$0xf]
  %v55 = vld [vmem:[%s1 + $0xc] sm:$0xf]
  %v56 = vld [vmem:[%s1 + $0x10] sm:$0xf]
  %v57 = vld [vmem:[%s1 + $0x14] sm:$0xf]
  %v58 = vld [vmem:[%s1 + $0x18] sm:$0xf]
  %v59 = vld [vmem:[%s1 + $0x1c] sm:$0xf]
  %v60 = vld [vmem:[%s1 + $0x20] sm:$0xf]
  %v61 = vld [vmem:[%s1 + $0x24] sm:$0xf]
  %v62 = vld [vmem:[%s1 + $0x28] sm:$0xf]
  %v63 = vld [vmem:[%s1 + $0x2c] sm:$0xf]
  %v64 = vld [vmem:[%s1 + $0x30] sm:$0xf]
  %v65 = vld [vmem:[%s1 + $0x34] sm:$0xf]
  %v66 = vld [vmem:[%s1 + $0x38] sm:$0xf]
  %v67 = vld [vmem:[%s1 + $0x3c] sm:$0xf]
  %v68 = vld [vmem:[%s1 + $0x40] sm:$0xf]
  %v69 = vld [vmem:[%s1 + $0x44] sm:$0xf]
  %v70 = vld [vmem:[%s1 + $0x48] sm:$0xf]
  %v71 = vld [vmem:[%s1 + $0x4c] sm:$0xf]
  %v72 = vld [vmem:[%s1 + $0x50] sm:$0xf]
  %v73 = vld [vmem:[%s1 + $0x54] sm:$0xf]
  %v74 = vld [vmem:[%s1 + $0x58] sm:$0xf]
  %v75 = vld [vmem:[%s1 + $0x5c] sm:$0xf]
  %v76 = vld [vmem:[%s1 + $0x60] sm:$0xf]
  %v77 = vld [vmem:[%s1 + $0x64] sm:$0xf]
  %v78 = vld [vmem:[%s1 + $0x68] sm:$0xf]
  %v79 = vld [vmem:[%s1 + $0x6c] sm:$0xf]
  %v80 = vld [vmem:[%s1 + $0x70] sm:$0xf]
  %v81 = vld [vmem:[%s1 + $0x74] sm:$0xf]
  %v82 = vld [vmem:[%s1 + $0x78] sm:$0xf]
  %v83 = vld [vmem:[%s1 + $0x7c] sm:$0xf]
  %v84 = vld [vmem:[%s1 + $0x80] sm:$0xf]
  %v85 = vld [vmem:[%s1 + $0x84] sm:$0xf]
  %v86 = vld [vmem:[%s1 + $0x88] sm:$0xf]
  %v87 = vld [vmem:[%s1 + $0x8c] sm:$0xf]
  %v88 = vld [vmem:[%s1 + $0x90] sm:$0xf]
  %v89 = vld [vmem:[%s1 + $0x94] sm:$0xf]
  %v90 = vld [vmem:[%s1 + $0x98] sm:$0xf]
  %v91 = vld [vmem:[%s1 + $0x9c] sm:$0xf]
  %v92 = vld [vmem:[%s1 + $0xa0] sm:$0xf]
  %v93 = vld [vmem:[%s1 + $0xa4] sm:$0xf]
  %v94 = vld [vmem:[%s1 + $0xa8] sm:$0xf]
  %v95 = vld [vmem:[%s1 + $0xac] sm:$0xf]
  %v96 = vld [vmem:[%s1 + $0xb0] sm:$0xf]
  %v97 = vld [vmem:[%s1 + $0xb4] sm:$0xf]
  %v98 = vld [vmem:[%s1 + $0xb8] sm:$0xf]
  %v99 = vld [vmem:[%s1 + $0xbc] sm:$0xf]
  %v100 = vld [vmem:[%s1 + $0xc0] sm:$0xf]
  %v101 = vld [vmem:[%s1 + $0xc4] sm:$0xf]
  %v102 = vld [vmem:[%s1 + $0xc8] sm:$0xf]
  %v103 = vld [vmem:[%s1 + $0xcc] sm:$0xf]
  %v104 = vld [vmem:[%s1 + $0xd0] sm:$0xf]
  %v105 = vld [vmem:[%s1 + $0xd4] sm:$0xf]
  %v106 = vld [vmem:[%s1 + $0xd8] sm:$0xf]
  %v107 = vld [vmem:[%s1 + $0xdc] sm:$0xf]
  %v108 = vld [vmem:[%s1 + $0xe0] sm:$0xf]
  %v109 = vld [vmem:[%s1 + $0xe4] sm:$0xf]
  %v110 = vld [vmem:[%s1 + $0xe8] sm:$0xf]
  %v111 = vld [vmem:[%s1 + $0xec] sm:$0xf]
  %v112 = vld [vmem:[%s1 + $0xf0] sm:$0xf]
  %v113 = vld [vmem:[%s1 + $0xf4] sm:$0xf]
  %v114 = vld [vmem:[%s1 + $0xf8] sm:$0xf]
  %v115 = vld [vmem:[%s1 + $0xfc] sm:$0xf]
  %v148 = vunpack.c.l.b16 %v20
  %v149 = vunpack.c.h.b16 %v20
  %v150 = vunpack.c.l.b16 %v21
  %v151 = vunpack.c.h.b16 %v21
  %v152 = vunpack.c.l.b16 %v22
  %v153 = vunpack.c.h.b16 %v22
  %v154 = vunpack.c.l.b16 %v23
  %v155 = vunpack.c.h.b16 %v23
  %v156 = vunpack.c.l.b16 %v24
  %v157 = vunpack.c.h.b16 %v24
  %v158 = vunpack.c.l.b16 %v25
  %v159 = vunpack.c.h.b16 %v25
  %v160 = vunpack.c.l.b16 %v26
  %v161 = vunpack.c.h.b16 %v26
  %v162 = vunpack.c.l.b16 %v27
  %v163 = vunpack.c.h.b16 %v27
  %v164 = vunpack.c.l.b16 %v28
  %v165 = vunpack.c.h.b16 %v28
  %v166 = vunpack.c.l.b16 %v29
  %v167 = vunpack.c.h.b16 %v29
  %v168 = vunpack.c.l.b16 %v30
  %v169 = vunpack.c.h.b16 %v30
  %v170 = vunpack.c.l.b16 %v31
  %v171 = vunpack.c.h.b16 %v31
  %v172 = vunpack.c.l.b16 %v32
  %v173 = vunpack.c.h.b16 %v32
  %v174 = vunpack.c.l.b16 %v33
  %v175 = vunpack.c.h.b16 %v33
  %v176 = vunpack.c.l.b16 %v34
  %v177 = vunpack.c.h.b16 %v34
  %v178 = vunpack.c.l.b16 %v35
  %v179 = vunpack.c.h.b16 %v35
  %v180 = vunpack.c.l.b16 %v36
  %v181 = vunpack.c.h.b16 %v36
  %v182 = vunpack.c.l.b16 %v37
  %v183 = vunpack.c.h.b16 %v37
  %v184 = vunpack.c.l.b16 %v38
  %v185 = vunpack.c.h.b16 %v38
  %v186 = vunpack.c.l.b16 %v39
  %v187 = vunpack.c.h.b16 %v39
  %v188 = vunpack.c.l.b16 %v40
  %v189 = vunpack.c.h.b16 %v40
  %v190 = vunpack.c.l.b16 %v41
  %v191 = vunpack.c.h.b16 %v41
  %v192 = vunpack.c.l.b16 %v42
  %v193 = vunpack.c.h.b16 %v42
  %v194 = vunpack.c.l.b16 %v43
  %v195 = vunpack.c.h.b16 %v43
  %v196 = vunpack.c.l.b16 %v44
  %v197 = vunpack.c.h.b16 %v44
  %v198 = vunpack.c.l.b16 %v45
  %v199 = vunpack.c.h.b16 %v45
  %v200 = vunpack.c.l.b16 %v46
  %v201 = vunpack.c.h.b16 %v46
  %v202 = vunpack.c.l.b16 %v47
  %v203 = vunpack.c.h.b16 %v47
  %v204 = vunpack.c.l.b16 %v48
  %v205 = vunpack.c.h.b16 %v48
  %v206 = vunpack.c.l.b16 %v49
  %v207 = vunpack.c.h.b16 %v49
  %v208 = vunpack.c.l.b16 %v50
  %v209 = vunpack.c.h.b16 %v50
  %v210 = vunpack.c.l.b16 %v51
  %v211 = vunpack.c.h.b16 %v51
  %v212 = vpack.c.b16 %v152, %v148
  %v213 = vpack.c.b16 %v153, %v149
  %v214 = vpack.c.b16 %v154, %v150
  %v215 = vpack.c.b16 %v155, %v151
  %v216 = vpack.c.b16 %v160, %v156
  %v217 = vpack.c.b16 %v161, %v157
  %v218 = vpack.c.b16 %v162, %v158
  %v219 = vpack.c.b16 %v163, %v159
  %v220 = vpack.c.b16 %v168, %v164
  %v221 = vpack.c.b16 %v169, %v165
  %v222 = vpack.c.b16 %v170, %v166
  %v223 = vpack.c.b16 %v171, %v167
  %v224 = vpack.c.b16 %v176, %v172
  %v225 = vpack.c.b16 %v177, %v173
  %v226 = vpack.c.b16 %v178, %v174
  %v227 = vpack.c.b16 %v179, %v175
  %v228 = vpack.c.b16 %v184, %v180
  %v229 = vpack.c.b16 %v185, %v181
  %v230 = vpack.c.b16 %v186, %v182
  %v231 = vpack.c.b16 %v187, %v183
  %v232 = vpack.c.b16 %v192, %v188
  %v233 = vpack.c.b16 %v193, %v189
  %v234 = vpack.c.b16 %v194, %v190
  %v235 = vpack.c.b16 %v195, %v191
  %v236 = vpack.c.b16 %v200, %v196
  %v237 = vpack.c.b16 %v201, %v197
  %v238 = vpack.c.b16 %v202, %v198
  %v239 = vpack.c.b16 %v203, %v199
  %v240 = vpack.c.b16 %v208, %v204
  %v241 = vpack.c.b16 %v209, %v205
  %v242 = vpack.c.b16 %v210, %v206
  %v243 = vpack.c.b16 %v211, %v207
  %v340 = vunpack.c.l.b16 %v52
  %v341 = vunpack.c.l.b16 %v53
  %v342 = vunpack.c.l.b16 %v54
  %v343 = vunpack.c.l.b16 %v55
  %v344 = vunpack.c.l.b16 %v56
  %v345 = vunpack.c.l.b16 %v57
  %v346 = vunpack.c.l.b16 %v58
  %v347 = vunpack.c.l.b16 %v59
  %v348 = vunpack.c.l.b16 %v60
  %v349 = vunpack.c.l.b16 %v61
  %v350 = vunpack.c.l.b16 %v62
  %v351 = vunpack.c.l.b16 %v63
  %v352 = vunpack.c.l.b16 %v64
  %v353 = vunpack.c.l.b16 %v65
  %v354 = vunpack.c.l.b16 %v66
  %v355 = vunpack.c.l.b16 %v67
  %v356 = vunpack.c.l.b16 %v68
  %v357 = vunpack.c.l.b16 %v69
  %v358 = vunpack.c.l.b16 %v70
  %v359 = vunpack.c.l.b16 %v71
  %v360 = vunpack.c.l.b16 %v72
  %v361 = vunpack.c.l.b16 %v73
  %v362 = vunpack.c.l.b16 %v74
  %v363 = vunpack.c.l.b16 %v75
  %v364 = vunpack.c.l.b16 %v76
  %v365 = vunpack.c.l.b16 %v77
  %v366 = vunpack.c.l.b16 %v78
  %v367 = vunpack.c.l.b16 %v79
  %v368 = vunpack.c.l.b16 %v80
  %v369 = vunpack.c.l.b16 %v81
  %v370 = vunpack.c.l.b16 %v82
  %v371 = vunpack.c.l.b16 %v83
  %v372 = vunpack.c.l.b16 %v84
  %v373 = vunpack.c.l.b16 %v85
  %v374 = vunpack.c.l.b16 %v86
  %v375 = vunpack.c.l.b16 %v87
  %v376 = vunpack.c.l.b16 %v88
  %v377 = vunpack.c.l.b16 %v89
  %v378 = vunpack.c.l.b16 %v90
  %v379 = vunpack.c.l.b16 %v91
  %v380 = vunpack.c.l.b16 %v92
  %v381 = vunpack.c.l.b16 %v93
  %v382 = vunpack.c.l.b16 %v94
  %v383 = vunpack.c.l.b16 %v95
  %v384 = vunpack.c.l.b16 %v96
  %v385 = vunpack.c.l.b16 %v97
  %v386 = vunpack.c.l.b16 %v98
  %v387 = vunpack.c.l.b16 %v99
  %v388 = vunpack.c.l.b16 %v100
  %v389 = vunpack.c.l.b16 %v101
  %v390 = vunpack.c.l.b16 %v102
  %v391 = vunpack.c.l.b16 %v103
  %v392 = vunpack.c.l.b16 %v104
  %v393 = vunpack.c.l.b16 %v105
  %v394 = vunpack.c.l.b16 %v106
  %v395 = vunpack.c.l.b16 %v107
  %v396 = vunpack.c.l.b16 %v108
  %v397 = vunpack.c.l.b16 %v109
  %v398 = vunpack.c.l.b16 %v110
  %v399 = vunpack.c.l.b16 %v111
  %v400 = vunpack.c.l.b16 %v112
  %v401 = vunpack.c.l.b16 %v113
  %v402 = vunpack.c.l.b16 %v114
  %v403 = vunpack.c.l.b16 %v115
  %v404 = vpack.c.b16 %v341, %v340
  %v405 = vpack.c.b16 %v343, %v342
  %v406 = vpack.c.b16 %v345, %v344
  %v407 = vpack.c.b16 %v347, %v346
  %v408 = vpack.c.b16 %v349, %v348
  %v409 = vpack.c.b16 %v351, %v350
  %v410 = vpack.c.b16 %v353, %v352
  %v411 = vpack.c.b16 %v355, %v354
  %v412 = vpack.c.b16 %v357, %v356
  %v413 = vpack.c.b16 %v359, %v358
  %v414 = vpack.c.b16 %v361, %v360
  %v415 = vpack.c.b16 %v363, %v362
  %v416 = vpack.c.b16 %v365, %v364
  %v417 = vpack.c.b16 %v367, %v366
  %v418 = vpack.c.b16 %v369, %v368
  %v419 = vpack.c.b16 %v371, %v370
  %v420 = vpack.c.b16 %v373, %v372
  %v421 = vpack.c.b16 %v375, %v374
  %v422 = vpack.c.b16 %v377, %v376
  %v423 = vpack.c.b16 %v379, %v378
  %v424 = vpack.c.b16 %v381, %v380
  %v425 = vpack.c.b16 %v383, %v382
  %v426 = vpack.c.b16 %v385, %v384
  %v427 = vpack.c.b16 %v387, %v386
  %v428 = vpack.c.b16 %v389, %v388
  %v429 = vpack.c.b16 %v391, %v390
  %v430 = vpack.c.b16 %v393, %v392
  %v431 = vpack.c.b16 %v395, %v394
  %v432 = vpack.c.b16 %v397, %v396
  %v433 = vpack.c.b16 %v399, %v398
  %v434 = vpack.c.b16 %v401, %v400
  %v435 = vpack.c.b16 %v403, %v402
  %468 = vmatpush.bf16.msra.mxu0 %v411
  %469 = vmatpush.bf16.msra.mxu0 %v410
  %470 = vmatpush.bf16.msra.mxu0 %v409
  %471 = vmatpush.bf16.msra.mxu0 %v408
  %472 = vmatpush.bf16.msra.mxu0 %v407
  %473 = vmatpush.bf16.msra.mxu0 %v406
  %474 = vmatpush.bf16.msra.mxu0 %v405
  %475 = vmatpush.bf16.msra.mxu0 %v404
  %476 = vmatmul.bf16.gmra.mxu0 %v212
  %v477 = vpop.f32.mrf.mxu0
  %v478 = vadd.f32 0.0, %v477
  %v479 = vpop.f32.mrf.mxu0
  %v480 = vadd.f32 0.0, %v479
  %481 = vmatmul.bf16.gmra.mxu0 %v216
  %v482 = vpop.f32.mrf.mxu0
  %v483 = vadd.f32 0.0, %v482
  %v484 = vpop.f32.mrf.mxu0
  %v485 = vadd.f32 0.0, %v484
  %486 = vmatmul.bf16.gmra.mxu0 %v220
  %v487 = vpop.f32.mrf.mxu0
  %v488 = vadd.f32 0.0, %v487
  %v489 = vpop.f32.mrf.mxu0
  %v490 = vadd.f32 0.0, %v489
  %491 = vmatmul.bf16.gmra.mxu0 %v224
  %v492 = vpop.f32.mrf.mxu0
  %v493 = vadd.f32 0.0, %v492
  %v494 = vpop.f32.mrf.mxu0
  %v495 = vadd.f32 0.0, %v494
  %496 = vmatmul.bf16.gmra.mxu0 %v228
  %v497 = vpop.f32.mrf.mxu0
  %v498 = vadd.f32 0.0, %v497
  %v499 = vpop.f32.mrf.mxu0
  %v500 = vadd.f32 0.0, %v499
  %501 = vmatmul.bf16.gmra.mxu0 %v232
  %v502 = vpop.f32.mrf.mxu0
  %v503 = vadd.f32 0.0, %v502
  %v504 = vpop.f32.mrf.mxu0
  %v505 = vadd.f32 0.0, %v504
  %506 = vmatmul.bf16.gmra.mxu0 %v236
  %v507 = vpop.f32.mrf.mxu0
  %v508 = vadd.f32 0.0, %v507
  %v509 = vpop.f32.mrf.mxu0
  %v510 = vadd.f32 0.0, %v509
  %511 = vmatmul.bf16.gmra.mxu0 %v240
  %v512 = vpop.f32.mrf.mxu0
  %v513 = vadd.f32 0.0, %v512
  %v514 = vpop.f32.mrf.mxu0
  %v515 = vadd.f32 0.0, %v514
  %516 = vdwg.mxu0
  %517 = vmatpush.bf16.msra.mxu0 %v419
  %518 = vmatpush.bf16.msra.mxu0 %v418
  %519 = vmatpush.bf16.msra.mxu0 %v417
  %520 = vmatpush.bf16.msra.mxu0 %v416
  %521 = vmatpush.bf16.msra.mxu0 %v415
  %522 = vmatpush.bf16.msra.mxu0 %v414
  %523 = vmatpush.bf16.msra.mxu0 %v413
  %524 = vmatpush.bf16.msra.mxu0 %v412
  %525 = vmatmul.bf16.gmra.mxu0 %v213
  %v526 = vpop.f32.mrf.mxu0
  %v527 = vadd.f32 %v478, %v526
  %v528 = vpop.f32.mrf.mxu0
  %v529 = vadd.f32 %v480, %v528
  %530 = vmatmul.bf16.gmra.mxu0 %v217
  %v531 = vpop.f32.mrf.mxu0
  %v532 = vadd.f32 %v483, %v531
  %v533 = vpop.f32.mrf.mxu0
  %v534 = vadd.f32 %v485, %v533
  %535 = vmatmul.bf16.gmra.mxu0 %v221
  %v536 = vpop.f32.mrf.mxu0
  %v537 = vadd.f32 %v488, %v536
  %v538 = vpop.f32.mrf.mxu0
  %v539 = vadd.f32 %v490, %v538
  %540 = vmatmul.bf16.gmra.mxu0 %v225
  %v541 = vpop.f32.mrf.mxu0
  %v542 = vadd.f32 %v493, %v541
  %v543 = vpop.f32.mrf.mxu0
  %v544 = vadd.f32 %v495, %v543
  %545 = vmatmul.bf16.gmra.mxu0 %v229
  %v546 = vpop.f32.mrf.mxu0
  %v547 = vadd.f32 %v498, %v546
  %v548 = vpop.f32.mrf.mxu0
  %v549 = vadd.f32 %v500, %v548
  %550 = vmatmul.bf16.gmra.mxu0 %v233
  %v551 = vpop.f32.mrf.mxu0
  %v552 = vadd.f32 %v503, %v551
  %v553 = vpop.f32.mrf.mxu0
  %v554 = vadd.f32 %v505, %v553
  %555 = vmatmul.bf16.gmra.mxu0 %v237
  %v556 = vpop.f32.mrf.mxu0
  %v557 = vadd.f32 %v508, %v556
  %v558 = vpop.f32.mrf.mxu0
  %v559 = vadd.f32 %v510, %v558
  %560 = vmatmul.bf16.gmra.mxu0 %v241
  %v561 = vpop.f32.mrf.mxu0
  %v562 = vadd.f32 %v513, %v561
  %v563 = vpop.f32.mrf.mxu0
  %v564 = vadd.f32 %v515, %v563
  %565 = vdwg.mxu0
  %566 = vmatpush.bf16.msra.mxu0 %v427
  %567 = vmatpush.bf16.msra.mxu0 %v426
  %568 = vmatpush.bf16.msra.mxu0 %v425
  %569 = vmatpush.bf16.msra.mxu0 %v424
  %570 = vmatpush.bf16.msra.mxu0 %v423
  %571 = vmatpush.bf16.msra.mxu0 %v422
  %572 = vmatpush.bf16.msra.mxu0 %v421
  %573 = vmatpush.bf16.msra.mxu0 %v420
  %574 = vmatmul.bf16.gmra.mxu0 %v214
  %v575 = vpop.f32.mrf.mxu0
  %v576 = vadd.f32 %v527, %v575
  %v577 = vpop.f32.mrf.mxu0
  %v578 = vadd.f32 %v529, %v577
  %579 = vmatmul.bf16.gmra.mxu0 %v218
  %v580 = vpop.f32.mrf.mxu0
  %v581 = vadd.f32 %v532, %v580
  %v582 = vpop.f32.mrf.mxu0
  %v583 = vadd.f32 %v534, %v582
  %584 = vmatmul.bf16.gmra.mxu0 %v222
  %v585 = vpop.f32.mrf.mxu0
  %v586 = vadd.f32 %v537, %v585
  %v587 = vpop.f32.mrf.mxu0
  %v588 = vadd.f32 %v539, %v587
  %589 = vmatmul.bf16.gmra.mxu0 %v226
  %v590 = vpop.f32.mrf.mxu0
  %v591 = vadd.f32 %v542, %v590
  %v592 = vpop.f32.mrf.mxu0
  %v593 = vadd.f32 %v544, %v592
  %594 = vmatmul.bf16.gmra.mxu0 %v230
  %v595 = vpop.f32.mrf.mxu0
  %v596 = vadd.f32 %v547, %v595
  %v597 = vpop.f32.mrf.mxu0
  %v598 = vadd.f32 %v549, %v597
  %599 = vmatmul.bf16.gmra.mxu0 %v234
  %v600 = vpop.f32.mrf.mxu0
  %v601 = vadd.f32 %v552, %v600
  %v602 = vpop.f32.mrf.mxu0
  %v603 = vadd.f32 %v554, %v602
  %604 = vmatmul.bf16.gmra.mxu0 %v238
  %v605 = vpop.f32.mrf.mxu0
  %v606 = vadd.f32 %v557, %v605
  %v607 = vpop.f32.mrf.mxu0
  %v608 = vadd.f32 %v559, %v607
  %609 = vmatmul.bf16.gmra.mxu0 %v242
  %v610 = vpop.f32.mrf.mxu0
  %v611 = vadd.f32 %v562, %v610
  %v612 = vpop.f32.mrf.mxu0
  %v613 = vadd.f32 %v564, %v612
  %614 = vdwg.mxu0
  %615 = vmatpush.bf16.msra.mxu0 %v435
  %616 = vmatpush.bf16.msra.mxu0 %v434
  %617 = vmatpush.bf16.msra.mxu0 %v433
  %618 = vmatpush.bf16.msra.mxu0 %v432
  %619 = vmatpush.bf16.msra.mxu0 %v431
  %620 = vmatpush.bf16.msra.mxu0 %v430
  %621 = vmatpush.bf16.msra.mxu0 %v429
  %622 = vmatpush.bf16.msra.mxu0 %v428
  %623 = vmatmul.bf16.gmra.mxu0 %v215
  %v624 = vpop.f32.mrf.mxu0
  %v625 = vadd.f32 %v576, %v624
  %v626 = vpop.f32.mrf.mxu0
  %v627 = vadd.f32 %v578, %v626
  %628 = vmatmul.bf16.gmra.mxu0 %v219
  %v629 = vpop.f32.mrf.mxu0
  %v630 = vadd.f32 %v581, %v629
  %v631 = vpop.f32.mrf.mxu0
  %v632 = vadd.f32 %v583, %v631
  %633 = vmatmul.bf16.gmra.mxu0 %v223
  %v634 = vpop.f32.mrf.mxu0
  %v635 = vadd.f32 %v586, %v634
  %v636 = vpop.f32.mrf.mxu0
  %v637 = vadd.f32 %v588, %v636
  %638 = vmatmul.bf16.gmra.mxu0 %v227
  %v639 = vpop.f32.mrf.mxu0
  %v640 = vadd.f32 %v591, %v639
  %v641 = vpop.f32.mrf.mxu0
  %v642 = vadd.f32 %v593, %v641
  %643 = vmatmul.bf16.gmra.mxu0 %v231
  %v644 = vpop.f32.mrf.mxu0
  %v645 = vadd.f32 %v596, %v644
  %v646 = vpop.f32.mrf.mxu0
  %v647 = vadd.f32 %v598, %v646
  %648 = vmatmul.bf16.gmra.mxu0 %v235
  %v649 = vpop.f32.mrf.mxu0
  %v650 = vadd.f32 %v601, %v649
  %v651 = vpop.f32.mrf.mxu0
  %v652 = vadd.f32 %v603, %v651
  %653 = vmatmul.bf16.gmra.mxu0 %v239
  %v654 = vpop.f32.mrf.mxu0
  %v655 = vadd.f32 %v606, %v654
  %v656 = vpop.f32.mrf.mxu0
  %v657 = vadd.f32 %v608, %v656
  %658 = vmatmul.bf16.gmra.mxu0 %v243
  %v659 = vpop.f32.mrf.mxu0
  %v660 = vadd.f32 %v611, %v659
  %v661 = vpop.f32.mrf.mxu0
  %v662 = vadd.f32 %v613, %v661
  %663 = vdwg.mxu0
  %v664 = vadd.f32 %v625, %v627
  %v665 = vadd.f32 %v664, %v630
  %v666 = vadd.f32 %v665, %v632
  %v667 = vadd.f32 %v666, %v635
  %v668 = vadd.f32 %v667, %v637
  %v669 = vadd.f32 %v668, %v640
  %v670 = vadd.f32 %v669, %v642
  %v671 = vadd.f32 %v670, %v645
  %v672 = vadd.f32 %v671, %v647
  %v673 = vadd.f32 %v672, %v650
  %v674 = vadd.f32 %v673, %v652
  %v675 = vadd.f32 %v674, %v655
  %v676 = vadd.f32 %v675, %v657
  %v677 = vadd.f32 %v676, %v660
  %v678 = vadd.f32 %v677, %v662
  %v679 = vrot.slane %v678, 4
  %v680 = vadd.f32 %v678, %v679
  %v681 = vrot.slane %v680, 2
  %v682 = vadd.f32 %v680, %v681
  %v683 = vrot.slane %v682, 1
  %v684 = vadd.f32 %v682, %v683
  %v685 = vmul.f32 %v684, 0.03125
  %v686 = vmul.f32 %v625, %v625
  %v687 = vmul.f32 %v627, %v627
  %v688 = vmul.f32 %v630, %v630
  %v689 = vmul.f32 %v632, %v632
  %v690 = vmul.f32 %v635, %v635
  %v691 = vmul.f32 %v637, %v637
  %v692 = vmul.f32 %v640, %v640
  %v693 = vmul.f32 %v642, %v642
  %v694 = vmul.f32 %v645, %v645
  %v695 = vmul.f32 %v647, %v647
  %v696 = vmul.f32 %v650, %v650
  %v697 = vmul.f32 %v652, %v652
  %v698 = vmul.f32 %v655, %v655
  %v699 = vmul.f32 %v657, %v657
  %v700 = vmul.f32 %v660, %v660
  %v701 = vmul.f32 %v662, %v662
  %v702 = vadd.f32 %v686, %v687
  %v703 = vadd.f32 %v702, %v688
  %v704 = vadd.f32 %v703, %v689
  %v705 = vadd.f32 %v704, %v690
  %v706 = vadd.f32 %v705, %v691
  %v707 = vadd.f32 %v706, %v692
  %v708 = vadd.f32 %v707, %v693
  %v709 = vadd.f32 %v708, %v694
  %v710 = vadd.f32 %v709, %v695
  %v711 = vadd.f32 %v710, %v696
  %v712 = vadd.f32 %v711, %v697
  %v713 = vadd.f32 %v712, %v698
  %v714 = vadd.f32 %v713, %v699
  %v715 = vadd.f32 %v714, %v700
  %v716 = vadd.f32 %v715, %v701
  %v717 = vrot.slane %v716, 4
  %v718 = vadd.f32 %v716, %v717
  %v719 = vrot.slane %v718, 2
  %v720 = vadd.f32 %v718, %v719
  %v721 = vrot.slane %v720, 1
  %v722 = vadd.f32 %v720, %v721
  %v723 = vmul.f32 %v722, 0.03125
  %v724 = vmul.f32 %v685, %v685
  %v725 = vsub.f32 %v723, %v724
  %v726 = vmax.f32 %v725, 0.0
  %v727 = vld [vmem:[%s2] sm:$0x1]
  %v728 = vadd.f32 %v726, 1e-05
  %v729 = vrsqrt.pop %v728
  %v730 = vmul.f32 %v729, %v728
  %v731 = vmul.f32 %v730, %v729
  %v732 = vmul.f32 0.5, %v731
  %v733 = vsub.f32 1.5, %v732
  %v734 = vmul.f32 %v729, %v733
  %vm735 = vweird.f32 %v728
  %vm736 = vweird.f32 %v729
  %vm737 = vmor %vm735, %vm736
  %v738 = vsel %vm737, %v729, %v734
  %v739 = vmul.f32 %v727, %v738
  %v740 = vsub.f32 %v625, %v685
  %v741 = vsub.f32 %v627, %v685
  %v742 = vsub.f32 %v630, %v685
  %v743 = vsub.f32 %v632, %v685
  %v744 = vsub.f32 %v635, %v685
  %v745 = vsub.f32 %v637, %v685
  %v746 = vsub.f32 %v640, %v685
  %v747 = vsub.f32 %v642, %v685
  %v748 = vsub.f32 %v645, %v685
  %v749 = vsub.f32 %v647, %v685
  %v750 = vsub.f32 %v650, %v685
  %v751 = vsub.f32 %v652, %v685
  %v752 = vsub.f32 %v655, %v685
  %v753 = vsub.f32 %v657, %v685
  %v754 = vsub.f32 %v660, %v685
  %v755 = vsub.f32 %v662, %v685
  %v757 = vperm.slane %v739, 0
  %v759 = vmul.f32 %v740, %v757
  %v760 = vmul.f32 %v741, %v757
  %v761 = vmul.f32 %v742, %v757
  %v762 = vmul.f32 %v743, %v757
  %v763 = vmul.f32 %v744, %v757
  %v764 = vmul.f32 %v745, %v757
  %v765 = vmul.f32 %v746, %v757
  %v766 = vmul.f32 %v747, %v757
  %v767 = vmul.f32 %v748, %v757
  %v768 = vmul.f32 %v749, %v757
  %v769 = vmul.f32 %v750, %v757
  %v770 = vmul.f32 %v751, %v757
  %v771 = vmul.f32 %v752, %v757
  %v772 = vmul.f32 %v753, %v757
  %v773 = vmul.f32 %v754, %v757
  %v774 = vmul.f32 %v755, %v757
  %v775 = vld [vmem:[%s3] sm:$0x1]
  %v777 = vperm.slane %v775, 0
  %v779 = vadd.f32 %v759, %v777
  %v780 = vadd.f32 %v760, %v777
  %v781 = vadd.f32 %v761, %v777
  %v782 = vadd.f32 %v762, %v777
  %v783 = vadd.f32 %v763, %v777
  %v784 = vadd.f32 %v764, %v777
  %v785 = vadd.f32 %v765, %v777
  %v786 = vadd.f32 %v766, %v777
  %v787 = vadd.f32 %v767, %v777
  %v788 = vadd.f32 %v768, %v777
  %v789 = vadd.f32 %v769, %v777
  %v790 = vadd.f32 %v770, %v777
  %v791 = vadd.f32 %v771, %v777
  %v792 = vadd.f32 %v772, %v777
  %v793 = vadd.f32 %v773, %v777
  %v794 = vadd.f32 %v774, %v777
  %v795 = vmul.f32 %v779, 0.2
  %v796 = vmul.f32 %v780, 0.2
  %v797 = vmul.f32 %v781, 0.2
  %v798 = vmul.f32 %v782, 0.2
  %v799 = vmul.f32 %v783, 0.2
  %v800 = vmul.f32 %v784, 0.2
  %v801 = vmul.f32 %v785, 0.2
  %v802 = vmul.f32 %v786, 0.2
  %v803 = vmul.f32 %v787, 0.2
  %v804 = vmul.f32 %v788, 0.2
  %v805 = vmul.f32 %v789, 0.2
  %v806 = vmul.f32 %v790, 0.2
  %v807 = vmul.f32 %v791, 0.2
  %v808 = vmul.f32 %v792, 0.2
  %v809 = vmul.f32 %v793, 0.2
  %v810 = vmul.f32 %v794, 0.2
  %v811 = vmax.f32 %v779, %v795
  %v812 = vmax.f32 %v780, %v796
  %v813 = vmax.f32 %v781, %v797
  %v814 = vmax.f32 %v782, %v798
  %v815 = vmax.f32 %v783, %v799
  %v816 = vmax.f32 %v784, %v800
  %v817 = vmax.f32 %v785, %v801
  %v818 = vmax.f32 %v786, %v802
  %v819 = vmax.f32 %v787, %v803
  %v820 = vmax.f32 %v788, %v804
  %v821 = vmax.f32 %v789, %v805
  %v822 = vmax.f32 %v790, %v806
  %v823 = vmax.f32 %v791, %v807
  %v824 = vmax.f32 %v792, %v808
  %v825 = vmax.f32 %v793, %v809
  %v826 = vmax.f32 %v794, %v810
  %v827 = vpack.c.bf16 %v811, %v811
  %v828 = vpack.c.bf16 %v812, %v812
  %v829 = vpack.c.bf16 %v813, %v813
  %v830 = vpack.c.bf16 %v814, %v814
  %v831 = vpack.c.bf16 %v815, %v815
  %v832 = vpack.c.bf16 %v816, %v816
  %v833 = vpack.c.bf16 %v817, %v817
  %v834 = vpack.c.bf16 %v818, %v818
  %v835 = vpack.c.bf16 %v819, %v819
  %v836 = vpack.c.bf16 %v820, %v820
  %v837 = vpack.c.bf16 %v821, %v821
  %v838 = vpack.c.bf16 %v822, %v822
  %v839 = vpack.c.bf16 %v823, %v823
  %v840 = vpack.c.bf16 %v824, %v824
  %v841 = vpack.c.bf16 %v825, %v825
  %v842 = vpack.c.bf16 %v826, %v826
  %v843 = vld [vmem:[%s4] sm:$0xf]
  %v844 = vld [vmem:[%s4 + $0x4] sm:$0xf]
  %v845 = vld [vmem:[%s4 + $0x8] sm:$0xf]
  %v846 = vld [vmem:[%s4 + $0xc] sm:$0xf]
  %v847 = vld [vmem:[%s4 + $0x10] sm:$0xf]
  %v848 = vld [vmem:[%s4 + $0x14] sm:$0xf]
  %v849 = vld [vmem:[%s4 + $0x18] sm:$0xf]
  %v850 = vld [vmem:[%s4 + $0x1c] sm:$0xf]
  %v851 = vld [vmem:[%s4 + $0x20] sm:$0xf]
  %v852 = vld [vmem:[%s4 + $0x24] sm:$0xf]
  %v853 = vld [vmem:[%s4 + $0x28] sm:$0xf]
  %v854 = vld [vmem:[%s4 + $0x2c] sm:$0xf]
  %v855 = vld [vmem:[%s4 + $0x30] sm:$0xf]
  %v856 = vld [vmem:[%s4 + $0x34] sm:$0xf]
  %v857 = vld [vmem:[%s4 + $0x38] sm:$0xf]
  %v858 = vld [vmem:[%s4 + $0x3c] sm:$0xf]
  %v859 = vld [vmem:[%s4 + $0x40] sm:$0xf]
  %v860 = vld [vmem:[%s4 + $0x44] sm:$0xf]
  %v861 = vld [vmem:[%s4 + $0x48] sm:$0xf]
  %v862 = vld [vmem:[%s4 + $0x4c] sm:$0xf]
  %v863 = vld [vmem:[%s4 + $0x50] sm:$0xf]
  %v864 = vld [vmem:[%s4 + $0x54] sm:$0xf]
  %v865 = vld [vmem:[%s4 + $0x58] sm:$0xf]
  %v866 = vld [vmem:[%s4 + $0x5c] sm:$0xf]
  %v867 = vld [vmem:[%s4 + $0x60] sm:$0xf]
  %v868 = vld [vmem:[%s4 + $0x64] sm:$0xf]
  %v869 = vld [vmem:[%s4 + $0x68] sm:$0xf]
  %v870 = vld [vmem:[%s4 + $0x6c] sm:$0xf]
  %v871 = vld [vmem:[%s4 + $0x70] sm:$0xf]
  %v872 = vld [vmem:[%s4 + $0x74] sm:$0xf]
  %v873 = vld [vmem:[%s4 + $0x78] sm:$0xf]
  %v874 = vld [vmem:[%s4 + $0x7c] sm:$0xf]
  %v875 = vld [vmem:[%s4 + $0x80] sm:$0xf]
  %v876 = vld [vmem:[%s4 + $0x84] sm:$0xf]
  %v877 = vld [vmem:[%s4 + $0x88] sm:$0xf]
  %v878 = vld [vmem:[%s4 + $0x8c] sm:$0xf]
  %v879 = vld [vmem:[%s4 + $0x90] sm:$0xf]
  %v880 = vld [vmem:[%s4 + $0x94] sm:$0xf]
  %v881 = vld [vmem:[%s4 + $0x98] sm:$0xf]
  %v882 = vld [vmem:[%s4 + $0x9c] sm:$0xf]
  %v883 = vld [vmem:[%s4 + $0xa0] sm:$0xf]
  %v884 = vld [vmem:[%s4 + $0xa4] sm:$0xf]
  %v885 = vld [vmem:[%s4 + $0xa8] sm:$0xf]
  %v886 = vld [vmem:[%s4 + $0xac] sm:$0xf]
  %v887 = vld [vmem:[%s4 + $0xb0] sm:$0xf]
  %v888 = vld [vmem:[%s4 + $0xb4] sm:$0xf]
  %v889 = vld [vmem:[%s4 + $0xb8] sm:$0xf]
  %v890 = vld [vmem:[%s4 + $0xbc] sm:$0xf]
  %v891 = vld [vmem:[%s4 + $0xc0] sm:$0xf]
  %v892 = vld [vmem:[%s4 + $0xc4] sm:$0xf]
  %v893 = vld [vmem:[%s4 + $0xc8] sm:$0xf]
  %v894 = vld [vmem:[%s4 + $0xcc] sm:$0xf]
  %v895 = vld [vmem:[%s4 + $0xd0] sm:$0xf]
  %v896 = vld [vmem:[%s4 + $0xd4] sm:$0xf]
  %v897 = vld [vmem:[%s4 + $0xd8] sm:$0xf]
  %v898 = vld [vmem:[%s4 + $0xdc] sm:$0xf]
  %v899 = vld [vmem:[%s4 + $0xe0] sm:$0xf]
  %v900 = vld [vmem:[%s4 + $0xe4] sm:$0xf]
  %v901 = vld [vmem:[%s4 + $0xe8] sm:$0xf]
  %v902 = vld [vmem:[%s4 + $0xec] sm:$0xf]
  %v903 = vld [vmem:[%s4 + $0xf0] sm:$0xf]
  %v904 = vld [vmem:[%s4 + $0xf4] sm:$0xf]
  %v905 = vld [vmem:[%s4 + $0xf8] sm:$0xf]
  %v906 = vld [vmem:[%s4 + $0xfc] sm:$0xf]
  %v907 = vld [vmem:[%s4 + $0x100] sm:$0xf]
  %v908 = vld [vmem:[%s4 + $0x104] sm:$0xf]
  %v909 = vld [vmem:[%s4 + $0x108] sm:$0xf]
  %v910 = vld [vmem:[%s4 + $0x10c] sm:$0xf]
  %v911 = vld [vmem:[%s4 + $0x110] sm:$0xf]
  %v912 = vld [vmem:[%s4 + $0x114] sm:$0xf]
  %v913 = vld [vmem:[%s4 + $0x118] sm:$0xf]
  %v914 = vld [vmem:[%s4 + $0x11c] sm:$0xf]
  %v915 = vld [vmem:[%s4 + $0x120] sm:$0xf]
  %v916 = vld [vmem:[%s4 + $0x124] sm:$0xf]
  %v917 = vld [vmem:[%s4 + $0x128] sm:$0xf]
  %v918 = vld [vmem:[%s4 + $0x12c] sm:$0xf]
  %v919 = vld [vmem:[%s4 + $0x130] sm:$0xf]
  %v920 = vld [vmem:[%s4 + $0x134] sm:$0xf]
  %v921 = vld [vmem:[%s4 + $0x138] sm:$0xf]
  %v922 = vld [vmem:[%s4 + $0x13c] sm:$0xf]
  %v923 = vld [vmem:[%s4 + $0x140] sm:$0xf]
  %v924 = vld [vmem:[%s4 + $0x144] sm:$0xf]
  %v925 = vld [vmem:[%s4 + $0x148] sm:$0xf]
  %v926 = vld [vmem:[%s4 + $0x14c] sm:$0xf]
  %v927 = vld [vmem:[%s4 + $0x150] sm:$0xf]
  %v928 = vld [vmem:[%s4 + $0x154] sm:$0xf]
  %v929 = vld [vmem:[%s4 + $0x158] sm:$0xf]
  %v930 = vld [vmem:[%s4 + $0x15c] sm:$0xf]
  %v931 = vld [vmem:[%s4 + $0x160] sm:$0xf]
  %v932 = vld [vmem:[%s4 + $0x164] sm:$0xf]
  %v933 = vld [vmem:[%s4 + $0x168] sm:$0xf]
  %v934 = vld [vmem:[%s4 + $0x16c] sm:$0xf]
  %v935 = vld [vmem:[%s4 + $0x170] sm:$0xf]
  %v936 = vld [vmem:[%s4 + $0x174] sm:$0xf]
  %v937 = vld [vmem:[%s4 + $0x178] sm:$0xf]
  %v938 = vld [vmem:[%s4 + $0x17c] sm:$0xf]
  %v939 = vld [vmem:[%s4 + $0x180] sm:$0xf]
  %v940 = vld [vmem:[%s4 + $0x184] sm:$0xf]
  %v941 = vld [vmem:[%s4 + $0x188] sm:$0xf]
  %v942 = vld [vmem:[%s4 + $0x18c] sm:$0xf]
  %v943 = vld [vmem:[%s4 + $0x190] sm:$0xf]
  %v944 = vld [vmem:[%s4 + $0x194] sm:$0xf]
  %v945 = vld [vmem:[%s4 + $0x198] sm:$0xf]
  %v946 = vld [vmem:[%s4 + $0x19c] sm:$0xf]
  %v947 = vld [vmem:[%s4 + $0x1a0] sm:$0xf]
  %v948 = vld [vmem:[%s4 + $0x1a4] sm:$0xf]
  %v949 = vld [vmem:[%s4 + $0x1a8] sm:$0xf]
  %v950 = vld [vmem:[%s4 + $0x1ac] sm:$0xf]
  %v951 = vld [vmem:[%s4 + $0x1b0] sm:$0xf]
  %v952 = vld [vmem:[%s4 + $0x1b4] sm:$0xf]
  %v953 = vld [vmem:[%s4 + $0x1b8] sm:$0xf]
  %v954 = vld [vmem:[%s4 + $0x1bc] sm:$0xf]
  %v955 = vld [vmem:[%s4 + $0x1c0] sm:$0xf]
  %v956 = vld [vmem:[%s4 + $0x1c4] sm:$0xf]
  %v957 = vld [vmem:[%s4 + $0x1c8] sm:$0xf]
  %v958 = vld [vmem:[%s4 + $0x1cc] sm:$0xf]
  %v959 = vld [vmem:[%s4 + $0x1d0] sm:$0xf]
  %v960 = vld [vmem:[%s4 + $0x1d4] sm:$0xf]
  %v961 = vld [vmem:[%s4 + $0x1d8] sm:$0xf]
  %v962 = vld [vmem:[%s4 + $0x1dc] sm:$0xf]
  %v963 = vld [vmem:[%s4 + $0x1e0] sm:$0xf]
  %v964 = vld [vmem:[%s4 + $0x1e4] sm:$0xf]
  %v965 = vld [vmem:[%s4 + $0x1e8] sm:$0xf]
  %v966 = vld [vmem:[%s4 + $0x1ec] sm:$0xf]
  %v967 = vld [vmem:[%s4 + $0x1f0] sm:$0xf]
  %v968 = vld [vmem:[%s4 + $0x1f4] sm:$0xf]
  %v969 = vld [vmem:[%s4 + $0x1f8] sm:$0xf]
  %v970 = vld [vmem:[%s4 + $0x1fc] sm:$0xf]
  %v971 = vld [vmem:[%s4 + $0x200] sm:$0xf]
  %v972 = vld [vmem:[%s4 + $0x204] sm:$0xf]
  %v973 = vld [vmem:[%s4 + $0x208] sm:$0xf]
  %v974 = vld [vmem:[%s4 + $0x20c] sm:$0xf]
  %v975 = vld [vmem:[%s4 + $0x210] sm:$0xf]
  %v976 = vld [vmem:[%s4 + $0x214] sm:$0xf]
  %v977 = vld [vmem:[%s4 + $0x218] sm:$0xf]
  %v978 = vld [vmem:[%s4 + $0x21c] sm:$0xf]
  %v979 = vld [vmem:[%s4 + $0x220] sm:$0xf]
  %v980 = vld [vmem:[%s4 + $0x224] sm:$0xf]
  %v981 = vld [vmem:[%s4 + $0x228] sm:$0xf]
  %v982 = vld [vmem:[%s4 + $0x22c] sm:$0xf]
  %v983 = vld [vmem:[%s4 + $0x230] sm:$0xf]
  %v984 = vld [vmem:[%s4 + $0x234] sm:$0xf]
  %v985 = vld [vmem:[%s4 + $0x238] sm:$0xf]
  %v986 = vld [vmem:[%s4 + $0x23c] sm:$0xf]
  %v987 = vld [vmem:[%s4 + $0x240] sm:$0xf]
  %v988 = vld [vmem:[%s4 + $0x244] sm:$0xf]
  %v989 = vld [vmem:[%s4 + $0x248] sm:$0xf]
  %v990 = vld [vmem:[%s4 + $0x24c] sm:$0xf]
  %v991 = vld [vmem:[%s4 + $0x250] sm:$0xf]
  %v992 = vld [vmem:[%s4 + $0x254] sm:$0xf]
  %v993 = vld [vmem:[%s4 + $0x258] sm:$0xf]
  %v994 = vld [vmem:[%s4 + $0x25c] sm:$0xf]
  %v995 = vld [vmem:[%s4 + $0x260] sm:$0xf]
  %v996 = vld [vmem:[%s4 + $0x264] sm:$0xf]
  %v997 = vld [vmem:[%s4 + $0x268] sm:$0xf]
  %v998 = vld [vmem:[%s4 + $0x26c] sm:$0xf]
  %v999 = vld [vmem:[%s4 + $0x270] sm:$0xf]
  %v1000 = vld [vmem:[%s4 + $0x274] sm:$0xf]
  %v1001 = vld [vmem:[%s4 + $0x278] sm:$0xf]
  %v1002 = vld [vmem:[%s4 + $0x27c] sm:$0xf]
  %v1003 = vld [vmem:[%s4 + $0x280] sm:$0xf]
  %v1004 = vld [vmem:[%s4 + $0x284] sm:$0xf]
  %v1005 = vld [vmem:[%s4 + $0x288] sm:$0xf]
  %v1006 = vld [vmem:[%s4 + $0x28c] sm:$0xf]
  %v1007 = vld [vmem:[%s4 + $0x290] sm:$0xf]
  %v1008 = vld [vmem:[%s4 + $0x294] sm:$0xf]
  %v1009 = vld [vmem:[%s4 + $0x298] sm:$0xf]
  %v1010 = vld [vmem:[%s4 + $0x29c] sm:$0xf]
  %v1011 = vld [vmem:[%s4 + $0x2a0] sm:$0xf]
  %v1012 = vld [vmem:[%s4 + $0x2a4] sm:$0xf]
  %v1013 = vld [vmem:[%s4 + $0x2a8] sm:$0xf]
  %v1014 = vld [vmem:[%s4 + $0x2ac] sm:$0xf]
  %v1015 = vld [vmem:[%s4 + $0x2b0] sm:$0xf]
  %v1016 = vld [vmem:[%s4 + $0x2b4] sm:$0xf]
  %v1017 = vld [vmem:[%s4 + $0x2b8] sm:$0xf]
  %v1018 = vld [vmem:[%s4 + $0x2bc] sm:$0xf]
  %v1019 = vld [vmem:[%s4 + $0x2c0] sm:$0xf]
  %v1020 = vld [vmem:[%s4 + $0x2c4] sm:$0xf]
  %v1021 = vld [vmem:[%s4 + $0x2c8] sm:$0xf]
  %v1022 = vld [vmem:[%s4 + $0x2cc] sm:$0xf]
  %v1023 = vld [vmem:[%s4 + $0x2d0] sm:$0xf]
  %v1024 = vld [vmem:[%s4 + $0x2d4] sm:$0xf]
  %v1025 = vld [vmem:[%s4 + $0x2d8] sm:$0xf]
  %v1026 = vld [vmem:[%s4 + $0x2dc] sm:$0xf]
  %v1027 = vld [vmem:[%s4 + $0x2e0] sm:$0xf]
  %v1028 = vld [vmem:[%s4 + $0x2e4] sm:$0xf]
  %v1029 = vld [vmem:[%s4 + $0x2e8] sm:$0xf]
  %v1030 = vld [vmem:[%s4 + $0x2ec] sm:$0xf]
  %v1031 = vld [vmem:[%s4 + $0x2f0] sm:$0xf]
  %v1032 = vld [vmem:[%s4 + $0x2f4] sm:$0xf]
  %v1033 = vld [vmem:[%s4 + $0x2f8] sm:$0xf]
  %v1034 = vld [vmem:[%s4 + $0x2fc] sm:$0xf]
  %v1035 = vld [vmem:[%s4 + $0x300] sm:$0xf]
  %v1036 = vld [vmem:[%s4 + $0x304] sm:$0xf]
  %v1037 = vld [vmem:[%s4 + $0x308] sm:$0xf]
  %v1038 = vld [vmem:[%s4 + $0x30c] sm:$0xf]
  %v1039 = vld [vmem:[%s4 + $0x310] sm:$0xf]
  %v1040 = vld [vmem:[%s4 + $0x314] sm:$0xf]
  %v1041 = vld [vmem:[%s4 + $0x318] sm:$0xf]
  %v1042 = vld [vmem:[%s4 + $0x31c] sm:$0xf]
  %v1043 = vld [vmem:[%s4 + $0x320] sm:$0xf]
  %v1044 = vld [vmem:[%s4 + $0x324] sm:$0xf]
  %v1045 = vld [vmem:[%s4 + $0x328] sm:$0xf]
  %v1046 = vld [vmem:[%s4 + $0x32c] sm:$0xf]
  %v1047 = vld [vmem:[%s4 + $0x330] sm:$0xf]
  %v1048 = vld [vmem:[%s4 + $0x334] sm:$0xf]
  %v1049 = vld [vmem:[%s4 + $0x338] sm:$0xf]
  %v1050 = vld [vmem:[%s4 + $0x33c] sm:$0xf]
  %v1051 = vld [vmem:[%s4 + $0x340] sm:$0xf]
  %v1052 = vld [vmem:[%s4 + $0x344] sm:$0xf]
  %v1053 = vld [vmem:[%s4 + $0x348] sm:$0xf]
  %v1054 = vld [vmem:[%s4 + $0x34c] sm:$0xf]
  %v1055 = vld [vmem:[%s4 + $0x350] sm:$0xf]
  %v1056 = vld [vmem:[%s4 + $0x354] sm:$0xf]
  %v1057 = vld [vmem:[%s4 + $0x358] sm:$0xf]
  %v1058 = vld [vmem:[%s4 + $0x35c] sm:$0xf]
  %v1059 = vld [vmem:[%s4 + $0x360] sm:$0xf]
  %v1060 = vld [vmem:[%s4 + $0x364] sm:$0xf]
  %v1061 = vld [vmem:[%s4 + $0x368] sm:$0xf]
  %v1062 = vld [vmem:[%s4 + $0x36c] sm:$0xf]
  %v1063 = vld [vmem:[%s4 + $0x370] sm:$0xf]
  %v1064 = vld [vmem:[%s4 + $0x374] sm:$0xf]
  %v1065 = vld [vmem:[%s4 + $0x378] sm:$0xf]
  %v1066 = vld [vmem:[%s4 + $0x37c] sm:$0xf]
  %v1067 = vld [vmem:[%s4 + $0x380] sm:$0xf]
  %v1068 = vld [vmem:[%s4 + $0x384] sm:$0xf]
  %v1069 = vld [vmem:[%s4 + $0x388] sm:$0xf]
  %v1070 = vld [vmem:[%s4 + $0x38c] sm:$0xf]
  %v1071 = vld [vmem:[%s4 + $0x390] sm:$0xf]
  %v1072 = vld [vmem:[%s4 + $0x394] sm:$0xf]
  %v1073 = vld [vmem:[%s4 + $0x398] sm:$0xf]
  %v1074 = vld [vmem:[%s4 + $0x39c] sm:$0xf]
  %v1075 = vld [vmem:[%s4 + $0x3a0] sm:$0xf]
  %v1076 = vld [vmem:[%s4 + $0x3a4] sm:$0xf]
  %v1077 = vld [vmem:[%s4 + $0x3a8] sm:$0xf]
  %v1078 = vld [vmem:[%s4 + $0x3ac] sm:$0xf]
  %v1079 = vld [vmem:[%s4 + $0x3b0] sm:$0xf]
  %v1080 = vld [vmem:[%s4 + $0x3b4] sm:$0xf]
  %v1081 = vld [vmem:[%s4 + $0x3b8] sm:$0xf]
  %v1082 = vld [vmem:[%s4 + $0x3bc] sm:$0xf]
  %v1083 = vld [vmem:[%s4 + $0x3c0] sm:$0xf]
  %v1084 = vld [vmem:[%s4 + $0x3c4] sm:$0xf]
  %v1085 = vld [vmem:[%s4 + $0x3c8] sm:$0xf]
  %v1086 = vld [vmem:[%s4 + $0x3cc] sm:$0xf]
  %v1087 = vld [vmem:[%s4 + $0x3d0] sm:$0xf]
  %v1088 = vld [vmem:[%s4 + $0x3d4] sm:$0xf]
  %v1089 = vld [vmem:[%s4 + $0x3d8] sm:$0xf]
  %v1090 = vld [vmem:[%s4 + $0x3dc] sm:$0xf]
  %v1091 = vld [vmem:[%s4 + $0x3e0] sm:$0xf]
  %v1092 = vld [vmem:[%s4 + $0x3e4] sm:$0xf]
  %v1093 = vld [vmem:[%s4 + $0x3e8] sm:$0xf]
  %v1094 = vld [vmem:[%s4 + $0x3ec] sm:$0xf]
  %v1095 = vld [vmem:[%s4 + $0x3f0] sm:$0xf]
  %v1096 = vld [vmem:[%s4 + $0x3f4] sm:$0xf]
  %v1097 = vld [vmem:[%s4 + $0x3f8] sm:$0xf]
  %v1098 = vld [vmem:[%s4 + $0x3fc] sm:$0xf]
  %v1355 = vunpack.c.l.b16 %v843
  %v1356 = vunpack.c.l.b16 %v844
  %v1357 = vunpack.c.l.b16 %v845
  %v1358 = vunpack.c.l.b16 %v846
  %v1359 = vunpack.c.l.b16 %v847
  %v1360 = vunpack.c.l.b16 %v848
  %v1361 = vunpack.c.l.b16 %v849
  %v1362 = vunpack.c.l.b16 %v850
  %v1363 = vunpack.c.l.b16 %v851
  %v1364 = vunpack.c.l.b16 %v852
  %v1365 = vunpack.c.l.b16 %v853
  %v1366 = vunpack.c.l.b16 %v854
  %v1367 = vunpack.c.l.b16 %v855
  %v1368 = vunpack.c.l.b16 %v856
  %v1369 = vunpack.c.l.b16 %v857
  %v1370 = vunpack.c.l.b16 %v858
  %v1371 = vunpack.c.l.b16 %v859
  %v1372 = vunpack.c.l.b16 %v860
  %v1373 = vunpack.c.l.b16 %v861
  %v1374 = vunpack.c.l.b16 %v862
  %v1375 = vunpack.c.l.b16 %v863
  %v1376 = vunpack.c.l.b16 %v864
  %v1377 = vunpack.c.l.b16 %v865
  %v1378 = vunpack.c.l.b16 %v866
  %v1379 = vunpack.c.l.b16 %v867
  %v1380 = vunpack.c.l.b16 %v868
  %v1381 = vunpack.c.l.b16 %v869
  %v1382 = vunpack.c.l.b16 %v870
  %v1383 = vunpack.c.l.b16 %v871
  %v1384 = vunpack.c.l.b16 %v872
  %v1385 = vunpack.c.l.b16 %v873
  %v1386 = vunpack.c.l.b16 %v874
  %v1387 = vunpack.c.l.b16 %v875
  %v1388 = vunpack.c.l.b16 %v876
  %v1389 = vunpack.c.l.b16 %v877
  %v1390 = vunpack.c.l.b16 %v878
  %v1391 = vunpack.c.l.b16 %v879
  %v1392 = vunpack.c.l.b16 %v880
  %v1393 = vunpack.c.l.b16 %v881
  %v1394 = vunpack.c.l.b16 %v882
  %v1395 = vunpack.c.l.b16 %v883
  %v1396 = vunpack.c.l.b16 %v884
  %v1397 = vunpack.c.l.b16 %v885
  %v1398 = vunpack.c.l.b16 %v886
  %v1399 = vunpack.c.l.b16 %v887
  %v1400 = vunpack.c.l.b16 %v888
  %v1401 = vunpack.c.l.b16 %v889
  %v1402 = vunpack.c.l.b16 %v890
  %v1403 = vunpack.c.l.b16 %v891
  %v1404 = vunpack.c.l.b16 %v892
  %v1405 = vunpack.c.l.b16 %v893
  %v1406 = vunpack.c.l.b16 %v894
  %v1407 = vunpack.c.l.b16 %v895
  %v1408 = vunpack.c.l.b16 %v896
  %v1409 = vunpack.c.l.b16 %v897
  %v1410 = vunpack.c.l.b16 %v898
  %v1411 = vunpack.c.l.b16 %v899
  %v1412 = vunpack.c.l.b16 %v900
  %v1413 = vunpack.c.l.b16 %v901
  %v1414 = vunpack.c.l.b16 %v902
  %v1415 = vunpack.c.l.b16 %v903
  %v1416 = vunpack.c.l.b16 %v904
  %v1417 = vunpack.c.l.b16 %v905
  %v1418 = vunpack.c.l.b16 %v906
  %v1419 = vunpack.c.l.b16 %v907
  %v1420 = vunpack.c.l.b16 %v908
  %v1421 = vunpack.c.l.b16 %v909
  %v1422 = vunpack.c.l.b16 %v910
  %v1423 = vunpack.c.l.b16 %v911
  %v1424 = vunpack.c.l.b16 %v912
  %v1425 = vunpack.c.l.b16 %v913
  %v1426 = vunpack.c.l.b16 %v914
  %v1427 = vunpack.c.l.b16 %v915
  %v1428 = vunpack.c.l.b16 %v916
  %v1429 = vunpack.c.l.b16 %v917
  %v1430 = vunpack.c.l.b16 %v918
  %v1431 = vunpack.c.l.b16 %v919
  %v1432 = vunpack.c.l.b16 %v920
  %v1433 = vunpack.c.l.b16 %v921
  %v1434 = vunpack.c.l.b16 %v922
  %v1435 = vunpack.c.l.b16 %v923
  %v1436 = vunpack.c.l.b16 %v924
  %v1437 = vunpack.c.l.b16 %v925
  %v1438 = vunpack.c.l.b16 %v926
  %v1439 = vunpack.c.l.b16 %v927
  %v1440 = vunpack.c.l.b16 %v928
  %v1441 = vunpack.c.l.b16 %v929
  %v1442 = vunpack.c.l.b16 %v930
  %v1443 = vunpack.c.l.b16 %v931
  %v1444 = vunpack.c.l.b16 %v932
  %v1445 = vunpack.c.l.b16 %v933
  %v1446 = vunpack.c.l.b16 %v934
  %v1447 = vunpack.c.l.b16 %v935
  %v1448 = vunpack.c.l.b16 %v936
  %v1449 = vunpack.c.l.b16 %v937
  %v1450 = vunpack.c.l.b16 %v938
  %v1451 = vunpack.c.l.b16 %v939
  %v1452 = vunpack.c.l.b16 %v940
  %v1453 = vunpack.c.l.b16 %v941
  %v1454 = vunpack.c.l.b16 %v942
  %v1455 = vunpack.c.l.b16 %v943
  %v1456 = vunpack.c.l.b16 %v944
  %v1457 = vunpack.c.l.b16 %v945
  %v1458 = vunpack.c.l.b16 %v946
  %v1459 = vunpack.c.l.b16 %v947
  %v1460 = vunpack.c.l.b16 %v948
  %v1461 = vunpack.c.l.b16 %v949
  %v1462 = vunpack.c.l.b16 %v950
  %v1463 = vunpack.c.l.b16 %v951
  %v1464 = vunpack.c.l.b16 %v952
  %v1465 = vunpack.c.l.b16 %v953
  %v1466 = vunpack.c.l.b16 %v954
  %v1467 = vunpack.c.l.b16 %v955
  %v1468 = vunpack.c.l.b16 %v956
  %v1469 = vunpack.c.l.b16 %v957
  %v1470 = vunpack.c.l.b16 %v958
  %v1471 = vunpack.c.l.b16 %v959
  %v1472 = vunpack.c.l.b16 %v960
  %v1473 = vunpack.c.l.b16 %v961
  %v1474 = vunpack.c.l.b16 %v962
  %v1475 = vunpack.c.l.b16 %v963
  %v1476 = vunpack.c.l.b16 %v964
  %v1477 = vunpack.c.l.b16 %v965
  %v1478 = vunpack.c.l.b16 %v966
  %v1479 = vunpack.c.l.b16 %v967
  %v1480 = vunpack.c.l.b16 %v968
  %v1481 = vunpack.c.l.b16 %v969
  %v1482 = vunpack.c.l.b16 %v970
  %v1483 = vunpack.c.l.b16 %v971
  %v1484 = vunpack.c.l.b16 %v972
  %v1485 = vunpack.c.l.b16 %v973
  %v1486 = vunpack.c.l.b16 %v974
  %v1487 = vunpack.c.l.b16 %v975
  %v1488 = vunpack.c.l.b16 %v976
  %v1489 = vunpack.c.l.b16 %v977
  %v1490 = vunpack.c.l.b16 %v978
  %v1491 = vunpack.c.l.b16 %v979
  %v1492 = vunpack.c.l.b16 %v980
  %v1493 = vunpack.c.l.b16 %v981
  %v1494 = vunpack.c.l.b16 %v982
  %v1495 = vunpack.c.l.b16 %v983
  %v1496 = vunpack.c.l.b16 %v984
  %v1497 = vunpack.c.l.b16 %v985
  %v1498 = vunpack.c.l.b16 %v986
  %v1499 = vunpack.c.l.b16 %v987
  %v1500 = vunpack.c.l.b16 %v988
  %v1501 = vunpack.c.l.b16 %v989
  %v1502 = vunpack.c.l.b16 %v990
  %v1503 = vunpack.c.l.b16 %v991
  %v1504 = vunpack.c.l.b16 %v992
  %v1505 = vunpack.c.l.b16 %v993
  %v1506 = vunpack.c.l.b16 %v994
  %v1507 = vunpack.c.l.b16 %v995
  %v1508 = vunpack.c.l.b16 %v996
  %v1509 = vunpack.c.l.b16 %v997
  %v1510 = vunpack.c.l.b16 %v998
  %v1511 = vunpack.c.l.b16 %v999
  %v1512 = vunpack.c.l.b16 %v1000
  %v1513 = vunpack.c.l.b16 %v1001
  %v1514 = vunpack.c.l.b16 %v1002
  %v1515 = vunpack.c.l.b16 %v1003
  %v1516 = vunpack.c.l.b16 %v1004
  %v1517 = vunpack.c.l.b16 %v1005
  %v1518 = vunpack.c.l.b16 %v1006
  %v1519 = vunpack.c.l.b16 %v1007
  %v1520 = vunpack.c.l.b16 %v1008
  %v1521 = vunpack.c.l.b16 %v1009
  %v1522 = vunpack.c.l.b16 %v1010
  %v1523 = vunpack.c.l.b16 %v1011
  %v1524 = vunpack.c.l.b16 %v1012
  %v1525 = vunpack.c.l.b16 %v1013
  %v1526 = vunpack.c.l.b16 %v1014
  %v1527 = vunpack.c.l.b16 %v1015
  %v1528 = vunpack.c.l.b16 %v1016
  %v1529 = vunpack.c.l.b16 %v1017
  %v1530 = vunpack.c.l.b16 %v1018
  %v1531 = vunpack.c.l.b16 %v1019
  %v1532 = vunpack.c.l.b16 %v1020
  %v1533 = vunpack.c.l.b16 %v1021
  %v1534 = vunpack.c.l.b16 %v1022
  %v1535 = vunpack.c.l.b16 %v1023
  %v1536 = vunpack.c.l.b16 %v1024
  %v1537 = vunpack.c.l.b16 %v1025
  %v1538 = vunpack.c.l.b16 %v1026
  %v1539 = vunpack.c.l.b16 %v1027
  %v1540 = vunpack.c.l.b16 %v1028
  %v1541 = vunpack.c.l.b16 %v1029
  %v1542 = vunpack.c.l.b16 %v1030
  %v1543 = vunpack.c.l.b16 %v1031
  %v1544 = vunpack.c.l.b16 %v1032
  %v1545 = vunpack.c.l.b16 %v1033
  %v1546 = vunpack.c.l.b16 %v1034
  %v1547 = vunpack.c.l.b16 %v1035
  %v1548 = vunpack.c.l.b16 %v1036
  %v1549 = vunpack.c.l.b16 %v1037
  %v1550 = vunpack.c.l.b16 %v1038
  %v1551 = vunpack.c.l.b16 %v1039
  %v1552 = vunpack.c.l.b16 %v1040
  %v1553 = vunpack.c.l.b16 %v1041
  %v1554 = vunpack.c.l.b16 %v1042
  %v1555 = vunpack.c.l.b16 %v1043
  %v1556 = vunpack.c.l.b16 %v1044
  %v1557 = vunpack.c.l.b16 %v1045
  %v1558 = vunpack.c.l.b16 %v1046
  %v1559 = vunpack.c.l.b16 %v1047
  %v1560 = vunpack.c.l.b16 %v1048
  %v1561 = vunpack.c.l.b16 %v1049
  %v1562 = vunpack.c.l.b16 %v1050
  %v1563 = vunpack.c.l.b16 %v1051
  %v1564 = vunpack.c.l.b16 %v1052
  %v1565 = vunpack.c.l.b16 %v1053
  %v1566 = vunpack.c.l.b16 %v1054
  %v1567 = vunpack.c.l.b16 %v1055
  %v1568 = vunpack.c.l.b16 %v1056
  %v1569 = vunpack.c.l.b16 %v1057
  %v1570 = vunpack.c.l.b16 %v1058
  %v1571 = vunpack.c.l.b16 %v1059
  %v1572 = vunpack.c.l.b16 %v1060
  %v1573 = vunpack.c.l.b16 %v1061
  %v1574 = vunpack.c.l.b16 %v1062
  %v1575 = vunpack.c.l.b16 %v1063
  %v1576 = vunpack.c.l.b16 %v1064
  %v1577 = vunpack.c.l.b16 %v1065
  %v1578 = vunpack.c.l.b16 %v1066
  %v1579 = vunpack.c.l.b16 %v1067
  %v1580 = vunpack.c.l.b16 %v1068
  %v1581 = vunpack.c.l.b16 %v1069
  %v1582 = vunpack.c.l.b16 %v1070
  %v1583 = vunpack.c.l.b16 %v1071
  %v1584 = vunpack.c.l.b16 %v1072
  %v1585 = vunpack.c.l.b16 %v1073
  %v1586 = vunpack.c.l.b16 %v1074
  %v1587 = vunpack.c.l.b16 %v1075
  %v1588 = vunpack.c.l.b16 %v1076
  %v1589 = vunpack.c.l.b16 %v1077
  %v1590 = vunpack.c.l.b16 %v1078
  %v1591 = vunpack.c.l.b16 %v1079
  %v1592 = vunpack.c.l.b16 %v1080
  %v1593 = vunpack.c.l.b16 %v1081
  %v1594 = vunpack.c.l.b16 %v1082
  %v1595 = vunpack.c.l.b16 %v1083
  %v1596 = vunpack.c.l.b16 %v1084
  %v1597 = vunpack.c.l.b16 %v1085
  %v1598 = vunpack.c.l.b16 %v1086
  %v1599 = vunpack.c.l.b16 %v1087
  %v1600 = vunpack.c.l.b16 %v1088
  %v1601 = vunpack.c.l.b16 %v1089
  %v1602 = vunpack.c.l.b16 %v1090
  %v1603 = vunpack.c.l.b16 %v1091
  %v1604 = vunpack.c.l.b16 %v1092
  %v1605 = vunpack.c.l.b16 %v1093
  %v1606 = vunpack.c.l.b16 %v1094
  %v1607 = vunpack.c.l.b16 %v1095
  %v1608 = vunpack.c.l.b16 %v1096
  %v1609 = vunpack.c.l.b16 %v1097
  %v1610 = vunpack.c.l.b16 %v1098
  %v1611 = vpack.c.b16 %v1356, %v1355
  %v1612 = vpack.c.b16 %v1358, %v1357
  %v1613 = vpack.c.b16 %v1360, %v1359
  %v1614 = vpack.c.b16 %v1362, %v1361
  %v1615 = vpack.c.b16 %v1364, %v1363
  %v1616 = vpack.c.b16 %v1366, %v1365
  %v1617 = vpack.c.b16 %v1368, %v1367
  %v1618 = vpack.c.b16 %v1370, %v1369
  %v1619 = vpack.c.b16 %v1372, %v1371
  %v1620 = vpack.c.b16 %v1374, %v1373
  %v1621 = vpack.c.b16 %v1376, %v1375
  %v1622 = vpack.c.b16 %v1378, %v1377
  %v1623 = vpack.c.b16 %v1380, %v1379
  %v1624 = vpack.c.b16 %v1382, %v1381
  %v1625 = vpack.c.b16 %v1384, %v1383
  %v1626 = vpack.c.b16 %v1386, %v1385
  %v1627 = vpack.c.b16 %v1388, %v1387
  %v1628 = vpack.c.b16 %v1390, %v1389
  %v1629 = vpack.c.b16 %v1392, %v1391
  %v1630 = vpack.c.b16 %v1394, %v1393
  %v1631 = vpack.c.b16 %v1396, %v1395
  %v1632 = vpack.c.b16 %v1398, %v1397
  %v1633 = vpack.c.b16 %v1400, %v1399
  %v1634 = vpack.c.b16 %v1402, %v1401
  %v1635 = vpack.c.b16 %v1404, %v1403
  %v1636 = vpack.c.b16 %v1406, %v1405
  %v1637 = vpack.c.b16 %v1408, %v1407
  %v1638 = vpack.c.b16 %v1410, %v1409
  %v1639 = vpack.c.b16 %v1412, %v1411
  %v1640 = vpack.c.b16 %v1414, %v1413
  %v1641 = vpack.c.b16 %v1416, %v1415
  %v1642 = vpack.c.b16 %v1418, %v1417
  %v1643 = vpack.c.b16 %v1420, %v1419
  %v1644 = vpack.c.b16 %v1422, %v1421
  %v1645 = vpack.c.b16 %v1424, %v1423
  %v1646 = vpack.c.b16 %v1426, %v1425
  %v1647 = vpack.c.b16 %v1428, %v1427
  %v1648 = vpack.c.b16 %v1430, %v1429
  %v1649 = vpack.c.b16 %v1432, %v1431
  %v1650 = vpack.c.b16 %v1434, %v1433
  %v1651 = vpack.c.b16 %v1436, %v1435
  %v1652 = vpack.c.b16 %v1438, %v1437
  %v1653 = vpack.c.b16 %v1440, %v1439
  %v1654 = vpack.c.b16 %v1442, %v1441
  %v1655 = vpack.c.b16 %v1444, %v1443
  %v1656 = vpack.c.b16 %v1446, %v1445
  %v1657 = vpack.c.b16 %v1448, %v1447
  %v1658 = vpack.c.b16 %v1450, %v1449
  %v1659 = vpack.c.b16 %v1452, %v1451
  %v1660 = vpack.c.b16 %v1454, %v1453
  %v1661 = vpack.c.b16 %v1456, %v1455
  %v1662 = vpack.c.b16 %v1458, %v1457
  %v1663 = vpack.c.b16 %v1460, %v1459
  %v1664 = vpack.c.b16 %v1462, %v1461
  %v1665 = vpack.c.b16 %v1464, %v1463
  %v1666 = vpack.c.b16 %v1466, %v1465
  %v1667 = vpack.c.b16 %v1468, %v1467
  %v1668 = vpack.c.b16 %v1470, %v1469
  %v1669 = vpack.c.b16 %v1472, %v1471
  %v1670 = vpack.c.b16 %v1474, %v1473
  %v1671 = vpack.c.b16 %v1476, %v1475
  %v1672 = vpack.c.b16 %v1478, %v1477
  %v1673 = vpack.c.b16 %v1480, %v1479
  %v1674 = vpack.c.b16 %v1482, %v1481
  %v1675 = vpack.c.b16 %v1484, %v1483
  %v1676 = vpack.c.b16 %v1486, %v1485
  %v1677 = vpack.c.b16 %v1488, %v1487
  %v1678 = vpack.c.b16 %v1490, %v1489
  %v1679 = vpack.c.b16 %v1492, %v1491
  %v1680 = vpack.c.b16 %v1494, %v1493
  %v1681 = vpack.c.b16 %v1496, %v1495
  %v1682 = vpack.c.b16 %v1498, %v1497
  %v1683 = vpack.c.b16 %v1500, %v1499
  %v1684 = vpack.c.b16 %v1502, %v1501
  %v1685 = vpack.c.b16 %v1504, %v1503
  %v1686 = vpack.c.b16 %v1506, %v1505
  %v1687 = vpack.c.b16 %v1508, %v1507
  %v1688 = vpack.c.b16 %v1510, %v1509
  %v1689 = vpack.c.b16 %v1512, %v1511
  %v1690 = vpack.c.b16 %v1514, %v1513
  %v1691 = vpack.c.b16 %v1516, %v1515
  %v1692 = vpack.c.b16 %v1518, %v1517
  %v1693 = vpack.c.b16 %v1520, %v1519
  %v1694 = vpack.c.b16 %v1522, %v1521
  %v1695 = vpack.c.b16 %v1524, %v1523
  %v1696 = vpack.c.b16 %v1526, %v1525
  %v1697 = vpack.c.b16 %v1528, %v1527
  %v1698 = vpack.c.b16 %v1530, %v1529
  %v1699 = vpack.c.b16 %v1532, %v1531
  %v1700 = vpack.c.b16 %v1534, %v1533
  %v1701 = vpack.c.b16 %v1536, %v1535
  %v1702 = vpack.c.b16 %v1538, %v1537
  %v1703 = vpack.c.b16 %v1540, %v1539
  %v1704 = vpack.c.b16 %v1542, %v1541
  %v1705 = vpack.c.b16 %v1544, %v1543
  %v1706 = vpack.c.b16 %v1546, %v1545
  %v1707 = vpack.c.b16 %v1548, %v1547
  %v1708 = vpack.c.b16 %v1550, %v1549
  %v1709 = vpack.c.b16 %v1552, %v1551
  %v1710 = vpack.c.b16 %v1554, %v1553
  %v1711 = vpack.c.b16 %v1556, %v1555
  %v1712 = vpack.c.b16 %v1558, %v1557
  %v1713 = vpack.c.b16 %v1560, %v1559
  %v1714 = vpack.c.b16 %v1562, %v1561
  %v1715 = vpack.c.b16 %v1564, %v1563
  %v1716 = vpack.c.b16 %v1566, %v1565
  %v1717 = vpack.c.b16 %v1568, %v1567
  %v1718 = vpack.c.b16 %v1570, %v1569
  %v1719 = vpack.c.b16 %v1572, %v1571
  %v1720 = vpack.c.b16 %v1574, %v1573
  %v1721 = vpack.c.b16 %v1576, %v1575
  %v1722 = vpack.c.b16 %v1578, %v1577
  %v1723 = vpack.c.b16 %v1580, %v1579
  %v1724 = vpack.c.b16 %v1582, %v1581
  %v1725 = vpack.c.b16 %v1584, %v1583
  %v1726 = vpack.c.b16 %v1586, %v1585
  %v1727 = vpack.c.b16 %v1588, %v1587
  %v1728 = vpack.c.b16 %v1590, %v1589
  %v1729 = vpack.c.b16 %v1592, %v1591
  %v1730 = vpack.c.b16 %v1594, %v1593
  %v1731 = vpack.c.b16 %v1596, %v1595
  %v1732 = vpack.c.b16 %v1598, %v1597
  %v1733 = vpack.c.b16 %v1600, %v1599
  %v1734 = vpack.c.b16 %v1602, %v1601
  %v1735 = vpack.c.b16 %v1604, %v1603
  %v1736 = vpack.c.b16 %v1606, %v1605
  %v1737 = vpack.c.b16 %v1608, %v1607
  %v1738 = vpack.c.b16 %v1610, %v1609
  %1867 = vmatpush.bf16.msra.mxu0 %v1618
  %1868 = vmatpush.bf16.msra.mxu0 %v1617
  %1869 = vmatpush.bf16.msra.mxu0 %v1616
  %1870 = vmatpush.bf16.msra.mxu0 %v1615
  %1871 = vmatpush.bf16.msra.mxu0 %v1614
  %1872 = vmatpush.bf16.msra.mxu0 %v1613
  %1873 = vmatpush.bf16.msra.mxu0 %v1612
  %1874 = vmatpush.bf16.msra.mxu0 %v1611
  %1875 = vmatmul.bf16.gmra.mxu0 %v827
  %v1876 = vpop.f32.mrf.mxu0
  %v1877 = vadd.f32 0.0, %v1876
  %v1878 = vpop.f32.mrf.mxu0
  %1879 = vdwg.mxu0
  %1880 = vmatpush.bf16.msra.mxu0 %v1626
  %1881 = vmatpush.bf16.msra.mxu0 %v1625
  %1882 = vmatpush.bf16.msra.mxu0 %v1624
  %1883 = vmatpush.bf16.msra.mxu0 %v1623
  %1884 = vmatpush.bf16.msra.mxu0 %v1622
  %1885 = vmatpush.bf16.msra.mxu0 %v1621
  %1886 = vmatpush.bf16.msra.mxu0 %v1620
  %1887 = vmatpush.bf16.msra.mxu0 %v1619
  %1888 = vmatmul.bf16.gmra.mxu0 %v828
  %v1889 = vpop.f32.mrf.mxu0
  %v1890 = vadd.f32 %v1877, %v1889
  %v1891 = vpop.f32.mrf.mxu0
  %1892 = vdwg.mxu0
  %1893 = vmatpush.bf16.msra.mxu0 %v1634
  %1894 = vmatpush.bf16.msra.mxu0 %v1633
  %1895 = vmatpush.bf16.msra.mxu0 %v1632
  %1896 = vmatpush.bf16.msra.mxu0 %v1631
  %1897 = vmatpush.bf16.msra.mxu0 %v1630
  %1898 = vmatpush.bf16.msra.mxu0 %v1629
  %1899 = vmatpush.bf16.msra.mxu0 %v1628
  %1900 = vmatpush.bf16.msra.mxu0 %v1627
  %1901 = vmatmul.bf16.gmra.mxu0 %v829
  %v1902 = vpop.f32.mrf.mxu0
  %v1903 = vadd.f32 %v1890, %v1902
  %v1904 = vpop.f32.mrf.mxu0
  %1905 = vdwg.mxu0
  %1906 = vmatpush.bf16.msra.mxu0 %v1642
  %1907 = vmatpush.bf16.msra.mxu0 %v1641
  %1908 = vmatpush.bf16.msra.mxu0 %v1640
  %1909 = vmatpush.bf16.msra.mxu0 %v1639
  %1910 = vmatpush.bf16.msra.mxu0 %v1638
  %1911 = vmatpush.bf16.msra.mxu0 %v1637
  %1912 = vmatpush.bf16.msra.mxu0 %v1636
  %1913 = vmatpush.bf16.msra.mxu0 %v1635
  %1914 = vmatmul.bf16.gmra.mxu0 %v830
  %v1915 = vpop.f32.mrf.mxu0
  %v1916 = vadd.f32 %v1903, %v1915
  %v1917 = vpop.f32.mrf.mxu0
  %1918 = vdwg.mxu0
  %1919 = vmatpush.bf16.msra.mxu0 %v1650
  %1920 = vmatpush.bf16.msra.mxu0 %v1649
  %1921 = vmatpush.bf16.msra.mxu0 %v1648
  %1922 = vmatpush.bf16.msra.mxu0 %v1647
  %1923 = vmatpush.bf16.msra.mxu0 %v1646
  %1924 = vmatpush.bf16.msra.mxu0 %v1645
  %1925 = vmatpush.bf16.msra.mxu0 %v1644
  %1926 = vmatpush.bf16.msra.mxu0 %v1643
  %1927 = vmatmul.bf16.gmra.mxu0 %v831
  %v1928 = vpop.f32.mrf.mxu0
  %v1929 = vadd.f32 %v1916, %v1928
  %v1930 = vpop.f32.mrf.mxu0
  %1931 = vdwg.mxu0
  %1932 = vmatpush.bf16.msra.mxu0 %v1658
  %1933 = vmatpush.bf16.msra.mxu0 %v1657
  %1934 = vmatpush.bf16.msra.mxu0 %v1656
  %1935 = vmatpush.bf16.msra.mxu0 %v1655
  %1936 = vmatpush.bf16.msra.mxu0 %v1654
  %1937 = vmatpush.bf16.msra.mxu0 %v1653
  %1938 = vmatpush.bf16.msra.mxu0 %v1652
  %1939 = vmatpush.bf16.msra.mxu0 %v1651
  %1940 = vmatmul.bf16.gmra.mxu0 %v832
  %v1941 = vpop.f32.mrf.mxu0
  %v1942 = vadd.f32 %v1929, %v1941
  %v1943 = vpop.f32.mrf.mxu0
  %1944 = vdwg.mxu0
  %1945 = vmatpush.bf16.msra.mxu0 %v1666
  %1946 = vmatpush.bf16.msra.mxu0 %v1665
  %1947 = vmatpush.bf16.msra.mxu0 %v1664
  %1948 = vmatpush.bf16.msra.mxu0 %v1663
  %1949 = vmatpush.bf16.msra.mxu0 %v1662
  %1950 = vmatpush.bf16.msra.mxu0 %v1661
  %1951 = vmatpush.bf16.msra.mxu0 %v1660
  %1952 = vmatpush.bf16.msra.mxu0 %v1659
  %1953 = vmatmul.bf16.gmra.mxu0 %v833
  %v1954 = vpop.f32.mrf.mxu0
  %v1955 = vadd.f32 %v1942, %v1954
  %v1956 = vpop.f32.mrf.mxu0
  %1957 = vdwg.mxu0
  %1958 = vmatpush.bf16.msra.mxu0 %v1674
  %1959 = vmatpush.bf16.msra.mxu0 %v1673
  %1960 = vmatpush.bf16.msra.mxu0 %v1672
  %1961 = vmatpush.bf16.msra.mxu0 %v1671
  %1962 = vmatpush.bf16.msra.mxu0 %v1670
  %1963 = vmatpush.bf16.msra.mxu0 %v1669
  %1964 = vmatpush.bf16.msra.mxu0 %v1668
  %1965 = vmatpush.bf16.msra.mxu0 %v1667
  %1966 = vmatmul.bf16.gmra.mxu0 %v834
  %v1967 = vpop.f32.mrf.mxu0
  %v1968 = vadd.f32 %v1955, %v1967
  %v1969 = vpop.f32.mrf.mxu0
  %1970 = vdwg.mxu0
  %1971 = vmatpush.bf16.msra.mxu0 %v1682
  %1972 = vmatpush.bf16.msra.mxu0 %v1681
  %1973 = vmatpush.bf16.msra.mxu0 %v1680
  %1974 = vmatpush.bf16.msra.mxu0 %v1679
  %1975 = vmatpush.bf16.msra.mxu0 %v1678
  %1976 = vmatpush.bf16.msra.mxu0 %v1677
  %1977 = vmatpush.bf16.msra.mxu0 %v1676
  %1978 = vmatpush.bf16.msra.mxu0 %v1675
  %1979 = vmatmul.bf16.gmra.mxu0 %v835
  %v1980 = vpop.f32.mrf.mxu0
  %v1981 = vadd.f32 %v1968, %v1980
  %v1982 = vpop.f32.mrf.mxu0
  %1983 = vdwg.mxu0
  %1984 = vmatpush.bf16.msra.mxu0 %v1690
  %1985 = vmatpush.bf16.msra.mxu0 %v1689
  %1986 = vmatpush.bf16.msra.mxu0 %v1688
  %1987 = vmatpush.bf16.msra.mxu0 %v1687
  %1988 = vmatpush.bf16.msra.mxu0 %v1686
  %1989 = vmatpush.bf16.msra.mxu0 %v1685
  %1990 = vmatpush.bf16.msra.mxu0 %v1684
  %1991 = vmatpush.bf16.msra.mxu0 %v1683
  %1992 = vmatmul.bf16.gmra.mxu0 %v836
  %v1993 = vpop.f32.mrf.mxu0
  %v1994 = vadd.f32 %v1981, %v1993
  %v1995 = vpop.f32.mrf.mxu0
  %1996 = vdwg.mxu0
  %1997 = vmatpush.bf16.msra.mxu0 %v1698
  %1998 = vmatpush.bf16.msra.mxu0 %v1697
  %1999 = vmatpush.bf16.msra.mxu0 %v1696
  %2000 = vmatpush.bf16.msra.mxu0 %v1695
  %2001 = vmatpush.bf16.msra.mxu0 %v1694
  %2002 = vmatpush.bf16.msra.mxu0 %v1693
  %2003 = vmatpush.bf16.msra.mxu0 %v1692
  %2004 = vmatpush.bf16.msra.mxu0 %v1691
  %2005 = vmatmul.bf16.gmra.mxu0 %v837
  %v2006 = vpop.f32.mrf.mxu0
  %v2007 = vadd.f32 %v1994, %v2006
  %v2008 = vpop.f32.mrf.mxu0
  %2009 = vdwg.mxu0
  %2010 = vmatpush.bf16.msra.mxu0 %v1706
  %2011 = vmatpush.bf16.msra.mxu0 %v1705
  %2012 = vmatpush.bf16.msra.mxu0 %v1704
  %2013 = vmatpush.bf16.msra.mxu0 %v1703
  %2014 = vmatpush.bf16.msra.mxu0 %v1702
  %2015 = vmatpush.bf16.msra.mxu0 %v1701
  %2016 = vmatpush.bf16.msra.mxu0 %v1700
  %2017 = vmatpush.bf16.msra.mxu0 %v1699
  %2018 = vmatmul.bf16.gmra.mxu0 %v838
  %v2019 = vpop.f32.mrf.mxu0
  %v2020 = vadd.f32 %v2007, %v2019
  %v2021 = vpop.f32.mrf.mxu0
  %2022 = vdwg.mxu0
  %2023 = vmatpush.bf16.msra.mxu0 %v1714
  %2024 = vmatpush.bf16.msra.mxu0 %v1713
  %2025 = vmatpush.bf16.msra.mxu0 %v1712
  %2026 = vmatpush.bf16.msra.mxu0 %v1711
  %2027 = vmatpush.bf16.msra.mxu0 %v1710
  %2028 = vmatpush.bf16.msra.mxu0 %v1709
  %2029 = vmatpush.bf16.msra.mxu0 %v1708
  %2030 = vmatpush.bf16.msra.mxu0 %v1707
  %2031 = vmatmul.bf16.gmra.mxu0 %v839
  %v2032 = vpop.f32.mrf.mxu0
  %v2033 = vadd.f32 %v2020, %v2032
  %v2034 = vpop.f32.mrf.mxu0
  %2035 = vdwg.mxu0
  %2036 = vmatpush.bf16.msra.mxu0 %v1722
  %2037 = vmatpush.bf16.msra.mxu0 %v1721
  %2038 = vmatpush.bf16.msra.mxu0 %v1720
  %2039 = vmatpush.bf16.msra.mxu0 %v1719
  %2040 = vmatpush.bf16.msra.mxu0 %v1718
  %2041 = vmatpush.bf16.msra.mxu0 %v1717
  %2042 = vmatpush.bf16.msra.mxu0 %v1716
  %2043 = vmatpush.bf16.msra.mxu0 %v1715
  %2044 = vmatmul.bf16.gmra.mxu0 %v840
  %v2045 = vpop.f32.mrf.mxu0
  %v2046 = vadd.f32 %v2033, %v2045
  %v2047 = vpop.f32.mrf.mxu0
  %2048 = vdwg.mxu0
  %2049 = vmatpush.bf16.msra.mxu0 %v1730
  %2050 = vmatpush.bf16.msra.mxu0 %v1729
  %2051 = vmatpush.bf16.msra.mxu0 %v1728
  %2052 = vmatpush.bf16.msra.mxu0 %v1727
  %2053 = vmatpush.bf16.msra.mxu0 %v1726
  %2054 = vmatpush.bf16.msra.mxu0 %v1725
  %2055 = vmatpush.bf16.msra.mxu0 %v1724
  %2056 = vmatpush.bf16.msra.mxu0 %v1723
  %2057 = vmatmul.bf16.gmra.mxu0 %v841
  %v2058 = vpop.f32.mrf.mxu0
  %v2059 = vadd.f32 %v2046, %v2058
  %v2060 = vpop.f32.mrf.mxu0
  %2061 = vdwg.mxu0
  %2062 = vmatpush.bf16.msra.mxu0 %v1738
  %2063 = vmatpush.bf16.msra.mxu0 %v1737
  %2064 = vmatpush.bf16.msra.mxu0 %v1736
  %2065 = vmatpush.bf16.msra.mxu0 %v1735
  %2066 = vmatpush.bf16.msra.mxu0 %v1734
  %2067 = vmatpush.bf16.msra.mxu0 %v1733
  %2068 = vmatpush.bf16.msra.mxu0 %v1732
  %2069 = vmatpush.bf16.msra.mxu0 %v1731
  %2070 = vmatmul.bf16.gmra.mxu0 %v842
  %v2071 = vpop.f32.mrf.mxu0
  %v2072 = vadd.f32 %v2059, %v2071
  %v2073 = vpop.f32.mrf.mxu0
  %2074 = vdwg.mxu0
  %v2075 = vxor.u32 %v2072, 2147483648
  %v2076 = vmul.f32 %v2075, 1.442695
  %v2077 = vpow.pop %v2076
  %v2078 = vadd.f32 %v2077, 1.0
  %v2079 = vrcp.pop %v2078
  %v2080 = vmul.f32 %v2078, %v2079
  %v2081 = vsub.f32 1.0, %v2080
  %v2082 = vmul.f32 %v2079, %v2081
  %v2083 = vadd.f32 %v2079, %v2082
  %vm2084 = vweird.f32 %v2078
  %vm2085 = vweird.f32 %v2079
  %vm2086 = vmor %vm2084, %vm2085
  %v2087 = vsel %vm2086, %v2079, %v2083
  %v2088 = vand.u32 2147483647, %v2078
  %vm2089 = vcmp.eq.f32.partialorder %v2088, 8.507059e+37
  %v2090 = vand.u32 %v2078, 2147483648
  %v2091 = vor.u32 1.1754944e-38, %v2090
  %v2092 = vsel %vm2089, %v2091, %v2087
  %v2093 = vmul.f32 1.0, %v2092
  %2094 = vst [vmem:[%s5] sm:$0xff] %v2093
  // Predicated region
  $region22: #{netd_forward.9} parent=0 // pred_check
    _
  $region23: #{netd_forward.9} parent=0 // pred_check_branch
    %2096 = sbr.rel (0) target = $region25
  $region24: #{netd_forward.9} parent=0 // pred_region
    _
  $region25: #{netd_forward.9} parent=0 // pred_fallthru
    _
  // Predicated region
  $region26: #{netd_forward.9} parent=0 // pred_check
    _
  $region27: #{netd_forward.9} parent=0 // pred_check_branch
    %2098 = sbr.rel (0) target = $region29
  $region28: #{netd_forward.9} parent=0 // pred_region
    _
  $region29: #{netd_forward.9} parent=0 // pred_fallthru
    _

</llo_original>
